<compile_context>
chip_gen: v7x
topology: tpu7x:2x2x1
jax: 0.10.0
libtpu: 0.0.40
codegen_flags: <defaults>
</compile_context>

<pallas_src>
import functools

import jax
import jax.numpy as jnp
from jax.experimental import pallas as pl
from jax.experimental.pallas import tpu as pltpu

# ---- small, deterministic model config (consistent with ESMTransformer.__init__) ----
NUM_LAYERS = 2
EMBED_DIM = 32
NUM_HEADS = 4
HEAD_DIM = EMBED_DIM // NUM_HEADS
FFN_DIM = 4 * EMBED_DIM
ALPHABET_SIZE = 33          # ESM-1b alphabet size
PADDING_IDX = 1
CLS_IDX = 0
EOS_IDX = 2
LN_EPS = 1e-12              # ESM1bLayerNorm default eps


# ---------------------------------------------------------------------------
# In-kernel math helpers
# ---------------------------------------------------------------------------
def _erf(x):
    # Abramowitz & Stegun 7.1.26 rational erf approximation, |err| < 1.5e-7.
    # TODO(synk): switch to an exact erf if a Mosaic lowering becomes available.
    p = 0.3275911
    a1, a2, a3, a4, a5 = 0.254829592, -0.284496736, 1.421413741, -1.453152027, 1.061405429
    ax = jnp.abs(x)
    t = 1.0 / (1.0 + p * ax)
    poly = ((((a5 * t + a4) * t + a3) * t + a2) * t + a1) * t
    y = 1.0 - poly * jnp.exp(-ax * ax)
    return jnp.where(x >= 0, y, -y)


def _layer_norm(z, g, b):
    mu = jnp.mean(z, axis=-1, keepdims=True)
    zc = z - mu
    var = jnp.mean(zc * zc, axis=-1, keepdims=True)
    return g * (zc * jax.lax.rsqrt(var + LN_EPS)) + b


# ---------------------------------------------------------------------------
# Fused whole-stack kernel: one grid step == one transformer layer.
# ---------------------------------------------------------------------------
def _fused_stack_kernel(bias_ref, amask2_ref, cos_ref, sin_ref, x0_ref,
                        ln1g_ref, ln1b_ref, wqkv_ref, bqkv_ref, wo_ref, bo_ref,
                        ln2g_ref, ln2b_ref, w1_ref, b1_ref, w2_ref, b2_ref,
                        lnfg_ref, lnfb_ref,
                        attn_ref, repr_ref,
                        x_sc, ctx_sc, *, batch, seqlen):
    l = pl.program_id(0)
    B, T = batch, seqlen
    E, H, Dh = EMBED_DIM, NUM_HEADS, HEAD_DIM
    half = Dh // 2
    scale = Dh ** -0.5

    # Activation becomes VMEM-resident at layer 0 and never leaves until the end.
    @pl.when(l == 0)
    def _init():
        x_sc[...] = x0_ref[...]

    bias = bias_ref[...]          # (B, T): -1e30 at padded key positions, 0 elsewhere
    amask2 = amask2_ref[...]      # (B, T, T): 0 at padded query rows / key cols
    cos = cos_ref[...]            # (T, Dh)
    sin = sin_ref[...]            # (T, Dh)
    cos1, cos2 = cos[:, :half], cos[:, half:]
    sin1, sin2 = sin[:, :half], sin[:, half:]

    def rope(z):  # z: (T, Dh);  z*cos + rotate_half(z)*sin, rotate_half([z1,z2])=[-z2,z1]
        z1, z2 = z[:, :half], z[:, half:]
        return jnp.concatenate(
            [z1 * cos1 - z2 * sin1, z2 * cos2 + z1 * sin2], axis=1)

    x = x_sc[...]                                                    # (B*T, E)

    # ---- self-attention block (pre-LN, ESM1b LayerNorm) ----
    xn = _layer_norm(x, ln1g_ref[0], ln1b_ref[0])
    qkv = jnp.dot(xn, wqkv_ref[0], preferred_element_type=jnp.float32) + bqkv_ref[0]

    # All (batch, head) pairs handled inside this single kernel invocation.
    for b in range(B):
        r0 = b * T
        bias_b = bias[b:b + 1, :]                                    # (1, T)
        mask_b = amask2[b]                                           # (T, T)
        for h in range(H):
            c0 = h * Dh
            qh = rope(qkv[r0:r0 + T, c0:c0 + Dh]) * scale            # (T, Dh)
            kh = rope(qkv[r0:r0 + T, E + c0:E + c0 + Dh])            # (T, Dh)
            vh = qkv[r0:r0 + T, 2 * E + c0:2 * E + c0 + Dh]          # (T, Dh)
            s = jax.lax.dot_general(qh, kh, (((1,), (1,)), ((), ())),
                                    preferred_element_type=jnp.float32)  # (T, T)
            s = s + bias_b
            m = jnp.max(s, axis=-1, keepdims=True)
            e = jnp.exp(s - m)
            den = jnp.sum(e, axis=-1, keepdims=True)
            p = e * pl.reciprocal(den, approx=True)                  # softmax (EUP recip)
            attn_ref[0, b, h] = p * mask_b                           # padding mask fused here
            ctx_sc[r0:r0 + T, c0:c0 + Dh] = jnp.dot(
                p, vh, preferred_element_type=jnp.float32)

    x = x + jnp.dot(ctx_sc[...], wo_ref[0],
                    preferred_element_type=jnp.float32) + bo_ref[0]

    # ---- feed-forward block (pre-LN) ----
    xn = _layer_norm(x, ln2g_ref[0], ln2b_ref[0])
    hdn = jnp.dot(xn, w1_ref[0], preferred_element_type=jnp.float32) + b1_ref[0]
    hdn = 0.5 * hdn * (1.0 + _erf(hdn * 0.7071067811865476))         # exact-form GELU
    x = x + jnp.dot(hdn, w2_ref[0], preferred_element_type=jnp.float32) + b2_ref[0]

    x_sc[...] = x

    # emb_layer_norm_after fused into the last layer step; return_layer == num_layers.
    @pl.when(l == NUM_LAYERS - 1)
    def _final():
        repr_ref[...] = _layer_norm(x, lnfg_ref[...], lnfb_ref[...])


# ---------------------------------------------------------------------------
# JAX glue: rotary tables, parameter init, forward wrapper
# ---------------------------------------------------------------------------
def rotary_cos_sin(seq_len, dim):
    inv_freq = 1.0 / (10000.0 ** (jnp.arange(0, dim, 2, dtype=jnp.float32) / dim))
    t = jnp.arange(seq_len, dtype=jnp.float32)
    freqs = jnp.einsum("i,j->ij", t, inv_freq)          # (T, dim/2)
    emb = jnp.concatenate([freqs, freqs], axis=-1)      # (T, dim)
    return jnp.cos(emb), jnp.sin(emb)


def init_params(key):
    def nkey():
        nonlocal key
        key, sub = jax.random.split(key)
        return sub

    def dense(din, dout):
        w = 0.02 * jax.random.normal(nkey(), (din, dout), jnp.float32)
        b = 0.01 * jax.random.normal(nkey(), (1, dout), jnp.float32)
        return w, b

    emb = 0.02 * jax.random.normal(nkey(), (ALPHABET_SIZE, EMBED_DIM), jnp.float32)
    emb = emb.at[PADDING_IDX].set(0.0)   # nn.Embedding(padding_idx=...) row is zero

    layers = []
    for _ in range(NUM_LAYERS):
        wq, bq = dense(EMBED_DIM, EMBED_DIM)
        wk, bk = dense(EMBED_DIM, EMBED_DIM)
        wv, bv = dense(EMBED_DIM, EMBED_DIM)
        wo, bo = dense(EMBED_DIM, EMBED_DIM)
        w1, b1 = dense(EMBED_DIM, FFN_DIM)
        w2, b2 = dense(FFN_DIM, EMBED_DIM)
        layers.append(dict(
            wq=wq, bq=bq, wk=wk, bk=bk, wv=wv, bv=bv, wo=wo, bo=bo,
            w1=w1, b1=b1, w2=w2, b2=b2,
            ln1_g=1.0 + 0.01 * jax.random.normal(nkey(), (1, EMBED_DIM), jnp.float32),
            ln1_b=0.01 * jax.random.normal(nkey(), (1, EMBED_DIM), jnp.float32),
            ln2_g=1.0 + 0.01 * jax.random.normal(nkey(), (1, EMBED_DIM), jnp.float32),
            ln2_b=0.01 * jax.random.normal(nkey(), (1, EMBED_DIM), jnp.float32),
        ))
    return dict(
        embed_tokens=emb,
        layers=layers,
        ln_f_g=1.0 + 0.01 * jax.random.normal(nkey(), (1, EMBED_DIM), jnp.float32),
        ln_f_b=0.01 * jax.random.normal(nkey(), (1, EMBED_DIM), jnp.float32),
    )


def esm_transformer_forward(tokens, params):
    B, T = tokens.shape
    N = B * T
    padf = (tokens == PADDING_IDX).astype(jnp.float32)

    # Embedding gather stays as JAX glue (tiny int gather); embed_scale == 1.
    x0 = jnp.take(params["embed_tokens"], tokens, axis=0)           # (B, T, E)
    x0 = (x0 * (1.0 - padf[..., None])).reshape(N, EMBED_DIM)

    # Key-padding bias (reused for every head via BlockSpec, never repeated over H)
    attn_bias = padf * jnp.float32(-1e30)                           # (B, T)
    amask = 1.0 - padf
    amask2 = amask[:, :, None] * amask[:, None, :]                  # (B, T, T)
    cos, sin = rotary_cos_sin(T, HEAD_DIM)

    lyr = params["layers"]
    stack = lambda k: jnp.stack([lp[k] for lp in lyr], axis=0)
    # Fused QKV weights: (L, E, 3E) / (L, 1, 3E)
    wqkv = jnp.stack([jnp.concatenate([lp["wq"], lp["wk"], lp["wv"]], axis=1) for lp in lyr], 0)
    bqkv = jnp.stack([jnp.concatenate([lp["bq"], lp["bk"], lp["bv"]], axis=1) for lp in lyr], 0)

    L, H, E, F = NUM_LAYERS, NUM_HEADS, EMBED_DIM, FFN_DIM

    c2 = lambda shape: pl.BlockSpec(shape, lambda l: (0, 0))          # layer-invariant 2D
    c3 = lambda shape: pl.BlockSpec(shape, lambda l: (0, 0, 0))       # layer-invariant 3D
    s3 = lambda shape: pl.BlockSpec(shape, lambda l: (l, 0, 0))       # layer-stacked 3D

    in_specs = [
        c2((B, T)),                               # attn_bias
        c3((B, T, T)),                            # amask2
        c2((T, HEAD_DIM)), c2((T, HEAD_DIM)),     # cos, sin
        c2((N, E)),                               # x0
        s3((1, 1, E)), s3((1, 1, E)),             # ln1 gamma / beta
        s3((1, E, 3 * E)), s3((1, 1, 3 * E)),     # wqkv / bqkv
        s3((1, E, E)), s3((1, 1, E)),             # wo / bo
        s3((1, 1, E)), s3((1, 1, E)),             # ln2 gamma / beta
        s3((1, E, F)), s3((1, 1, F)),             # w1 / b1
        s3((1, F, E)), s3((1, 1, E)),             # w2 / b2
        c2((1, E)), c2((1, E)),                   # final LN gamma / beta
    ]
    out_specs = [
        pl.BlockSpec((1, B, H, T, T), lambda l: (l, 0, 0, 0, 0)),     # per-layer attn probs
        pl.BlockSpec((N, E), lambda l: (0, 0)),                       # representations
    ]
    out_shape = [
        jax.ShapeDtypeStruct((L, B, H, T, T), jnp.float32),
        jax.ShapeDtypeStruct((N, E), jnp.float32),
    ]

    attn_lb, repr_flat = pl.pallas_call(
        functools.partial(_fused_stack_kernel, batch=B, seqlen=T),
        grid=(L,),
        in_specs=in_specs,
        out_specs=out_specs,
        out_shape=out_shape,
        scratch_shapes=[pltpu.VMEM((N, EMBED_DIM), jnp.float32),      # resident activation
                        pltpu.VMEM((N, EMBED_DIM), jnp.float32)],     # per-layer attn context
        compiler_params=pltpu.CompilerParams(
            dimension_semantics=("arbitrary",)),                      # layers are sequential
    )(attn_bias, amask2, cos, sin, x0,
      stack("ln1_g"), stack("ln1_b"), wqkv, bqkv,
      stack("wo"), stack("bo"), stack("ln2_g"), stack("ln2_b"),
      stack("w1"), stack("b1"), stack("w2"), stack("b2"),
      params["ln_f_g"], params["ln_f_b"])

    representations = repr_flat.reshape(B, T, EMBED_DIM)
    attentions = jnp.transpose(attn_lb, (1, 0, 2, 3, 4))              # (B, L, H, T, T)
    # TODO(synk): lm_head / token_dropout branches are disabled by default flags; not implemented.
    return {"representations": representations, "attentions": attentions}


# ---------------------------------------------------------------------------
# Pure-JAX reference (same math, unfused) for a lightweight self-check.
# ---------------------------------------------------------------------------
def reference_forward(tokens, params):
    B, T = tokens.shape
    padf = (tokens == PADDING_IDX).astype(jnp.float32)
    x = jnp.take(params["embed_tokens"], tokens, axis=0) * (1.0 - padf[..., None])
    cos, sin = rotary_cos_sin(T, HEAD_DIM)
    bias = padf * jnp.float32(-1e30)
    scale = HEAD_DIM ** -0.5
    half = HEAD_DIM // 2

    def ln(z, g, b):
        mu = z.mean(-1, keepdims=True)
        zc = z - mu
        return g * zc / jnp.sqrt((zc * zc).mean(-1, keepdims=True) + LN_EPS) + b

    def split(z):
        return z.reshape(B, T, NUM_HEADS, HEAD_DIM).transpose(0, 2, 1, 3)

    def rope(z):
        z1, z2 = z[..., :half], z[..., half:]
        rot = jnp.concatenate([-z2, z1], axis=-1)
        return z * cos + rot * sin

    attns = []
    for lp in params["layers"]:
        res = x
        xn = ln(x, lp["ln1_g"], lp["ln1_b"])
        q, k, v = xn @ lp["wq"] + lp["bq"], xn @ lp["wk"] + lp["bk"], xn @ lp["wv"] + lp["bv"]
        qh, kh, vh = rope(split(q)) * scale, rope(split(k)), split(v)
        s = jnp.einsum("bhqd,bhkd->bhqk", qh, kh) + bias[:, None, None, :]
        p = jax.nn.softmax(s, axis=-1)
        attns.append(p)
        ctx = jnp.einsum("bhqk,bhkd->bhqd", p, vh).transpose(0, 2, 1, 3).reshape(B, T, EMBED_DIM)
        x = res + ctx @ lp["wo"] + lp["bo"]
        res = x
        xn = ln(x, lp["ln2_g"], lp["ln2_b"])
        h1 = xn @ lp["w1"] + lp["b1"]
        h1 = 0.5 * h1 * (1.0 + _erf(h1 * 0.7071067811865476))
        x = res + h1 @ lp["w2"] + lp["b2"]
    x = ln(x, params["ln_f_g"], params["ln_f_b"])
    attn = jnp.stack(attns, axis=1)
    amask = 1.0 - padf
    attn = attn * (amask[:, None, None, :, None] * amask[:, None, None, None, :])
    return x, attn


if __name__ == "__main__":
    key = jax.random.PRNGKey(0)
    params = init_params(key)
    # tokens: (B=2, T=8) with cls / eos / padding, exercising the padding-mask path.
    tokens = jnp.array(
        [[CLS_IDX, 5, 6, 7, 8, 9, 10, EOS_IDX],
         [CLS_IDX, 11, 12, 13, EOS_IDX, PADDING_IDX, PADDING_IDX, PADDING_IDX]],
        dtype=jnp.int32,
    )
    out = esm_transformer_forward(tokens, params)
    out = jax.block_until_ready(out)

    B, T = tokens.shape
    assert out["representations"].shape == (B, T, EMBED_DIM)
    assert out["attentions"].shape == (B, NUM_LAYERS, NUM_HEADS, T, T)
    assert bool(jnp.all(jnp.isfinite(out["representations"])))
    assert bool(jnp.all(jnp.isfinite(out["attentions"])))

    ref_repr, ref_attn = reference_forward(tokens, params)
    # Lenient tolerance: approx reciprocal (~2^-12 rel) in the softmax is the only
    # deliberate deviation from the f32 reference.
    assert bool(jnp.allclose(out["representations"], ref_repr, atol=5e-3, rtol=5e-3))
    assert bool(jnp.allclose(out["attentions"], ref_attn, atol=5e-3, rtol=5e-3))
    print("KERNEL_OK")
</pallas_src>

<mosaic_0001>
module attributes {stable_mosaic.version = 11 : i64} {
  func.func @_fused_stack_kernel(%arg0: i32, %arg1: memref<2x8xf32, #tpu.memory_space<vmem>>, %arg2: memref<2x8x8xf32, #tpu.memory_space<vmem>>, %arg3: memref<8x8xf32, #tpu.memory_space<vmem>>, %arg4: memref<8x8xf32, #tpu.memory_space<vmem>>, %arg5: memref<16x32xf32, #tpu.memory_space<vmem>>, %arg6: memref<1x1x32xf32, #tpu.memory_space<vmem>>, %arg7: memref<1x1x32xf32, #tpu.memory_space<vmem>>, %arg8: memref<1x32x96xf32, #tpu.memory_space<vmem>>, %arg9: memref<1x1x96xf32, #tpu.memory_space<vmem>>, %arg10: memref<1x32x32xf32, #tpu.memory_space<vmem>>, %arg11: memref<1x1x32xf32, #tpu.memory_space<vmem>>, %arg12: memref<1x1x32xf32, #tpu.memory_space<vmem>>, %arg13: memref<1x1x32xf32, #tpu.memory_space<vmem>>, %arg14: memref<1x32x128xf32, #tpu.memory_space<vmem>>, %arg15: memref<1x1x128xf32, #tpu.memory_space<vmem>>, %arg16: memref<1x128x32xf32, #tpu.memory_space<vmem>>, %arg17: memref<1x1x32xf32, #tpu.memory_space<vmem>>, %arg18: memref<1x32xf32, #tpu.memory_space<vmem>>, %arg19: memref<1x32xf32, #tpu.memory_space<vmem>>, %arg20: memref<1x2x4x8x8xf32, #tpu.memory_space<vmem>>, %arg21: memref<16x32xf32, #tpu.memory_space<vmem>>, %arg22: memref<16x32xf32, #tpu.memory_space<vmem>>, %arg23: memref<16x32xf32, #tpu.memory_space<vmem>>) attributes {dimension_semantics = [#tpu.dimension_semantics<arbitrary>], iteration_bounds = array<i64: 2>, scalar_prefetch = 0 : i64, scratch_operands = 2 : i64, tpu.core_type = #tpu.core_type<tc>, window_params = [{pipeline_mode = #tpu.pipeline_mode<synchronous>, transform_indices = @transform_0, window_bounds = array<i64: 2, 8>}, {pipeline_mode = #tpu.pipeline_mode<synchronous>, transform_indices = @transform_1, window_bounds = array<i64: 2, 8, 8>}, {pipeline_mode = #tpu.pipeline_mode<synchronous>, transform_indices = @transform_2, window_bounds = array<i64: 8, 8>}, {pipeline_mode = #tpu.pipeline_mode<synchronous>, transform_indices = @transform_3, window_bounds = array<i64: 8, 8>}, {pipeline_mode = #tpu.pipeline_mode<synchronous>, transform_indices = @transform_4, window_bounds = array<i64: 16, 32>}, {transform_indices = @transform_5, window_bounds = array<i64: 1, 1, 32>}, {transform_indices = @transform_6, window_bounds = array<i64: 1, 1, 32>}, {transform_indices = @transform_7, window_bounds = array<i64: 1, 32, 96>}, {transform_indices = @transform_8, window_bounds = array<i64: 1, 1, 96>}, {transform_indices = @transform_9, window_bounds = array<i64: 1, 32, 32>}, {transform_indices = @transform_10, window_bounds = array<i64: 1, 1, 32>}, {transform_indices = @transform_11, window_bounds = array<i64: 1, 1, 32>}, {transform_indices = @transform_12, window_bounds = array<i64: 1, 1, 32>}, {transform_indices = @transform_13, window_bounds = array<i64: 1, 32, 128>}, {transform_indices = @transform_14, window_bounds = array<i64: 1, 1, 128>}, {transform_indices = @transform_15, window_bounds = array<i64: 1, 128, 32>}, {transform_indices = @transform_16, window_bounds = array<i64: 1, 1, 32>}, {pipeline_mode = #tpu.pipeline_mode<synchronous>, transform_indices = @transform_17, window_bounds = array<i64: 1, 32>}, {pipeline_mode = #tpu.pipeline_mode<synchronous>, transform_indices = @transform_18, window_bounds = array<i64: 1, 32>}, {transform_indices = @transform_19, window_bounds = array<i64: 1, 2, 4, 8, 8>}, {pipeline_mode = #tpu.pipeline_mode<synchronous>, transform_indices = @transform_20, window_bounds = array<i64: 16, 32>}]} {
    %c0_i32 = arith.constant 0 : i32
    %0 = arith.cmpi eq, %arg0, %c0_i32 : i32
    %1 = arith.extui %0 : i1 to i32
    %c0_i32_0 = arith.constant 0 : i32
    %2 = arith.cmpi ne, %1, %c0_i32_0 : i32
    scf.if %2 {
      %c0_170 = arith.constant 0 : index
      %c0_171 = arith.constant 0 : index
      %477 = vector.load %arg5[%c0_170, %c0_171] : memref<16x32xf32, #tpu.memory_space<vmem>>, vector<16x32xf32>
      %c0_172 = arith.constant 0 : index
      %c0_173 = arith.constant 0 : index
      %478 = vector.load %arg22[%c0_172, %c0_173] : memref<16x32xf32, #tpu.memory_space<vmem>>, vector<16x32xf32>
      tpu.vector_store %arg22[%c0_172, %c0_173], %477 {strides = array<i32>} : memref<16x32xf32, #tpu.memory_space<vmem>>, vector<16x32xf32>,
    } else {
    }
    %c0 = arith.constant 0 : index
    %c0_1 = arith.constant 0 : index
    %3 = vector.load %arg1[%c0, %c0_1] : memref<2x8xf32, #tpu.memory_space<vmem>>, vector<2x8xf32>
    %c0_2 = arith.constant 0 : index
    %c0_3 = arith.constant 0 : index
    %c0_4 = arith.constant 0 : index
    %4 = vector.load %arg2[%c0_2, %c0_3, %c0_4] : memref<2x8x8xf32, #tpu.memory_space<vmem>>, vector<2x8x8xf32>
    %c0_5 = arith.constant 0 : index
    %c0_6 = arith.constant 0 : index
    %5 = vector.load %arg3[%c0_5, %c0_6] : memref<8x8xf32, #tpu.memory_space<vmem>>, vector<8x8xf32>
    %c0_7 = arith.constant 0 : index
    %c0_8 = arith.constant 0 : index
    %6 = vector.load %arg4[%c0_7, %c0_8] : memref<8x8xf32, #tpu.memory_space<vmem>>, vector<8x8xf32>
    %7 = vector.extract_strided_slice %5 {offsets = [0, 0], sizes = [8, 4], strides = [1, 1]} : vector<8x8xf32> to vector<8x4xf32>
    %8 = vector.extract_strided_slice %5 {offsets = [0, 4], sizes = [8, 4], strides = [1, 1]} : vector<8x8xf32> to vector<8x4xf32>
    %9 = vector.extract_strided_slice %6 {offsets = [0, 0], sizes = [8, 4], strides = [1, 1]} : vector<8x8xf32> to vector<8x4xf32>
    %10 = vector.extract_strided_slice %6 {offsets = [0, 4], sizes = [8, 4], strides = [1, 1]} : vector<8x8xf32> to vector<8x4xf32>
    %c0_9 = arith.constant 0 : index
    %c0_10 = arith.constant 0 : index
    %11 = vector.load %arg22[%c0_9, %c0_10] : memref<16x32xf32, #tpu.memory_space<vmem>>, vector<16x32xf32>
    %c0_11 = arith.constant 0 : index
    %c0_12 = arith.constant 0 : index
    %c0_13 = arith.constant 0 : index
    %12 = vector.load %arg6[%c0_11, %c0_12, %c0_13] : memref<1x1x32xf32, #tpu.memory_space<vmem>>, vector<1x1x32xf32>
    %13 = vector.shape_cast %12 : vector<1x1x32xf32> to vector<1x32xf32>
    %c0_14 = arith.constant 0 : index
    %c0_15 = arith.constant 0 : index
    %c0_16 = arith.constant 0 : index
    %14 = vector.load %arg7[%c0_14, %c0_15, %c0_16] : memref<1x1x32xf32, #tpu.memory_space<vmem>>, vector<1x1x32xf32>
    %15 = vector.shape_cast %14 : vector<1x1x32xf32> to vector<1x32xf32>
    %cst = arith.constant dense<0.000000e+00> : vector<16xf32>
    %16 = vector.multi_reduction <add>, %11, %cst [1] : vector<16x32xf32> to vector<16xf32>
    %17 = vector.shape_cast %16 : vector<16xf32> to vector<16x1xf32>
    %cst_17 = arith.constant 3.200000e+01 : f32
    %18 = vector.broadcast %cst_17 : f32 to vector<16x1xf32>
    %19 = arith.divf %17, %18 : vector<16x1xf32>
    %20 = vector.broadcast %19 : vector<16x1xf32> to vector<16x32xf32>
    %21 = arith.subf %11, %20 : vector<16x32xf32>
    %22 = arith.mulf %21, %21 : vector<16x32xf32>
    %cst_18 = arith.constant dense<0.000000e+00> : vector<16xf32>
    %23 = vector.multi_reduction <add>, %22, %cst_18 [1] : vector<16x32xf32> to vector<16xf32>
    %24 = vector.shape_cast %23 : vector<16xf32> to vector<16x1xf32>
    %cst_19 = arith.constant 3.200000e+01 : f32
    %25 = vector.broadcast %cst_19 : f32 to vector<16x1xf32>
    %26 = arith.divf %24, %25 : vector<16x1xf32>
    %cst_20 = arith.constant 9.99999996E-13 : f32
    %27 = vector.broadcast %cst_20 : f32 to vector<16x1xf32>
    %28 = arith.addf %26, %27 : vector<16x1xf32>
    %29 = math.rsqrt %28 : vector<16x1xf32>
    %30 = vector.broadcast %29 : vector<16x1xf32> to vector<16x32xf32>
    %31 = arith.mulf %21, %30 : vector<16x32xf32>
    %32 = vector.broadcast %13 : vector<1x32xf32> to vector<16x32xf32>
    %33 = arith.mulf %32, %31 : vector<16x32xf32>
    %34 = vector.broadcast %15 : vector<1x32xf32> to vector<16x32xf32>
    %35 = arith.addf %33, %34 : vector<16x32xf32>
    %c0_21 = arith.constant 0 : index
    %c0_22 = arith.constant 0 : index
    %c0_23 = arith.constant 0 : index
    %36 = vector.load %arg8[%c0_21, %c0_22, %c0_23] : memref<1x32x96xf32, #tpu.memory_space<vmem>>, vector<1x32x96xf32>
    %37 = vector.shape_cast %36 : vector<1x32x96xf32> to vector<32x96xf32>
    %cst_24 = arith.constant dense<0.000000e+00> : vector<16x96xf32>
    %38 = tpu.matmul %35, %37, %cst_24 {dimension_numbers = #tpu.dot_dimension_numbers<[1], [0], [0], [1], [0, 0, 1, 1], [], []>} : vector<16x32xf32>, vector<32x96xf32>, vector<16x96xf32> -> vector<16x96xf32>
    %c0_25 = arith.constant 0 : index
    %c0_26 = arith.constant 0 : index
    %c0_27 = arith.constant 0 : index
    %39 = vector.load %arg9[%c0_25, %c0_26, %c0_27] : memref<1x1x96xf32, #tpu.memory_space<vmem>>, vector<1x1x96xf32>
    %40 = vector.shape_cast %39 : vector<1x1x96xf32> to vector<1x96xf32>
    %41 = vector.broadcast %40 : vector<1x96xf32> to vector<16x96xf32>
    %42 = arith.addf %38, %41 : vector<16x96xf32>
    %43 = vector.extract_strided_slice %3 {offsets = [0, 0], sizes = [1, 8], strides = [1, 1]} : vector<2x8xf32> to vector<1x8xf32>
    %44 = vector.extract_strided_slice %4 {offsets = [0, 0, 0], sizes = [1, 8, 8], strides = [1, 1, 1]} : vector<2x8x8xf32> to vector<1x8x8xf32>
    %45 = vector.shape_cast %44 : vector<1x8x8xf32> to vector<8x8xf32>
    %46 = vector.extract_strided_slice %42 {offsets = [0, 0], sizes = [8, 8], strides = [1, 1]} : vector<16x96xf32> to vector<8x8xf32>
    %47 = vector.extract_strided_slice %46 {offsets = [0, 0], sizes = [8, 4], strides = [1, 1]} : vector<8x8xf32> to vector<8x4xf32>
    %48 = vector.extract_strided_slice %46 {offsets = [0, 4], sizes = [8, 4], strides = [1, 1]} : vector<8x8xf32> to vector<8x4xf32>
    %49 = arith.mulf %47, %7 : vector<8x4xf32>
    %50 = arith.mulf %48, %9 : vector<8x4xf32>
    %51 = arith.subf %49, %50 : vector<8x4xf32>
    %52 = arith.mulf %48, %8 : vector<8x4xf32>
    %53 = arith.mulf %47, %10 : vector<8x4xf32>
    %54 = arith.addf %52, %53 : vector<8x4xf32>
    %55 = tpu.concatenate %51, %54 in 1 : vector<8x4xf32>, vector<8x4xf32> -> vector<8x8xf32>
    %cst_28 = arith.constant 0.353553385 : f32
    %56 = vector.broadcast %cst_28 : f32 to vector<8x8xf32>
    %57 = arith.mulf %55, %56 : vector<8x8xf32>
    %58 = vector.extract_strided_slice %42 {offsets = [0, 32], sizes = [8, 8], strides = [1, 1]} : vector<16x96xf32> to vector<8x8xf32>
    %59 = vector.extract_strided_slice %58 {offsets = [0, 0], sizes = [8, 4], strides = [1, 1]} : vector<8x8xf32> to vector<8x4xf32>
    %60 = vector.extract_strided_slice %58 {offsets = [0, 4], sizes = [8, 4], strides = [1, 1]} : vector<8x8xf32> to vector<8x4xf32>
    %61 = arith.mulf %59, %7 : vector<8x4xf32>
    %62 = arith.mulf %60, %9 : vector<8x4xf32>
    %63 = arith.subf %61, %62 : vector<8x4xf32>
    %64 = arith.mulf %60, %8 : vector<8x4xf32>
    %65 = arith.mulf %59, %10 : vector<8x4xf32>
    %66 = arith.addf %64, %65 : vector<8x4xf32>
    %67 = tpu.concatenate %63, %66 in 1 : vector<8x4xf32>, vector<8x4xf32> -> vector<8x8xf32>
    %68 = vector.extract_strided_slice %42 {offsets = [0, 64], sizes = [8, 8], strides = [1, 1]} : vector<16x96xf32> to vector<8x8xf32>
    %cst_29 = arith.constant dense<0.000000e+00> : vector<8x8xf32>
    %69 = tpu.matmul %57, %67, %cst_29 {dimension_numbers = #tpu.dot_dimension_numbers<[1], [1], [0], [0], [0, 0, 1, 0], [], []>} : vector<8x8xf32>, vector<8x8xf32>, vector<8x8xf32> -> vector<8x8xf32>
    %70 = vector.broadcast %43 : vector<1x8xf32> to vector<8x8xf32>
    %71 = arith.addf %69, %70 : vector<8x8xf32>
    %cst_30 = arith.constant dense<0xFF800000> : vector<8xf32>
    %72 = vector.multi_reduction <maximumf>, %71, %cst_30 [1] : vector<8x8xf32> to vector<8xf32>
    %73 = vector.shape_cast %72 : vector<8xf32> to vector<8x1xf32>
    %74 = vector.broadcast %73 : vector<8x1xf32> to vector<8x8xf32>
    %75 = arith.subf %71, %74 : vector<8x8xf32>
    %76 = math.exp %75 : vector<8x8xf32>
    %cst_31 = arith.constant dense<0.000000e+00> : vector<8xf32>
    %77 = vector.multi_reduction <add>, %76, %cst_31 [1] : vector<8x8xf32> to vector<8xf32>
    %78 = vector.shape_cast %77 : vector<8xf32> to vector<8x1xf32>
    %79 = tpu.reciprocal %78 {approx = true} : vector<8x1xf32> -> vector<8x1xf32>
    %80 = vector.broadcast %79 : vector<8x1xf32> to vector<8x8xf32>
    %81 = arith.mulf %76, %80 : vector<8x8xf32>
    %82 = arith.mulf %81, %45 : vector<8x8xf32>
    %c0_32 = arith.constant 0 : index
    %c0_33 = arith.constant 0 : index
    %c0_34 = arith.constant 0 : index
    %c0_35 = arith.constant 0 : index
    %c0_36 = arith.constant 0 : index
    %83 = vector.load %arg20[%c0_32, %c0_33, %c0_34, %c0_35, %c0_36] : memref<1x2x4x8x8xf32, #tpu.memory_space<vmem>>, vector<1x1x1x8x8xf32>
    %84 = vector.shape_cast %83 : vector<1x1x1x8x8xf32> to vector<8x8xf32>
    %85 = vector.shape_cast %82 : vector<8x8xf32> to vector<1x1x1x8x8xf32>
    tpu.vector_store %arg20[%c0_32, %c0_33, %c0_34, %c0_35, %c0_36], %85 {strides = array<i32>} : memref<1x2x4x8x8xf32, #tpu.memory_space<vmem>>, vector<1x1x1x8x8xf32>,
    %cst_37 = arith.constant dense<0.000000e+00> : vector<8x8xf32>
    %86 = tpu.matmul %81, %68, %cst_37 {dimension_numbers = #tpu.dot_dimension_numbers<[1], [0], [0], [1], [0, 0, 1, 1], [], []>} : vector<8x8xf32>, vector<8x8xf32>, vector<8x8xf32> -> vector<8x8xf32>
    %c0_38 = arith.constant 0 : index
    %c0_39 = arith.constant 0 : index
    %87 = vector.load %arg23[%c0_38, %c0_39] : memref<16x32xf32, #tpu.memory_space<vmem>>, vector<8x8xf32>
    tpu.vector_store %arg23[%c0_38, %c0_39], %86 {strides = array<i32>} : memref<16x32xf32, #tpu.memory_space<vmem>>, vector<8x8xf32>,
    %88 = vector.extract_strided_slice %42 {offsets = [0, 8], sizes = [8, 8], strides = [1, 1]} : vector<16x96xf32> to vector<8x8xf32>
    %89 = vector.extract_strided_slice %88 {offsets = [0, 0], sizes = [8, 4], strides = [1, 1]} : vector<8x8xf32> to vector<8x4xf32>
    %90 = vector.extract_strided_slice %88 {offsets = [0, 4], sizes = [8, 4], strides = [1, 1]} : vector<8x8xf32> to vector<8x4xf32>
    %91 = arith.mulf %89, %7 : vector<8x4xf32>
    %92 = arith.mulf %90, %9 : vector<8x4xf32>
    %93 = arith.subf %91, %92 : vector<8x4xf32>
    %94 = arith.mulf %90, %8 : vector<8x4xf32>
    %95 = arith.mulf %89, %10 : vector<8x4xf32>
    %96 = arith.addf %94, %95 : vector<8x4xf32>
    %97 = tpu.concatenate %93, %96 in 1 : vector<8x4xf32>, vector<8x4xf32> -> vector<8x8xf32>
    %cst_40 = arith.constant 0.353553385 : f32
    %98 = vector.broadcast %cst_40 : f32 to vector<8x8xf32>
    %99 = arith.mulf %97, %98 : vector<8x8xf32>
    %100 = vector.extract_strided_slice %42 {offsets = [0, 40], sizes = [8, 8], strides = [1, 1]} : vector<16x96xf32> to vector<8x8xf32>
    %101 = vector.extract_strided_slice %100 {offsets = [0, 0], sizes = [8, 4], strides = [1, 1]} : vector<8x8xf32> to vector<8x4xf32>
    %102 = vector.extract_strided_slice %100 {offsets = [0, 4], sizes = [8, 4], strides = [1, 1]} : vector<8x8xf32> to vector<8x4xf32>
    %103 = arith.mulf %101, %7 : vector<8x4xf32>
    %104 = arith.mulf %102, %9 : vector<8x4xf32>
    %105 = arith.subf %103, %104 : vector<8x4xf32>
    %106 = arith.mulf %102, %8 : vector<8x4xf32>
    %107 = arith.mulf %101, %10 : vector<8x4xf32>
    %108 = arith.addf %106, %107 : vector<8x4xf32>
    %109 = tpu.concatenate %105, %108 in 1 : vector<8x4xf32>, vector<8x4xf32> -> vector<8x8xf32>
    %110 = vector.extract_strided_slice %42 {offsets = [0, 72], sizes = [8, 8], strides = [1, 1]} : vector<16x96xf32> to vector<8x8xf32>
    %cst_41 = arith.constant dense<0.000000e+00> : vector<8x8xf32>
    %111 = tpu.matmul %99, %109, %cst_41 {dimension_numbers = #tpu.dot_dimension_numbers<[1], [1], [0], [0], [0, 0, 1, 0], [], []>} : vector<8x8xf32>, vector<8x8xf32>, vector<8x8xf32> -> vector<8x8xf32>
    %112 = vector.broadcast %43 : vector<1x8xf32> to vector<8x8xf32>
    %113 = arith.addf %111, %112 : vector<8x8xf32>
    %cst_42 = arith.constant dense<0xFF800000> : vector<8xf32>
    %114 = vector.multi_reduction <maximumf>, %113, %cst_42 [1] : vector<8x8xf32> to vector<8xf32>
    %115 = vector.shape_cast %114 : vector<8xf32> to vector<8x1xf32>
    %116 = vector.broadcast %115 : vector<8x1xf32> to vector<8x8xf32>
    %117 = arith.subf %113, %116 : vector<8x8xf32>
    %118 = math.exp %117 : vector<8x8xf32>
    %cst_43 = arith.constant dense<0.000000e+00> : vector<8xf32>
    %119 = vector.multi_reduction <add>, %118, %cst_43 [1] : vector<8x8xf32> to vector<8xf32>
    %120 = vector.shape_cast %119 : vector<8xf32> to vector<8x1xf32>
    %121 = tpu.reciprocal %120 {approx = true} : vector<8x1xf32> -> vector<8x1xf32>
    %122 = vector.broadcast %121 : vector<8x1xf32> to vector<8x8xf32>
    %123 = arith.mulf %118, %122 : vector<8x8xf32>
    %124 = arith.mulf %123, %45 : vector<8x8xf32>
    %c0_44 = arith.constant 0 : index
    %c0_45 = arith.constant 0 : index
    %c1 = arith.constant 1 : index
    %c0_46 = arith.constant 0 : index
    %c0_47 = arith.constant 0 : index
    %125 = vector.load %arg20[%c0_44, %c0_45, %c1, %c0_46, %c0_47] : memref<1x2x4x8x8xf32, #tpu.memory_space<vmem>>, vector<1x1x1x8x8xf32>
    %126 = vector.shape_cast %125 : vector<1x1x1x8x8xf32> to vector<8x8xf32>
    %127 = vector.shape_cast %124 : vector<8x8xf32> to vector<1x1x1x8x8xf32>
    tpu.vector_store %arg20[%c0_44, %c0_45, %c1, %c0_46, %c0_47], %127 {strides = array<i32>} : memref<1x2x4x8x8xf32, #tpu.memory_space<vmem>>, vector<1x1x1x8x8xf32>,
    %cst_48 = arith.constant dense<0.000000e+00> : vector<8x8xf32>
    %128 = tpu.matmul %123, %110, %cst_48 {dimension_numbers = #tpu.dot_dimension_numbers<[1], [0], [0], [1], [0, 0, 1, 1], [], []>} : vector<8x8xf32>, vector<8x8xf32>, vector<8x8xf32> -> vector<8x8xf32>
    %c0_49 = arith.constant 0 : index
    %c8 = arith.constant 8 : index
    %129 = vector.load %arg23[%c0_49, %c8] : memref<16x32xf32, #tpu.memory_space<vmem>>, vector<8x8xf32>
    tpu.vector_store %arg23[%c0_49, %c8], %128 {strides = array<i32>} : memref<16x32xf32, #tpu.memory_space<vmem>>, vector<8x8xf32>,
    %130 = vector.extract_strided_slice %42 {offsets = [0, 16], sizes = [8, 8], strides = [1, 1]} : vector<16x96xf32> to vector<8x8xf32>
    %131 = vector.extract_strided_slice %130 {offsets = [0, 0], sizes = [8, 4], strides = [1, 1]} : vector<8x8xf32> to vector<8x4xf32>
    %132 = vector.extract_strided_slice %130 {offsets = [0, 4], sizes = [8, 4], strides = [1, 1]} : vector<8x8xf32> to vector<8x4xf32>
    %133 = arith.mulf %131, %7 : vector<8x4xf32>
    %134 = arith.mulf %132, %9 : vector<8x4xf32>
    %135 = arith.subf %133, %134 : vector<8x4xf32>
    %136 = arith.mulf %132, %8 : vector<8x4xf32>
    %137 = arith.mulf %131, %10 : vector<8x4xf32>
    %138 = arith.addf %136, %137 : vector<8x4xf32>
    %139 = tpu.concatenate %135, %138 in 1 : vector<8x4xf32>, vector<8x4xf32> -> vector<8x8xf32>
    %cst_50 = arith.constant 0.353553385 : f32
    %140 = vector.broadcast %cst_50 : f32 to vector<8x8xf32>
    %141 = arith.mulf %139, %140 : vector<8x8xf32>
    %142 = vector.extract_strided_slice %42 {offsets = [0, 48], sizes = [8, 8], strides = [1, 1]} : vector<16x96xf32> to vector<8x8xf32>
    %143 = vector.extract_strided_slice %142 {offsets = [0, 0], sizes = [8, 4], strides = [1, 1]} : vector<8x8xf32> to vector<8x4xf32>
    %144 = vector.extract_strided_slice %142 {offsets = [0, 4], sizes = [8, 4], strides = [1, 1]} : vector<8x8xf32> to vector<8x4xf32>
    %145 = arith.mulf %143, %7 : vector<8x4xf32>
    %146 = arith.mulf %144, %9 : vector<8x4xf32>
    %147 = arith.subf %145, %146 : vector<8x4xf32>
    %148 = arith.mulf %144, %8 : vector<8x4xf32>
    %149 = arith.mulf %143, %10 : vector<8x4xf32>
    %150 = arith.addf %148, %149 : vector<8x4xf32>
    %151 = tpu.concatenate %147, %150 in 1 : vector<8x4xf32>, vector<8x4xf32> -> vector<8x8xf32>
    %152 = vector.extract_strided_slice %42 {offsets = [0, 80], sizes = [8, 8], strides = [1, 1]} : vector<16x96xf32> to vector<8x8xf32>
    %cst_51 = arith.constant dense<0.000000e+00> : vector<8x8xf32>
    %153 = tpu.matmul %141, %151, %cst_51 {dimension_numbers = #tpu.dot_dimension_numbers<[1], [1], [0], [0], [0, 0, 1, 0], [], []>} : vector<8x8xf32>, vector<8x8xf32>, vector<8x8xf32> -> vector<8x8xf32>
    %154 = vector.broadcast %43 : vector<1x8xf32> to vector<8x8xf32>
    %155 = arith.addf %153, %154 : vector<8x8xf32>
    %cst_52 = arith.constant dense<0xFF800000> : vector<8xf32>
    %156 = vector.multi_reduction <maximumf>, %155, %cst_52 [1] : vector<8x8xf32> to vector<8xf32>
    %157 = vector.shape_cast %156 : vector<8xf32> to vector<8x1xf32>
    %158 = vector.broadcast %157 : vector<8x1xf32> to vector<8x8xf32>
    %159 = arith.subf %155, %158 : vector<8x8xf32>
    %160 = math.exp %159 : vector<8x8xf32>
    %cst_53 = arith.constant dense<0.000000e+00> : vector<8xf32>
    %161 = vector.multi_reduction <add>, %160, %cst_53 [1] : vector<8x8xf32> to vector<8xf32>
    %162 = vector.shape_cast %161 : vector<8xf32> to vector<8x1xf32>
    %163 = tpu.reciprocal %162 {approx = true} : vector<8x1xf32> -> vector<8x1xf32>
    %164 = vector.broadcast %163 : vector<8x1xf32> to vector<8x8xf32>
    %165 = arith.mulf %160, %164 : vector<8x8xf32>
    %166 = arith.mulf %165, %45 : vector<8x8xf32>
    %c0_54 = arith.constant 0 : index
    %c0_55 = arith.constant 0 : index
    %c2 = arith.constant 2 : index
    %c0_56 = arith.constant 0 : index
    %c0_57 = arith.constant 0 : index
    %167 = vector.load %arg20[%c0_54, %c0_55, %c2, %c0_56, %c0_57] : memref<1x2x4x8x8xf32, #tpu.memory_space<vmem>>, vector<1x1x1x8x8xf32>
    %168 = vector.shape_cast %167 : vector<1x1x1x8x8xf32> to vector<8x8xf32>
    %169 = vector.shape_cast %166 : vector<8x8xf32> to vector<1x1x1x8x8xf32>
    tpu.vector_store %arg20[%c0_54, %c0_55, %c2, %c0_56, %c0_57], %169 {strides = array<i32>} : memref<1x2x4x8x8xf32, #tpu.memory_space<vmem>>, vector<1x1x1x8x8xf32>,
    %cst_58 = arith.constant dense<0.000000e+00> : vector<8x8xf32>
    %170 = tpu.matmul %165, %152, %cst_58 {dimension_numbers = #tpu.dot_dimension_numbers<[1], [0], [0], [1], [0, 0, 1, 1], [], []>} : vector<8x8xf32>, vector<8x8xf32>, vector<8x8xf32> -> vector<8x8xf32>
    %c0_59 = arith.constant 0 : index
    %c16 = arith.constant 16 : index
    %171 = vector.load %arg23[%c0_59, %c16] : memref<16x32xf32, #tpu.memory_space<vmem>>, vector<8x8xf32>
    tpu.vector_store %arg23[%c0_59, %c16], %170 {strides = array<i32>} : memref<16x32xf32, #tpu.memory_space<vmem>>, vector<8x8xf32>,
    %172 = vector.extract_strided_slice %42 {offsets = [0, 24], sizes = [8, 8], strides = [1, 1]} : vector<16x96xf32> to vector<8x8xf32>
    %173 = vector.extract_strided_slice %172 {offsets = [0, 0], sizes = [8, 4], strides = [1, 1]} : vector<8x8xf32> to vector<8x4xf32>
    %174 = vector.extract_strided_slice %172 {offsets = [0, 4], sizes = [8, 4], strides = [1, 1]} : vector<8x8xf32> to vector<8x4xf32>
    %175 = arith.mulf %173, %7 : vector<8x4xf32>
    %176 = arith.mulf %174, %9 : vector<8x4xf32>
    %177 = arith.subf %175, %176 : vector<8x4xf32>
    %178 = arith.mulf %174, %8 : vector<8x4xf32>
    %179 = arith.mulf %173, %10 : vector<8x4xf32>
    %180 = arith.addf %178, %179 : vector<8x4xf32>
    %181 = tpu.concatenate %177, %180 in 1 : vector<8x4xf32>, vector<8x4xf32> -> vector<8x8xf32>
    %cst_60 = arith.constant 0.353553385 : f32
    %182 = vector.broadcast %cst_60 : f32 to vector<8x8xf32>
    %183 = arith.mulf %181, %182 : vector<8x8xf32>
    %184 = vector.extract_strided_slice %42 {offsets = [0, 56], sizes = [8, 8], strides = [1, 1]} : vector<16x96xf32> to vector<8x8xf32>
    %185 = vector.extract_strided_slice %184 {offsets = [0, 0], sizes = [8, 4], strides = [1, 1]} : vector<8x8xf32> to vector<8x4xf32>
    %186 = vector.extract_strided_slice %184 {offsets = [0, 4], sizes = [8, 4], strides = [1, 1]} : vector<8x8xf32> to vector<8x4xf32>
    %187 = arith.mulf %185, %7 : vector<8x4xf32>
    %188 = arith.mulf %186, %9 : vector<8x4xf32>
    %189 = arith.subf %187, %188 : vector<8x4xf32>
    %190 = arith.mulf %186, %8 : vector<8x4xf32>
    %191 = arith.mulf %185, %10 : vector<8x4xf32>
    %192 = arith.addf %190, %191 : vector<8x4xf32>
    %193 = tpu.concatenate %189, %192 in 1 : vector<8x4xf32>, vector<8x4xf32> -> vector<8x8xf32>
    %194 = vector.extract_strided_slice %42 {offsets = [0, 88], sizes = [8, 8], strides = [1, 1]} : vector<16x96xf32> to vector<8x8xf32>
    %cst_61 = arith.constant dense<0.000000e+00> : vector<8x8xf32>
    %195 = tpu.matmul %183, %193, %cst_61 {dimension_numbers = #tpu.dot_dimension_numbers<[1], [1], [0], [0], [0, 0, 1, 0], [], []>} : vector<8x8xf32>, vector<8x8xf32>, vector<8x8xf32> -> vector<8x8xf32>
    %196 = vector.broadcast %43 : vector<1x8xf32> to vector<8x8xf32>
    %197 = arith.addf %195, %196 : vector<8x8xf32>
    %cst_62 = arith.constant dense<0xFF800000> : vector<8xf32>
    %198 = vector.multi_reduction <maximumf>, %197, %cst_62 [1] : vector<8x8xf32> to vector<8xf32>
    %199 = vector.shape_cast %198 : vector<8xf32> to vector<8x1xf32>
    %200 = vector.broadcast %199 : vector<8x1xf32> to vector<8x8xf32>
    %201 = arith.subf %197, %200 : vector<8x8xf32>
    %202 = math.exp %201 : vector<8x8xf32>
    %cst_63 = arith.constant dense<0.000000e+00> : vector<8xf32>
    %203 = vector.multi_reduction <add>, %202, %cst_63 [1] : vector<8x8xf32> to vector<8xf32>
    %204 = vector.shape_cast %203 : vector<8xf32> to vector<8x1xf32>
    %205 = tpu.reciprocal %204 {approx = true} : vector<8x1xf32> -> vector<8x1xf32>
    %206 = vector.broadcast %205 : vector<8x1xf32> to vector<8x8xf32>
    %207 = arith.mulf %202, %206 : vector<8x8xf32>
    %208 = arith.mulf %207, %45 : vector<8x8xf32>
    %c0_64 = arith.constant 0 : index
    %c0_65 = arith.constant 0 : index
    %c3 = arith.constant 3 : index
    %c0_66 = arith.constant 0 : index
    %c0_67 = arith.constant 0 : index
    %209 = vector.load %arg20[%c0_64, %c0_65, %c3, %c0_66, %c0_67] : memref<1x2x4x8x8xf32, #tpu.memory_space<vmem>>, vector<1x1x1x8x8xf32>
    %210 = vector.shape_cast %209 : vector<1x1x1x8x8xf32> to vector<8x8xf32>
    %211 = vector.shape_cast %208 : vector<8x8xf32> to vector<1x1x1x8x8xf32>
    tpu.vector_store %arg20[%c0_64, %c0_65, %c3, %c0_66, %c0_67], %211 {strides = array<i32>} : memref<1x2x4x8x8xf32, #tpu.memory_space<vmem>>, vector<1x1x1x8x8xf32>,
    %cst_68 = arith.constant dense<0.000000e+00> : vector<8x8xf32>
    %212 = tpu.matmul %207, %194, %cst_68 {dimension_numbers = #tpu.dot_dimension_numbers<[1], [0], [0], [1], [0, 0, 1, 1], [], []>} : vector<8x8xf32>, vector<8x8xf32>, vector<8x8xf32> -> vector<8x8xf32>
    %c0_69 = arith.constant 0 : index
    %c24 = arith.constant 24 : index
    %213 = vector.load %arg23[%c0_69, %c24] : memref<16x32xf32, #tpu.memory_space<vmem>>, vector<8x8xf32>
    tpu.vector_store %arg23[%c0_69, %c24], %212 {strides = array<i32>} : memref<16x32xf32, #tpu.memory_space<vmem>>, vector<8x8xf32>,
    %214 = vector.extract_strided_slice %3 {offsets = [1, 0], sizes = [1, 8], strides = [1, 1]} : vector<2x8xf32> to vector<1x8xf32>
    %215 = vector.extract_strided_slice %4 {offsets = [1, 0, 0], sizes = [1, 8, 8], strides = [1, 1, 1]} : vector<2x8x8xf32> to vector<1x8x8xf32>
    %216 = vector.shape_cast %215 : vector<1x8x8xf32> to vector<8x8xf32>
    %217 = vector.extract_strided_slice %42 {offsets = [8, 0], sizes = [8, 8], strides = [1, 1]} : vector<16x96xf32> to vector<8x8xf32>
    %218 = vector.extract_strided_slice %217 {offsets = [0, 0], sizes = [8, 4], strides = [1, 1]} : vector<8x8xf32> to vector<8x4xf32>
    %219 = vector.extract_strided_slice %217 {offsets = [0, 4], sizes = [8, 4], strides = [1, 1]} : vector<8x8xf32> to vector<8x4xf32>
    %220 = arith.mulf %218, %7 : vector<8x4xf32>
    %221 = arith.mulf %219, %9 : vector<8x4xf32>
    %222 = arith.subf %220, %221 : vector<8x4xf32>
    %223 = arith.mulf %219, %8 : vector<8x4xf32>
    %224 = arith.mulf %218, %10 : vector<8x4xf32>
    %225 = arith.addf %223, %224 : vector<8x4xf32>
    %226 = tpu.concatenate %222, %225 in 1 : vector<8x4xf32>, vector<8x4xf32> -> vector<8x8xf32>
    %cst_70 = arith.constant 0.353553385 : f32
    %227 = vector.broadcast %cst_70 : f32 to vector<8x8xf32>
    %228 = arith.mulf %226, %227 : vector<8x8xf32>
    %229 = vector.extract_strided_slice %42 {offsets = [8, 32], sizes = [8, 8], strides = [1, 1]} : vector<16x96xf32> to vector<8x8xf32>
    %230 = vector.extract_strided_slice %229 {offsets = [0, 0], sizes = [8, 4], strides = [1, 1]} : vector<8x8xf32> to vector<8x4xf32>
    %231 = vector.extract_strided_slice %229 {offsets = [0, 4], sizes = [8, 4], strides = [1, 1]} : vector<8x8xf32> to vector<8x4xf32>
    %232 = arith.mulf %230, %7 : vector<8x4xf32>
    %233 = arith.mulf %231, %9 : vector<8x4xf32>
    %234 = arith.subf %232, %233 : vector<8x4xf32>
    %235 = arith.mulf %231, %8 : vector<8x4xf32>
    %236 = arith.mulf %230, %10 : vector<8x4xf32>
    %237 = arith.addf %235, %236 : vector<8x4xf32>
    %238 = tpu.concatenate %234, %237 in 1 : vector<8x4xf32>, vector<8x4xf32> -> vector<8x8xf32>
    %239 = vector.extract_strided_slice %42 {offsets = [8, 64], sizes = [8, 8], strides = [1, 1]} : vector<16x96xf32> to vector<8x8xf32>
    %cst_71 = arith.constant dense<0.000000e+00> : vector<8x8xf32>
    %240 = tpu.matmul %228, %238, %cst_71 {dimension_numbers = #tpu.dot_dimension_numbers<[1], [1], [0], [0], [0, 0, 1, 0], [], []>} : vector<8x8xf32>, vector<8x8xf32>, vector<8x8xf32> -> vector<8x8xf32>
    %241 = vector.broadcast %214 : vector<1x8xf32> to vector<8x8xf32>
    %242 = arith.addf %240, %241 : vector<8x8xf32>
    %cst_72 = arith.constant dense<0xFF800000> : vector<8xf32>
    %243 = vector.multi_reduction <maximumf>, %242, %cst_72 [1] : vector<8x8xf32> to vector<8xf32>
    %244 = vector.shape_cast %243 : vector<8xf32> to vector<8x1xf32>
    %245 = vector.broadcast %244 : vector<8x1xf32> to vector<8x8xf32>
    %246 = arith.subf %242, %245 : vector<8x8xf32>
    %247 = math.exp %246 : vector<8x8xf32>
    %cst_73 = arith.constant dense<0.000000e+00> : vector<8xf32>
    %248 = vector.multi_reduction <add>, %247, %cst_73 [1] : vector<8x8xf32> to vector<8xf32>
    %249 = vector.shape_cast %248 : vector<8xf32> to vector<8x1xf32>
    %250 = tpu.reciprocal %249 {approx = true} : vector<8x1xf32> -> vector<8x1xf32>
    %251 = vector.broadcast %250 : vector<8x1xf32> to vector<8x8xf32>
    %252 = arith.mulf %247, %251 : vector<8x8xf32>
    %253 = arith.mulf %252, %216 : vector<8x8xf32>
    %c0_74 = arith.constant 0 : index
    %c1_75 = arith.constant 1 : index
    %c0_76 = arith.constant 0 : index
    %c0_77 = arith.constant 0 : index
    %c0_78 = arith.constant 0 : index
    %254 = vector.load %arg20[%c0_74, %c1_75, %c0_76, %c0_77, %c0_78] : memref<1x2x4x8x8xf32, #tpu.memory_space<vmem>>, vector<1x1x1x8x8xf32>
    %255 = vector.shape_cast %254 : vector<1x1x1x8x8xf32> to vector<8x8xf32>
    %256 = vector.shape_cast %253 : vector<8x8xf32> to vector<1x1x1x8x8xf32>
    tpu.vector_store %arg20[%c0_74, %c1_75, %c0_76, %c0_77, %c0_78], %256 {strides = array<i32>} : memref<1x2x4x8x8xf32, #tpu.memory_space<vmem>>, vector<1x1x1x8x8xf32>,
    %cst_79 = arith.constant dense<0.000000e+00> : vector<8x8xf32>
    %257 = tpu.matmul %252, %239, %cst_79 {dimension_numbers = #tpu.dot_dimension_numbers<[1], [0], [0], [1], [0, 0, 1, 1], [], []>} : vector<8x8xf32>, vector<8x8xf32>, vector<8x8xf32> -> vector<8x8xf32>
    %c8_80 = arith.constant 8 : index
    %c0_81 = arith.constant 0 : index
    %258 = vector.load %arg23[%c8_80, %c0_81] : memref<16x32xf32, #tpu.memory_space<vmem>>, vector<8x8xf32>
    tpu.vector_store %arg23[%c8_80, %c0_81], %257 {strides = array<i32>} : memref<16x32xf32, #tpu.memory_space<vmem>>, vector<8x8xf32>,
    %259 = vector.extract_strided_slice %42 {offsets = [8, 8], sizes = [8, 8], strides = [1, 1]} : vector<16x96xf32> to vector<8x8xf32>
    %260 = vector.extract_strided_slice %259 {offsets = [0, 0], sizes = [8, 4], strides = [1, 1]} : vector<8x8xf32> to vector<8x4xf32>
    %261 = vector.extract_strided_slice %259 {offsets = [0, 4], sizes = [8, 4], strides = [1, 1]} : vector<8x8xf32> to vector<8x4xf32>
    %262 = arith.mulf %260, %7 : vector<8x4xf32>
    %263 = arith.mulf %261, %9 : vector<8x4xf32>
    %264 = arith.subf %262, %263 : vector<8x4xf32>
    %265 = arith.mulf %261, %8 : vector<8x4xf32>
    %266 = arith.mulf %260, %10 : vector<8x4xf32>
    %267 = arith.addf %265, %266 : vector<8x4xf32>
    %268 = tpu.concatenate %264, %267 in 1 : vector<8x4xf32>, vector<8x4xf32> -> vector<8x8xf32>
    %cst_82 = arith.constant 0.353553385 : f32
    %269 = vector.broadcast %cst_82 : f32 to vector<8x8xf32>
    %270 = arith.mulf %268, %269 : vector<8x8xf32>
    %271 = vector.extract_strided_slice %42 {offsets = [8, 40], sizes = [8, 8], strides = [1, 1]} : vector<16x96xf32> to vector<8x8xf32>
    %272 = vector.extract_strided_slice %271 {offsets = [0, 0], sizes = [8, 4], strides = [1, 1]} : vector<8x8xf32> to vector<8x4xf32>
    %273 = vector.extract_strided_slice %271 {offsets = [0, 4], sizes = [8, 4], strides = [1, 1]} : vector<8x8xf32> to vector<8x4xf32>
    %274 = arith.mulf %272, %7 : vector<8x4xf32>
    %275 = arith.mulf %273, %9 : vector<8x4xf32>
    %276 = arith.subf %274, %275 : vector<8x4xf32>
    %277 = arith.mulf %273, %8 : vector<8x4xf32>
    %278 = arith.mulf %272, %10 : vector<8x4xf32>
    %279 = arith.addf %277, %278 : vector<8x4xf32>
    %280 = tpu.concatenate %276, %279 in 1 : vector<8x4xf32>, vector<8x4xf32> -> vector<8x8xf32>
    %281 = vector.extract_strided_slice %42 {offsets = [8, 72], sizes = [8, 8], strides = [1, 1]} : vector<16x96xf32> to vector<8x8xf32>
    %cst_83 = arith.constant dense<0.000000e+00> : vector<8x8xf32>
    %282 = tpu.matmul %270, %280, %cst_83 {dimension_numbers = #tpu.dot_dimension_numbers<[1], [1], [0], [0], [0, 0, 1, 0], [], []>} : vector<8x8xf32>, vector<8x8xf32>, vector<8x8xf32> -> vector<8x8xf32>
    %283 = vector.broadcast %214 : vector<1x8xf32> to vector<8x8xf32>
    %284 = arith.addf %282, %283 : vector<8x8xf32>
    %cst_84 = arith.constant dense<0xFF800000> : vector<8xf32>
    %285 = vector.multi_reduction <maximumf>, %284, %cst_84 [1] : vector<8x8xf32> to vector<8xf32>
    %286 = vector.shape_cast %285 : vector<8xf32> to vector<8x1xf32>
    %287 = vector.broadcast %286 : vector<8x1xf32> to vector<8x8xf32>
    %288 = arith.subf %284, %287 : vector<8x8xf32>
    %289 = math.exp %288 : vector<8x8xf32>
    %cst_85 = arith.constant dense<0.000000e+00> : vector<8xf32>
    %290 = vector.multi_reduction <add>, %289, %cst_85 [1] : vector<8x8xf32> to vector<8xf32>
    %291 = vector.shape_cast %290 : vector<8xf32> to vector<8x1xf32>
    %292 = tpu.reciprocal %291 {approx = true} : vector<8x1xf32> -> vector<8x1xf32>
    %293 = vector.broadcast %292 : vector<8x1xf32> to vector<8x8xf32>
    %294 = arith.mulf %289, %293 : vector<8x8xf32>
    %295 = arith.mulf %294, %216 : vector<8x8xf32>
    %c0_86 = arith.constant 0 : index
    %c1_87 = arith.constant 1 : index
    %c1_88 = arith.constant 1 : index
    %c0_89 = arith.constant 0 : index
    %c0_90 = arith.constant 0 : index
    %296 = vector.load %arg20[%c0_86, %c1_87, %c1_88, %c0_89, %c0_90] : memref<1x2x4x8x8xf32, #tpu.memory_space<vmem>>, vector<1x1x1x8x8xf32>
    %297 = vector.shape_cast %296 : vector<1x1x1x8x8xf32> to vector<8x8xf32>
    %298 = vector.shape_cast %295 : vector<8x8xf32> to vector<1x1x1x8x8xf32>
    tpu.vector_store %arg20[%c0_86, %c1_87, %c1_88, %c0_89, %c0_90], %298 {strides = array<i32>} : memref<1x2x4x8x8xf32, #tpu.memory_space<vmem>>, vector<1x1x1x8x8xf32>,
    %cst_91 = arith.constant dense<0.000000e+00> : vector<8x8xf32>
    %299 = tpu.matmul %294, %281, %cst_91 {dimension_numbers = #tpu.dot_dimension_numbers<[1], [0], [0], [1], [0, 0, 1, 1], [], []>} : vector<8x8xf32>, vector<8x8xf32>, vector<8x8xf32> -> vector<8x8xf32>
    %c8_92 = arith.constant 8 : index
    %c8_93 = arith.constant 8 : index
    %300 = vector.load %arg23[%c8_92, %c8_93] : memref<16x32xf32, #tpu.memory_space<vmem>>, vector<8x8xf32>
    tpu.vector_store %arg23[%c8_92, %c8_93], %299 {strides = array<i32>} : memref<16x32xf32, #tpu.memory_space<vmem>>, vector<8x8xf32>,
    %301 = vector.extract_strided_slice %42 {offsets = [8, 16], sizes = [8, 8], strides = [1, 1]} : vector<16x96xf32> to vector<8x8xf32>
    %302 = vector.extract_strided_slice %301 {offsets = [0, 0], sizes = [8, 4], strides = [1, 1]} : vector<8x8xf32> to vector<8x4xf32>
    %303 = vector.extract_strided_slice %301 {offsets = [0, 4], sizes = [8, 4], strides = [1, 1]} : vector<8x8xf32> to vector<8x4xf32>
    %304 = arith.mulf %302, %7 : vector<8x4xf32>
    %305 = arith.mulf %303, %9 : vector<8x4xf32>
    %306 = arith.subf %304, %305 : vector<8x4xf32>
    %307 = arith.mulf %303, %8 : vector<8x4xf32>
    %308 = arith.mulf %302, %10 : vector<8x4xf32>
    %309 = arith.addf %307, %308 : vector<8x4xf32>
    %310 = tpu.concatenate %306, %309 in 1 : vector<8x4xf32>, vector<8x4xf32> -> vector<8x8xf32>
    %cst_94 = arith.constant 0.353553385 : f32
    %311 = vector.broadcast %cst_94 : f32 to vector<8x8xf32>
    %312 = arith.mulf %310, %311 : vector<8x8xf32>
    %313 = vector.extract_strided_slice %42 {offsets = [8, 48], sizes = [8, 8], strides = [1, 1]} : vector<16x96xf32> to vector<8x8xf32>
    %314 = vector.extract_strided_slice %313 {offsets = [0, 0], sizes = [8, 4], strides = [1, 1]} : vector<8x8xf32> to vector<8x4xf32>
    %315 = vector.extract_strided_slice %313 {offsets = [0, 4], sizes = [8, 4], strides = [1, 1]} : vector<8x8xf32> to vector<8x4xf32>
    %316 = arith.mulf %314, %7 : vector<8x4xf32>
    %317 = arith.mulf %315, %9 : vector<8x4xf32>
    %318 = arith.subf %316, %317 : vector<8x4xf32>
    %319 = arith.mulf %315, %8 : vector<8x4xf32>
    %320 = arith.mulf %314, %10 : vector<8x4xf32>
    %321 = arith.addf %319, %320 : vector<8x4xf32>
    %322 = tpu.concatenate %318, %321 in 1 : vector<8x4xf32>, vector<8x4xf32> -> vector<8x8xf32>
    %323 = vector.extract_strided_slice %42 {offsets = [8, 80], sizes = [8, 8], strides = [1, 1]} : vector<16x96xf32> to vector<8x8xf32>
    %cst_95 = arith.constant dense<0.000000e+00> : vector<8x8xf32>
    %324 = tpu.matmul %312, %322, %cst_95 {dimension_numbers = #tpu.dot_dimension_numbers<[1], [1], [0], [0], [0, 0, 1, 0], [], []>} : vector<8x8xf32>, vector<8x8xf32>, vector<8x8xf32> -> vector<8x8xf32>
    %325 = vector.broadcast %214 : vector<1x8xf32> to vector<8x8xf32>
    %326 = arith.addf %324, %325 : vector<8x8xf32>
    %cst_96 = arith.constant dense<0xFF800000> : vector<8xf32>
    %327 = vector.multi_reduction <maximumf>, %326, %cst_96 [1] : vector<8x8xf32> to vector<8xf32>
    %328 = vector.shape_cast %327 : vector<8xf32> to vector<8x1xf32>
    %329 = vector.broadcast %328 : vector<8x1xf32> to vector<8x8xf32>
    %330 = arith.subf %326, %329 : vector<8x8xf32>
    %331 = math.exp %330 : vector<8x8xf32>
    %cst_97 = arith.constant dense<0.000000e+00> : vector<8xf32>
    %332 = vector.multi_reduction <add>, %331, %cst_97 [1] : vector<8x8xf32> to vector<8xf32>
    %333 = vector.shape_cast %332 : vector<8xf32> to vector<8x1xf32>
    %334 = tpu.reciprocal %333 {approx = true} : vector<8x1xf32> -> vector<8x1xf32>
    %335 = vector.broadcast %334 : vector<8x1xf32> to vector<8x8xf32>
    %336 = arith.mulf %331, %335 : vector<8x8xf32>
    %337 = arith.mulf %336, %216 : vector<8x8xf32>
    %c0_98 = arith.constant 0 : index
    %c1_99 = arith.constant 1 : index
    %c2_100 = arith.constant 2 : index
    %c0_101 = arith.constant 0 : index
    %c0_102 = arith.constant 0 : index
    %338 = vector.load %arg20[%c0_98, %c1_99, %c2_100, %c0_101, %c0_102] : memref<1x2x4x8x8xf32, #tpu.memory_space<vmem>>, vector<1x1x1x8x8xf32>
    %339 = vector.shape_cast %338 : vector<1x1x1x8x8xf32> to vector<8x8xf32>
    %340 = vector.shape_cast %337 : vector<8x8xf32> to vector<1x1x1x8x8xf32>
    tpu.vector_store %arg20[%c0_98, %c1_99, %c2_100, %c0_101, %c0_102], %340 {strides = array<i32>} : memref<1x2x4x8x8xf32, #tpu.memory_space<vmem>>, vector<1x1x1x8x8xf32>,
    %cst_103 = arith.constant dense<0.000000e+00> : vector<8x8xf32>
    %341 = tpu.matmul %336, %323, %cst_103 {dimension_numbers = #tpu.dot_dimension_numbers<[1], [0], [0], [1], [0, 0, 1, 1], [], []>} : vector<8x8xf32>, vector<8x8xf32>, vector<8x8xf32> -> vector<8x8xf32>
    %c8_104 = arith.constant 8 : index
    %c16_105 = arith.constant 16 : index
    %342 = vector.load %arg23[%c8_104, %c16_105] : memref<16x32xf32, #tpu.memory_space<vmem>>, vector<8x8xf32>
    tpu.vector_store %arg23[%c8_104, %c16_105], %341 {strides = array<i32>} : memref<16x32xf32, #tpu.memory_space<vmem>>, vector<8x8xf32>,
    %343 = vector.extract_strided_slice %42 {offsets = [8, 24], sizes = [8, 8], strides = [1, 1]} : vector<16x96xf32> to vector<8x8xf32>
    %344 = vector.extract_strided_slice %343 {offsets = [0, 0], sizes = [8, 4], strides = [1, 1]} : vector<8x8xf32> to vector<8x4xf32>
    %345 = vector.extract_strided_slice %343 {offsets = [0, 4], sizes = [8, 4], strides = [1, 1]} : vector<8x8xf32> to vector<8x4xf32>
    %346 = arith.mulf %344, %7 : vector<8x4xf32>
    %347 = arith.mulf %345, %9 : vector<8x4xf32>
    %348 = arith.subf %346, %347 : vector<8x4xf32>
    %349 = arith.mulf %345, %8 : vector<8x4xf32>
    %350 = arith.mulf %344, %10 : vector<8x4xf32>
    %351 = arith.addf %349, %350 : vector<8x4xf32>
    %352 = tpu.concatenate %348, %351 in 1 : vector<8x4xf32>, vector<8x4xf32> -> vector<8x8xf32>
    %cst_106 = arith.constant 0.353553385 : f32
    %353 = vector.broadcast %cst_106 : f32 to vector<8x8xf32>
    %354 = arith.mulf %352, %353 : vector<8x8xf32>
    %355 = vector.extract_strided_slice %42 {offsets = [8, 56], sizes = [8, 8], strides = [1, 1]} : vector<16x96xf32> to vector<8x8xf32>
    %356 = vector.extract_strided_slice %355 {offsets = [0, 0], sizes = [8, 4], strides = [1, 1]} : vector<8x8xf32> to vector<8x4xf32>
    %357 = vector.extract_strided_slice %355 {offsets = [0, 4], sizes = [8, 4], strides = [1, 1]} : vector<8x8xf32> to vector<8x4xf32>
    %358 = arith.mulf %356, %7 : vector<8x4xf32>
    %359 = arith.mulf %357, %9 : vector<8x4xf32>
    %360 = arith.subf %358, %359 : vector<8x4xf32>
    %361 = arith.mulf %357, %8 : vector<8x4xf32>
    %362 = arith.mulf %356, %10 : vector<8x4xf32>
    %363 = arith.addf %361, %362 : vector<8x4xf32>
    %364 = tpu.concatenate %360, %363 in 1 : vector<8x4xf32>, vector<8x4xf32> -> vector<8x8xf32>
    %365 = vector.extract_strided_slice %42 {offsets = [8, 88], sizes = [8, 8], strides = [1, 1]} : vector<16x96xf32> to vector<8x8xf32>
    %cst_107 = arith.constant dense<0.000000e+00> : vector<8x8xf32>
    %366 = tpu.matmul %354, %364, %cst_107 {dimension_numbers = #tpu.dot_dimension_numbers<[1], [1], [0], [0], [0, 0, 1, 0], [], []>} : vector<8x8xf32>, vector<8x8xf32>, vector<8x8xf32> -> vector<8x8xf32>
    %367 = vector.broadcast %214 : vector<1x8xf32> to vector<8x8xf32>
    %368 = arith.addf %366, %367 : vector<8x8xf32>
    %cst_108 = arith.constant dense<0xFF800000> : vector<8xf32>
    %369 = vector.multi_reduction <maximumf>, %368, %cst_108 [1] : vector<8x8xf32> to vector<8xf32>
    %370 = vector.shape_cast %369 : vector<8xf32> to vector<8x1xf32>
    %371 = vector.broadcast %370 : vector<8x1xf32> to vector<8x8xf32>
    %372 = arith.subf %368, %371 : vector<8x8xf32>
    %373 = math.exp %372 : vector<8x8xf32>
    %cst_109 = arith.constant dense<0.000000e+00> : vector<8xf32>
    %374 = vector.multi_reduction <add>, %373, %cst_109 [1] : vector<8x8xf32> to vector<8xf32>
    %375 = vector.shape_cast %374 : vector<8xf32> to vector<8x1xf32>
    %376 = tpu.reciprocal %375 {approx = true} : vector<8x1xf32> -> vector<8x1xf32>
    %377 = vector.broadcast %376 : vector<8x1xf32> to vector<8x8xf32>
    %378 = arith.mulf %373, %377 : vector<8x8xf32>
    %379 = arith.mulf %378, %216 : vector<8x8xf32>
    %c0_110 = arith.constant 0 : index
    %c1_111 = arith.constant 1 : index
    %c3_112 = arith.constant 3 : index
    %c0_113 = arith.constant 0 : index
    %c0_114 = arith.constant 0 : index
    %380 = vector.load %arg20[%c0_110, %c1_111, %c3_112, %c0_113, %c0_114] : memref<1x2x4x8x8xf32, #tpu.memory_space<vmem>>, vector<1x1x1x8x8xf32>
    %381 = vector.shape_cast %380 : vector<1x1x1x8x8xf32> to vector<8x8xf32>
    %382 = vector.shape_cast %379 : vector<8x8xf32> to vector<1x1x1x8x8xf32>
    tpu.vector_store %arg20[%c0_110, %c1_111, %c3_112, %c0_113, %c0_114], %382 {strides = array<i32>} : memref<1x2x4x8x8xf32, #tpu.memory_space<vmem>>, vector<1x1x1x8x8xf32>,
    %cst_115 = arith.constant dense<0.000000e+00> : vector<8x8xf32>
    %383 = tpu.matmul %378, %365, %cst_115 {dimension_numbers = #tpu.dot_dimension_numbers<[1], [0], [0], [1], [0, 0, 1, 1], [], []>} : vector<8x8xf32>, vector<8x8xf32>, vector<8x8xf32> -> vector<8x8xf32>
    %c8_116 = arith.constant 8 : index
    %c24_117 = arith.constant 24 : index
    %384 = vector.load %arg23[%c8_116, %c24_117] : memref<16x32xf32, #tpu.memory_space<vmem>>, vector<8x8xf32>
    tpu.vector_store %arg23[%c8_116, %c24_117], %383 {strides = array<i32>} : memref<16x32xf32, #tpu.memory_space<vmem>>, vector<8x8xf32>,
    %c0_118 = arith.constant 0 : index
    %c0_119 = arith.constant 0 : index
    %385 = vector.load %arg23[%c0_118, %c0_119] : memref<16x32xf32, #tpu.memory_space<vmem>>, vector<16x32xf32>
    %c0_120 = arith.constant 0 : index
    %c0_121 = arith.constant 0 : index
    %c0_122 = arith.constant 0 : index
    %386 = vector.load %arg10[%c0_120, %c0_121, %c0_122] : memref<1x32x32xf32, #tpu.memory_space<vmem>>, vector<1x32x32xf32>
    %387 = vector.shape_cast %386 : vector<1x32x32xf32> to vector<32x32xf32>
    %cst_123 = arith.constant dense<0.000000e+00> : vector<16x32xf32>
    %388 = tpu.matmul %385, %387, %cst_123 {dimension_numbers = #tpu.dot_dimension_numbers<[1], [0], [0], [1], [0, 0, 1, 1], [], []>} : vector<16x32xf32>, vector<32x32xf32>, vector<16x32xf32> -> vector<16x32xf32>
    %389 = arith.addf %11, %388 : vector<16x32xf32>
    %c0_124 = arith.constant 0 : index
    %c0_125 = arith.constant 0 : index
    %c0_126 = arith.constant 0 : index
    %390 = vector.load %arg11[%c0_124, %c0_125, %c0_126] : memref<1x1x32xf32, #tpu.memory_space<vmem>>, vector<1x1x32xf32>
    %391 = vector.shape_cast %390 : vector<1x1x32xf32> to vector<1x32xf32>
    %392 = vector.broadcast %391 : vector<1x32xf32> to vector<16x32xf32>
    %393 = arith.addf %389, %392 : vector<16x32xf32>
    %c0_127 = arith.constant 0 : index
    %c0_128 = arith.constant 0 : index
    %c0_129 = arith.constant 0 : index
    %394 = vector.load %arg12[%c0_127, %c0_128, %c0_129] : memref<1x1x32xf32, #tpu.memory_space<vmem>>, vector<1x1x32xf32>
    %395 = vector.shape_cast %394 : vector<1x1x32xf32> to vector<1x32xf32>
    %c0_130 = arith.constant 0 : index
    %c0_131 = arith.constant 0 : index
    %c0_132 = arith.constant 0 : index
    %396 = vector.load %arg13[%c0_130, %c0_131, %c0_132] : memref<1x1x32xf32, #tpu.memory_space<vmem>>, vector<1x1x32xf32>
    %397 = vector.shape_cast %396 : vector<1x1x32xf32> to vector<1x32xf32>
    %cst_133 = arith.constant dense<0.000000e+00> : vector<16xf32>
    %398 = vector.multi_reduction <add>, %393, %cst_133 [1] : vector<16x32xf32> to vector<16xf32>
    %399 = vector.shape_cast %398 : vector<16xf32> to vector<16x1xf32>
    %cst_134 = arith.constant 3.200000e+01 : f32
    %400 = vector.broadcast %cst_134 : f32 to vector<16x1xf32>
    %401 = arith.divf %399, %400 : vector<16x1xf32>
    %402 = vector.broadcast %401 : vector<16x1xf32> to vector<16x32xf32>
    %403 = arith.subf %393, %402 : vector<16x32xf32>
    %404 = arith.mulf %403, %403 : vector<16x32xf32>
    %cst_135 = arith.constant dense<0.000000e+00> : vector<16xf32>
    %405 = vector.multi_reduction <add>, %404, %cst_135 [1] : vector<16x32xf32> to vector<16xf32>
    %406 = vector.shape_cast %405 : vector<16xf32> to vector<16x1xf32>
    %cst_136 = arith.constant 3.200000e+01 : f32
    %407 = vector.broadcast %cst_136 : f32 to vector<16x1xf32>
    %408 = arith.divf %406, %407 : vector<16x1xf32>
    %cst_137 = arith.constant 9.99999996E-13 : f32
    %409 = vector.broadcast %cst_137 : f32 to vector<16x1xf32>
    %410 = arith.addf %408, %409 : vector<16x1xf32>
    %411 = math.rsqrt %410 : vector<16x1xf32>
    %412 = vector.broadcast %411 : vector<16x1xf32> to vector<16x32xf32>
    %413 = arith.mulf %403, %412 : vector<16x32xf32>
    %414 = vector.broadcast %395 : vector<1x32xf32> to vector<16x32xf32>
    %415 = arith.mulf %414, %413 : vector<16x32xf32>
    %416 = vector.broadcast %397 : vector<1x32xf32> to vector<16x32xf32>
    %417 = arith.addf %415, %416 : vector<16x32xf32>
    %c0_138 = arith.constant 0 : index
    %c0_139 = arith.constant 0 : index
    %c0_140 = arith.constant 0 : index
    %418 = vector.load %arg14[%c0_138, %c0_139, %c0_140] : memref<1x32x128xf32, #tpu.memory_space<vmem>>, vector<1x32x128xf32>
    %419 = vector.shape_cast %418 : vector<1x32x128xf32> to vector<32x128xf32>
    %cst_141 = arith.constant dense<0.000000e+00> : vector<16x128xf32>
    %420 = tpu.matmul %417, %419, %cst_141 {dimension_numbers = #tpu.dot_dimension_numbers<[1], [0], [0], [1], [0, 0, 1, 1], [], []>} : vector<16x32xf32>, vector<32x128xf32>, vector<16x128xf32> -> vector<16x128xf32>
    %c0_142 = arith.constant 0 : index
    %c0_143 = arith.constant 0 : index
    %c0_144 = arith.constant 0 : index
    %421 = vector.load %arg15[%c0_142, %c0_143, %c0_144] : memref<1x1x128xf32, #tpu.memory_space<vmem>>, vector<1x1x128xf32>
    %422 = vector.shape_cast %421 : vector<1x1x128xf32> to vector<1x128xf32>
    %423 = vector.broadcast %422 : vector<1x128xf32> to vector<16x128xf32>
    %424 = arith.addf %420, %423 : vector<16x128xf32>
    %cst_145 = arith.constant 5.000000e-01 : f32
    %425 = vector.broadcast %cst_145 : f32 to vector<16x128xf32>
    %426 = arith.mulf %425, %424 : vector<16x128xf32>
    %cst_146 = arith.constant 0.707106769 : f32
    %427 = vector.broadcast %cst_146 : f32 to vector<16x128xf32>
    %428 = arith.mulf %424, %427 : vector<16x128xf32>
    %429 = math.absf %428 : vector<16x128xf32>
    %cst_147 = arith.constant 0.327591091 : f32
    %430 = vector.broadcast %cst_147 : f32 to vector<16x128xf32>
    %431 = arith.mulf %430, %429 : vector<16x128xf32>
    %cst_148 = arith.constant 1.000000e+00 : f32
    %432 = vector.broadcast %cst_148 : f32 to vector<16x128xf32>
    %433 = arith.addf %432, %431 : vector<16x128xf32>
    %cst_149 = arith.constant 1.000000e+00 : f32
    %434 = vector.broadcast %cst_149 : f32 to vector<16x128xf32>
    %435 = arith.divf %434, %433 : vector<16x128xf32>
    %cst_150 = arith.constant 1.06140542 : f32
    %436 = vector.broadcast %cst_150 : f32 to vector<16x128xf32>
    %437 = arith.mulf %436, %435 : vector<16x128xf32>
    %cst_151 = arith.constant -1.45315206 : f32
    %438 = vector.broadcast %cst_151 : f32 to vector<16x128xf32>
    %439 = arith.addf %437, %438 : vector<16x128xf32>
    %440 = arith.mulf %439, %435 : vector<16x128xf32>
    %cst_152 = arith.constant 1.42141378 : f32
    %441 = vector.broadcast %cst_152 : f32 to vector<16x128xf32>
    %442 = arith.addf %440, %441 : vector<16x128xf32>
    %443 = arith.mulf %442, %435 : vector<16x128xf32>
    %cst_153 = arith.constant -0.284496725 : f32
    %444 = vector.broadcast %cst_153 : f32 to vector<16x128xf32>
    %445 = arith.addf %443, %444 : vector<16x128xf32>
    %446 = arith.mulf %445, %435 : vector<16x128xf32>
    %cst_154 = arith.constant 0.254829586 : f32
    %447 = vector.broadcast %cst_154 : f32 to vector<16x128xf32>
    %448 = arith.addf %446, %447 : vector<16x128xf32>
    %449 = arith.mulf %448, %435 : vector<16x128xf32>
    %cst_155 = arith.constant 0.000000e+00 : f32
    %450 = vector.broadcast %cst_155 : f32 to vector<16x128xf32>
    %451 = arith.subf %450, %429 : vector<16x128xf32>
    %452 = arith.mulf %451, %429 : vector<16x128xf32>
    %453 = math.exp %452 : vector<16x128xf32>
    %454 = arith.mulf %449, %453 : vector<16x128xf32>
    %cst_156 = arith.constant 1.000000e+00 : f32
    %455 = vector.broadcast %cst_156 : f32 to vector<16x128xf32>
    %456 = arith.subf %455, %454 : vector<16x128xf32>
    %cst_157 = arith.constant 0.000000e+00 : f32
    %457 = vector.broadcast %cst_157 : f32 to vector<16x128xf32>
    %458 = arith.cmpf oge, %428, %457 : vector<16x128xf32>
    %cst_158 = arith.constant 0.000000e+00 : f32
    %459 = vector.broadcast %cst_158 : f32 to vector<16x128xf32>
    %460 = arith.subf %459, %456 : vector<16x128xf32>
    %461 = arith.select %458, %456, %460 : vector<16x128xi1>, vector<16x128xf32>
    %cst_159 = arith.constant 1.000000e+00 : f32
    %462 = vector.broadcast %cst_159 : f32 to vector<16x128xf32>
    %463 = arith.addf %462, %461 : vector<16x128xf32>
    %464 = arith.mulf %426, %463 : vector<16x128xf32>
    %c0_160 = arith.constant 0 : index
    %c0_161 = arith.constant 0 : index
    %c0_162 = arith.constant 0 : index
    %465 = vector.load %arg16[%c0_160, %c0_161, %c0_162] : memref<1x128x32xf32, #tpu.memory_space<vmem>>, vector<1x128x32xf32>
    %466 = vector.shape_cast %465 : vector<1x128x32xf32> to vector<128x32xf32>
    %cst_163 = arith.constant dense<0.000000e+00> : vector<16x32xf32>
    %467 = tpu.matmul %464, %466, %cst_163 {dimension_numbers = #tpu.dot_dimension_numbers<[1], [0], [0], [1], [0, 0, 1, 1], [], []>} : vector<16x128xf32>, vector<128x32xf32>, vector<16x32xf32> -> vector<16x32xf32>
    %468 = arith.addf %393, %467 : vector<16x32xf32>
    %c0_164 = arith.constant 0 : index
    %c0_165 = arith.constant 0 : index
    %c0_166 = arith.constant 0 : index
    %469 = vector.load %arg17[%c0_164, %c0_165, %c0_166] : memref<1x1x32xf32, #tpu.memory_space<vmem>>, vector<1x1x32xf32>
    %470 = vector.shape_cast %469 : vector<1x1x32xf32> to vector<1x32xf32>
    %471 = vector.broadcast %470 : vector<1x32xf32> to vector<16x32xf32>
    %472 = arith.addf %468, %471 : vector<16x32xf32>
    %c0_167 = arith.constant 0 : index
    %c0_168 = arith.constant 0 : index
    %473 = vector.load %arg22[%c0_167, %c0_168] : memref<16x32xf32, #tpu.memory_space<vmem>>, vector<16x32xf32>
    tpu.vector_store %arg22[%c0_167, %c0_168], %472 {strides = array<i32>} : memref<16x32xf32, #tpu.memory_space<vmem>>, vector<16x32xf32>,
    %c1_i32 = arith.constant 1 : i32
    %474 = arith.cmpi eq, %arg0, %c1_i32 : i32
    %475 = arith.extui %474 : i1 to i32
    %c0_i32_169 = arith.constant 0 : i32
    %476 = arith.cmpi ne, %475, %c0_i32_169 : i32
    scf.if %476 {
      %c0_170 = arith.constant 0 : index
      %c0_171 = arith.constant 0 : index
      %477 = vector.load %arg18[%c0_170, %c0_171] : memref<1x32xf32, #tpu.memory_space<vmem>>, vector<1x32xf32>
      %c0_172 = arith.constant 0 : index
      %c0_173 = arith.constant 0 : index
      %478 = vector.load %arg19[%c0_172, %c0_173] : memref<1x32xf32, #tpu.memory_space<vmem>>, vector<1x32xf32>
      %cst_174 = arith.constant dense<0.000000e+00> : vector<16xf32>
      %479 = vector.multi_reduction <add>, %472, %cst_174 [1] : vector<16x32xf32> to vector<16xf32>
      %480 = vector.shape_cast %479 : vector<16xf32> to vector<16x1xf32>
      %cst_175 = arith.constant 3.200000e+01 : f32
      %481 = vector.broadcast %cst_175 : f32 to vector<16x1xf32>
      %482 = arith.divf %480, %481 : vector<16x1xf32>
      %483 = vector.broadcast %482 : vector<16x1xf32> to vector<16x32xf32>
      %484 = arith.subf %472, %483 : vector<16x32xf32>
      %485 = arith.mulf %484, %484 : vector<16x32xf32>
      %cst_176 = arith.constant dense<0.000000e+00> : vector<16xf32>
      %486 = vector.multi_reduction <add>, %485, %cst_176 [1] : vector<16x32xf32> to vector<16xf32>
      %487 = vector.shape_cast %486 : vector<16xf32> to vector<16x1xf32>
      %cst_177 = arith.constant 3.200000e+01 : f32
      %488 = vector.broadcast %cst_177 : f32 to vector<16x1xf32>
      %489 = arith.divf %487, %488 : vector<16x1xf32>
      %cst_178 = arith.constant 9.99999996E-13 : f32
      %490 = vector.broadcast %cst_178 : f32 to vector<16x1xf32>
      %491 = arith.addf %489, %490 : vector<16x1xf32>
      %492 = math.rsqrt %491 : vector<16x1xf32>
      %493 = vector.broadcast %492 : vector<16x1xf32> to vector<16x32xf32>
      %494 = arith.mulf %484, %493 : vector<16x32xf32>
      %495 = vector.broadcast %477 : vector<1x32xf32> to vector<16x32xf32>
      %496 = arith.mulf %495, %494 : vector<16x32xf32>
      %497 = vector.broadcast %478 : vector<1x32xf32> to vector<16x32xf32>
      %498 = arith.addf %496, %497 : vector<16x32xf32>
      %c0_179 = arith.constant 0 : index
      %c0_180 = arith.constant 0 : index
      %499 = vector.load %arg21[%c0_179, %c0_180] : memref<16x32xf32, #tpu.memory_space<vmem>>, vector<16x32xf32>
      tpu.vector_store %arg21[%c0_179, %c0_180], %498 {strides = array<i32>} : memref<16x32xf32, #tpu.memory_space<vmem>>, vector<16x32xf32>,
    } else {
    }
    return
  }
  func.func @transform_0(%arg0: i32) -> (i32, i32) {
    %c0_i32 = arith.constant 0 : i32
    %c0_i32_0 = arith.constant 0 : i32
    %c0_i32_1 = arith.constant 0 : i32
    return %c0_i32, %c0_i32_0 : i32, i32
  }
  func.func @transform_1(%arg0: i32) -> (i32, i32, i32) {
    %c0_i32 = arith.constant 0 : i32
    %c0_i32_0 = arith.constant 0 : i32
    %c0_i32_1 = arith.constant 0 : i32
    %c0_i32_2 = arith.constant 0 : i32
    return %c0_i32, %c0_i32_0, %c0_i32_1 : i32, i32, i32
  }
  func.func @transform_2(%arg0: i32) -> (i32, i32) {
    %c0_i32 = arith.constant 0 : i32
    %c0_i32_0 = arith.constant 0 : i32
    %c0_i32_1 = arith.constant 0 : i32
    return %c0_i32, %c0_i32_0 : i32, i32
  }
  func.func @transform_3(%arg0: i32) -> (i32, i32) {
    %c0_i32 = arith.constant 0 : i32
    %c0_i32_0 = arith.constant 0 : i32
    %c0_i32_1 = arith.constant 0 : i32
    return %c0_i32, %c0_i32_0 : i32, i32
  }
  func.func @transform_4(%arg0: i32) -> (i32, i32) {
    %c0_i32 = arith.constant 0 : i32
    %c0_i32_0 = arith.constant 0 : i32
    %c0_i32_1 = arith.constant 0 : i32
    return %c0_i32, %c0_i32_0 : i32, i32
  }
  func.func @transform_5(%arg0: i32) -> (i32, i32, i32) {
    %c0_i32 = arith.constant 0 : i32
    %c0_i32_0 = arith.constant 0 : i32
    %c0_i32_1 = arith.constant 0 : i32
    return %arg0, %c0_i32, %c0_i32_0 : i32, i32, i32
  }
  func.func @transform_6(%arg0: i32) -> (i32, i32, i32) {
    %c0_i32 = arith.constant 0 : i32
    %c0_i32_0 = arith.constant 0 : i32
    %c0_i32_1 = arith.constant 0 : i32
    return %arg0, %c0_i32, %c0_i32_0 : i32, i32, i32
  }
  func.func @transform_7(%arg0: i32) -> (i32, i32, i32) {
    %c0_i32 = arith.constant 0 : i32
    %c0_i32_0 = arith.constant 0 : i32
    %c0_i32_1 = arith.constant 0 : i32
    return %arg0, %c0_i32, %c0_i32_0 : i32, i32, i32
  }
  func.func @transform_8(%arg0: i32) -> (i32, i32, i32) {
    %c0_i32 = arith.constant 0 : i32
    %c0_i32_0 = arith.constant 0 : i32
    %c0_i32_1 = arith.constant 0 : i32
    return %arg0, %c0_i32, %c0_i32_0 : i32, i32, i32
  }
  func.func @transform_9(%arg0: i32) -> (i32, i32, i32) {
    %c0_i32 = arith.constant 0 : i32
    %c0_i32_0 = arith.constant 0 : i32
    %c0_i32_1 = arith.constant 0 : i32
    return %arg0, %c0_i32, %c0_i32_0 : i32, i32, i32
  }
  func.func @transform_10(%arg0: i32) -> (i32, i32, i32) {
    %c0_i32 = arith.constant 0 : i32
    %c0_i32_0 = arith.constant 0 : i32
    %c0_i32_1 = arith.constant 0 : i32
    return %arg0, %c0_i32, %c0_i32_0 : i32, i32, i32
  }
  func.func @transform_11(%arg0: i32) -> (i32, i32, i32) {
    %c0_i32 = arith.constant 0 : i32
    %c0_i32_0 = arith.constant 0 : i32
    %c0_i32_1 = arith.constant 0 : i32
    return %arg0, %c0_i32, %c0_i32_0 : i32, i32, i32
  }
  func.func @transform_12(%arg0: i32) -> (i32, i32, i32) {
    %c0_i32 = arith.constant 0 : i32
    %c0_i32_0 = arith.constant 0 : i32
    %c0_i32_1 = arith.constant 0 : i32
    return %arg0, %c0_i32, %c0_i32_0 : i32, i32, i32
  }
  func.func @transform_13(%arg0: i32) -> (i32, i32, i32) {
    %c0_i32 = arith.constant 0 : i32
    %c0_i32_0 = arith.constant 0 : i32
    %c0_i32_1 = arith.constant 0 : i32
    return %arg0, %c0_i32, %c0_i32_0 : i32, i32, i32
  }
  func.func @transform_14(%arg0: i32) -> (i32, i32, i32) {
    %c0_i32 = arith.constant 0 : i32
    %c0_i32_0 = arith.constant 0 : i32
    %c0_i32_1 = arith.constant 0 : i32
    return %arg0, %c0_i32, %c0_i32_0 : i32, i32, i32
  }
  func.func @transform_15(%arg0: i32) -> (i32, i32, i32) {
    %c0_i32 = arith.constant 0 : i32
    %c0_i32_0 = arith.constant 0 : i32
    %c0_i32_1 = arith.constant 0 : i32
    return %arg0, %c0_i32, %c0_i32_0 : i32, i32, i32
  }
  func.func @transform_16(%arg0: i32) -> (i32, i32, i32) {
    %c0_i32 = arith.constant 0 : i32
    %c0_i32_0 = arith.constant 0 : i32
    %c0_i32_1 = arith.constant 0 : i32
    return %arg0, %c0_i32, %c0_i32_0 : i32, i32, i32
  }
  func.func @transform_17(%arg0: i32) -> (i32, i32) {
    %c0_i32 = arith.constant 0 : i32
    %c0_i32_0 = arith.constant 0 : i32
    %c0_i32_1 = arith.constant 0 : i32
    return %c0_i32, %c0_i32_0 : i32, i32
  }
  func.func @transform_18(%arg0: i32) -> (i32, i32) {
    %c0_i32 = arith.constant 0 : i32
    %c0_i32_0 = arith.constant 0 : i32
    %c0_i32_1 = arith.constant 0 : i32
    return %c0_i32, %c0_i32_0 : i32, i32
  }
  func.func @transform_19(%arg0: i32) -> (i32, i32, i32, i32, i32) {
    %c0_i32 = arith.constant 0 : i32
    %c0_i32_0 = arith.constant 0 : i32
    %c0_i32_1 = arith.constant 0 : i32
    %c0_i32_2 = arith.constant 0 : i32
    %c0_i32_3 = arith.constant 0 : i32
    return %arg0, %c0_i32, %c0_i32_0, %c0_i32_1, %c0_i32_2 : i32, i32, i32, i32, i32
  }
  func.func @transform_20(%arg0: i32) -> (i32, i32) {
    %c0_i32 = arith.constant 0 : i32
    %c0_i32_0 = arith.constant 0 : i32
    %c0_i32_1 = arith.constant 0 : i32
    return %c0_i32, %c0_i32_0 : i32, i32
  }
}

</mosaic_0001>

<llo_original>
// kernel: tpu_custom_call.1
$region0: #{tpu_custom_call.1}
  #allocation0 [shape = 'u32[]', space=smem, size = 0x4, offset = 0x4, fixed_abs, tag = 'smem constant byte address 0x4 - core index']
  #allocation1 [shape = 'u32[144,128]{1,0:T(1,128)}', space=vmem, size = 0x12000, scoped, tag = 'internal scratch']
  #allocation2 [shape = 'f32[16,32]{1,0:T(8,128)}', space=vmem, size = 0x2000, scoped, tag = 'scratch operand']
  #allocation3 [shape = 'f32[16,32]{1,0:T(8,128)}', space=vmem, size = 0x2000, scoped, tag = 'scratch operand']
  %s0 = inlined_call_operand.vmem [shape: f32[2,8], index: 0, kind: input, shape index: {}]
  %s1 = inlined_call_operand.vmem [shape: f32[2,8,8], index: 1, kind: input, shape index: {}]
  %s2 = inlined_call_operand.vmem [shape: f32[8,8], index: 2, kind: input, shape index: {}]
  %s3 = inlined_call_operand.vmem [shape: f32[8,8], index: 3, kind: input, shape index: {}]
  %s4 = inlined_call_operand.vmem [shape: f32[16,32], index: 4, kind: input, shape index: {}]
  %s5 = inlined_call_operand.vmem [shape: f32[2,1,32], index: 5, kind: input, shape index: {}]
  %s6 = inlined_call_operand.vmem [shape: f32[2,1,32], index: 6, kind: input, shape index: {}]
  %s7 = inlined_call_operand.vmem [shape: f32[2,32,96], index: 7, kind: input, shape index: {}]
  %s8 = inlined_call_operand.vmem [shape: f32[2,1,96], index: 8, kind: input, shape index: {}]
  %s9 = inlined_call_operand.vmem [shape: f32[2,32,32], index: 9, kind: input, shape index: {}]
  %s10 = inlined_call_operand.vmem [shape: f32[2,1,32], index: 10, kind: input, shape index: {}]
  %s11 = inlined_call_operand.vmem [shape: f32[2,1,32], index: 11, kind: input, shape index: {}]
  %s12 = inlined_call_operand.vmem [shape: f32[2,1,32], index: 12, kind: input, shape index: {}]
  %s13 = inlined_call_operand.vmem [shape: f32[2,32,128], index: 13, kind: input, shape index: {}]
  %s14 = inlined_call_operand.vmem [shape: f32[2,1,128], index: 14, kind: input, shape index: {}]
  %s15 = inlined_call_operand.vmem [shape: f32[2,128,32], index: 15, kind: input, shape index: {}]
  %s16 = inlined_call_operand.vmem [shape: f32[2,1,32], index: 16, kind: input, shape index: {}]
  %s17 = inlined_call_operand.vmem [shape: f32[1,32], index: 17, kind: input, shape index: {}]
  %s18 = inlined_call_operand.vmem [shape: f32[1,32], index: 18, kind: input, shape index: {}]
  %s19 = inlined_call_operand.hbm [shape: f32[2,2,4,8,8], index: 19, kind: output, shape index: {0}]
  %s20 = inlined_call_operand.hbm [shape: f32[16,32], index: 20, kind: output, shape index: {1}]
  %21 = xla_tuple %s19, %s20
  %s22 = sld [smem:[#allocation0]]
  $region125: #{tpu_custom_call.1} parent=0
    _
  %s24 = ssub.s32 1, %s22
  %s25 = scalar_select 0, %s24, %s22
  $region1: #{tpu_custom_call.1} parent=0
    #allocation4 [shape = 'u8[65536]{0}', space=vmem, size = 0x10000, scoped, tag = 'output window, operand 0']
    #allocation5 [shape = 's32[2]{0}', space=sflag, size = 0x8, scoped, tag = 'scoped memory for tpu_custom_call.1']
    #allocation6 [shape = 'u8[8192]{0}', space=vmem, size = 0x2000, scoped, tag = 'output window, operand 1, single buffered']
    #allocation7 [shape = 's32[1]{0}', space=sflag, size = 0x4, scoped, tag = 'scoped memory for tpu_custom_call.1']
    %26 = vsyncpa [#allocation5], 0
    %s27 = scalar_lea.sflag [#allocation5], 1
    %28 = vsyncpa %s27, 0
    %29 = vsyncpa [#allocation7], 0
    loop: start=0, step=1, limit=4
    $region2: #{tpu_custom_call.1} parent=1 // loop_pre_header
      _
    $region3: #{tpu_custom_call.1} parent=1 // loop_header
      %s31 = sphi 0, %s35
      %p32 = scmp.ge.s32.totalorder %s31, 4
      %s39 = sphi 0, %s39
      %s41 = sphi 0, %s39
      %s42 = sphi 0, %s41
      %s56 = sphi 0, %s42
      %s60 = sphi 0, %s60
      %s62 = sphi 0, %s60
      %s63 = sphi 0, %s62
      %s77 = sphi 0, %s63
      %s81 = sphi 0, %s81
      %s83 = sphi 0, %s81
      %s84 = sphi 0, %s83
      %s98 = sphi 0, %s84
      %s102 = sphi 0, %s102
      %s104 = sphi 0, %s102
      %s105 = sphi 0, %s104
      %s119 = sphi 0, %s105
      %s123 = sphi 0, %s123
      %s125 = sphi 0, %s123
      %s126 = sphi 0, %s125
      %s140 = sphi 0, %s126
      %s146 = sphi 0, %s148
      %s149 = sphi 0, %s146
      %s150 = sphi 0, %s149
      %s166 = sphi 0, %s150
      %s172 = sphi 0, %s174
      %s175 = sphi 0, %s172
      %s176 = sphi 0, %s175
      %s192 = sphi 0, %s176
      %s198 = sphi 0, %s200
      %s201 = sphi 0, %s198
      %s202 = sphi 0, %s201
      %s218 = sphi 0, %s202
      %s224 = sphi 0, %s226
      %s227 = sphi 0, %s224
      %s228 = sphi 0, %s227
      %s244 = sphi 0, %s228
      %s250 = sphi 0, %s252
      %s253 = sphi 0, %s250
      %s254 = sphi 0, %s253
      %s270 = sphi 0, %s254
      %s276 = sphi 0, %s278
      %s279 = sphi 0, %s276
      %s280 = sphi 0, %s279
      %s296 = sphi 0, %s280
      %s302 = sphi 0, %s304
      %s305 = sphi 0, %s302
      %s306 = sphi 0, %s305
      %s322 = sphi 0, %s306
      %s328 = sphi 0, %s330
      %s331 = sphi 0, %s328
      %s332 = sphi 0, %s331
      %s348 = sphi 0, %s332
      %s354 = sphi 0, %s356
      %s357 = sphi 0, %s354
      %s358 = sphi 0, %s357
      %s374 = sphi 0, %s358
      %s380 = sphi 0, %s382
      %s383 = sphi 0, %s380
      %s384 = sphi 0, %s383
      %s400 = sphi 0, %s384
      %s406 = sphi 0, %s408
      %s409 = sphi 0, %s406
      %s410 = sphi 0, %s409
      %s426 = sphi 0, %s410
      %s432 = sphi 0, %s434
      %s435 = sphi 0, %s432
      %s436 = sphi 0, %s435
      %s452 = sphi 0, %s436
      %s456 = sphi 0, %s456
      %s458 = sphi 0, %s456
      %s459 = sphi 0, %s458
      %s473 = sphi 0, %s459
      %s477 = sphi 0, %s477
      %s479 = sphi 0, %s477
      %s480 = sphi 0, %s479
      %s494 = sphi 0, %s480
      %s500 = sphi 0, %s502
      %s503 = sphi 0, %s500
      %s504 = sphi 0, %s503
      %s520 = sphi 0, %s504
      %s524 = sphi 0, %s524
      %s526 = sphi 0, %s524
      %s527 = sphi 0, %s526
      %s541 = sphi 0, %s527
    $region4: #{tpu_custom_call.1} parent=1 // loop_header_branch
      %34 = sbr.rel (%p32) target = $region8
    $region5: #{tpu_custom_call.1} parent=1 // loop_body
      %s36 = ssub.s32 %s31, 1
      %s37 = ssub.s32 %s31, 2
      %s38 = sadd.s32 %s31, 1
      %s40 = sadd.s32 %s39, 1
      %p43 = scmp.eq.s32.totalorder %s31, 1
      %p44 = scmp.ne.s32.totalorder %s39, %s41
      %p45 = scmp.eq.s32.totalorder %s31, 0
      %p46 = por %p44, %p45
      %p47 = scmp.ne.s32.totalorder %s39, %s41
      %p48 = scmp.eq.s32.totalorder %s36, 1
      %p49 = por %p47, %p48
      %p50 = scmp.ne.s32.totalorder %s41, %s42
      %p51 = scmp.eq.s32.totalorder %s36, 0
      %p52 = por %p50, %p51
      %p53 = scmp.ne.s32.totalorder %s41, %s42
      %p54 = scmp.eq.s32.totalorder %s37, 1
      %p55 = por %p53, %p54
      %p57 = scmp.ne.s32.totalorder %s42, %s56
      %p58 = scmp.eq.s32.totalorder %s37, 0
      %p59 = por %p57, %p58
      %s61 = sadd.s32 %s60, 1
      %p64 = scmp.eq.s32.totalorder %s31, 1
      %p65 = scmp.ne.s32.totalorder %s60, %s62
      %p66 = scmp.eq.s32.totalorder %s31, 0
      %p67 = por %p65, %p66
      %p68 = scmp.ne.s32.totalorder %s60, %s62
      %p69 = scmp.eq.s32.totalorder %s36, 1
      %p70 = por %p68, %p69
      %p71 = scmp.ne.s32.totalorder %s62, %s63
      %p72 = scmp.eq.s32.totalorder %s36, 0
      %p73 = por %p71, %p72
      %p74 = scmp.ne.s32.totalorder %s62, %s63
      %p75 = scmp.eq.s32.totalorder %s37, 1
      %p76 = por %p74, %p75
      %p78 = scmp.ne.s32.totalorder %s63, %s77
      %p79 = scmp.eq.s32.totalorder %s37, 0
      %p80 = por %p78, %p79
      %s82 = sadd.s32 %s81, 1
      %p85 = scmp.eq.s32.totalorder %s31, 1
      %p86 = scmp.ne.s32.totalorder %s81, %s83
      %p87 = scmp.eq.s32.totalorder %s31, 0
      %p88 = por %p86, %p87
      %p89 = scmp.ne.s32.totalorder %s81, %s83
      %p90 = scmp.eq.s32.totalorder %s36, 1
      %p91 = por %p89, %p90
      %p92 = scmp.ne.s32.totalorder %s83, %s84
      %p93 = scmp.eq.s32.totalorder %s36, 0
      %p94 = por %p92, %p93
      %p95 = scmp.ne.s32.totalorder %s83, %s84
      %p96 = scmp.eq.s32.totalorder %s37, 1
      %p97 = por %p95, %p96
      %p99 = scmp.ne.s32.totalorder %s84, %s98
      %p100 = scmp.eq.s32.totalorder %s37, 0
      %p101 = por %p99, %p100
      %s103 = sadd.s32 %s102, 1
      %p106 = scmp.eq.s32.totalorder %s31, 1
      %p107 = scmp.ne.s32.totalorder %s102, %s104
      %p108 = scmp.eq.s32.totalorder %s31, 0
      %p109 = por %p107, %p108
      %p110 = scmp.ne.s32.totalorder %s102, %s104
      %p111 = scmp.eq.s32.totalorder %s36, 1
      %p112 = por %p110, %p111
      %p113 = scmp.ne.s32.totalorder %s104, %s105
      %p114 = scmp.eq.s32.totalorder %s36, 0
      %p115 = por %p113, %p114
      %p116 = scmp.ne.s32.totalorder %s104, %s105
      %p117 = scmp.eq.s32.totalorder %s37, 1
      %p118 = por %p116, %p117
      %p120 = scmp.ne.s32.totalorder %s105, %s119
      %p121 = scmp.eq.s32.totalorder %s37, 0
      %p122 = por %p120, %p121
      %s124 = sadd.s32 %s123, 1
      %p127 = scmp.eq.s32.totalorder %s31, 1
      %p128 = scmp.ne.s32.totalorder %s123, %s125
      %p129 = scmp.eq.s32.totalorder %s31, 0
      %p130 = por %p128, %p129
      %p131 = scmp.ne.s32.totalorder %s123, %s125
      %p132 = scmp.eq.s32.totalorder %s36, 1
      %p133 = por %p131, %p132
      %p134 = scmp.ne.s32.totalorder %s125, %s126
      %p135 = scmp.eq.s32.totalorder %s36, 0
      %p136 = por %p134, %p135
      %p137 = scmp.ne.s32.totalorder %s125, %s126
      %p138 = scmp.eq.s32.totalorder %s37, 1
      %p139 = por %p137, %p138
      %p141 = scmp.ne.s32.totalorder %s126, %s140
      %p142 = scmp.eq.s32.totalorder %s37, 0
      %p143 = por %p141, %p142
      %s144 = ssub.s32 %s31, %s38
      %p145 = scmp.eq.s32.totalorder %s144, 0
      %s147 = sadd.s32 %s146, 1
      %s148 = scalar_select %p145, %s146, %s147
      %p151 = pneg %p145
      %p152 = scmp.eq.s32.totalorder %s31, 1
      %p153 = por %p151, %p152
      %p154 = scmp.ne.s32.totalorder %s146, %s149
      %p155 = scmp.eq.s32.totalorder %s31, 0
      %p156 = por %p154, %p155
      %p157 = scmp.ne.s32.totalorder %s146, %s149
      %p158 = scmp.eq.s32.totalorder %s36, 1
      %p159 = por %p157, %p158
      %p160 = scmp.ne.s32.totalorder %s149, %s150
      %p161 = scmp.eq.s32.totalorder %s36, 0
      %p162 = por %p160, %p161
      %p163 = scmp.ne.s32.totalorder %s149, %s150
      %p164 = scmp.eq.s32.totalorder %s37, 1
      %p165 = por %p163, %p164
      %p167 = scmp.ne.s32.totalorder %s150, %s166
      %p168 = scmp.eq.s32.totalorder %s37, 0
      %p169 = por %p167, %p168
      %s170 = ssub.s32 %s31, %s38
      %p171 = scmp.eq.s32.totalorder %s170, 0
      %s173 = sadd.s32 %s172, 1
      %s174 = scalar_select %p171, %s172, %s173
      %p177 = pneg %p171
      %p178 = scmp.eq.s32.totalorder %s31, 1
      %p179 = por %p177, %p178
      %p180 = scmp.ne.s32.totalorder %s172, %s175
      %p181 = scmp.eq.s32.totalorder %s31, 0
      %p182 = por %p180, %p181
      %p183 = scmp.ne.s32.totalorder %s172, %s175
      %p184 = scmp.eq.s32.totalorder %s36, 1
      %p185 = por %p183, %p184
      %p186 = scmp.ne.s32.totalorder %s175, %s176
      %p187 = scmp.eq.s32.totalorder %s36, 0
      %p188 = por %p186, %p187
      %p189 = scmp.ne.s32.totalorder %s175, %s176
      %p190 = scmp.eq.s32.totalorder %s37, 1
      %p191 = por %p189, %p190
      %p193 = scmp.ne.s32.totalorder %s176, %s192
      %p194 = scmp.eq.s32.totalorder %s37, 0
      %p195 = por %p193, %p194
      %s196 = ssub.s32 %s31, %s38
      %p197 = scmp.eq.s32.totalorder %s196, 0
      %s199 = sadd.s32 %s198, 1
      %s200 = scalar_select %p197, %s198, %s199
      %p203 = pneg %p197
      %p204 = scmp.eq.s32.totalorder %s31, 1
      %p205 = por %p203, %p204
      %p206 = scmp.ne.s32.totalorder %s198, %s201
      %p207 = scmp.eq.s32.totalorder %s31, 0
      %p208 = por %p206, %p207
      %p209 = scmp.ne.s32.totalorder %s198, %s201
      %p210 = scmp.eq.s32.totalorder %s36, 1
      %p211 = por %p209, %p210
      %p212 = scmp.ne.s32.totalorder %s201, %s202
      %p213 = scmp.eq.s32.totalorder %s36, 0
      %p214 = por %p212, %p213
      %p215 = scmp.ne.s32.totalorder %s201, %s202
      %p216 = scmp.eq.s32.totalorder %s37, 1
      %p217 = por %p215, %p216
      %p219 = scmp.ne.s32.totalorder %s202, %s218
      %p220 = scmp.eq.s32.totalorder %s37, 0
      %p221 = por %p219, %p220
      %s222 = ssub.s32 %s31, %s38
      %p223 = scmp.eq.s32.totalorder %s222, 0
      %s225 = sadd.s32 %s224, 1
      %s226 = scalar_select %p223, %s224, %s225
      %p229 = pneg %p223
      %p230 = scmp.eq.s32.totalorder %s31, 1
      %p231 = por %p229, %p230
      %p232 = scmp.ne.s32.totalorder %s224, %s227
      %p233 = scmp.eq.s32.totalorder %s31, 0
      %p234 = por %p232, %p233
      %p235 = scmp.ne.s32.totalorder %s224, %s227
      %p236 = scmp.eq.s32.totalorder %s36, 1
      %p237 = por %p235, %p236
      %p238 = scmp.ne.s32.totalorder %s227, %s228
      %p239 = scmp.eq.s32.totalorder %s36, 0
      %p240 = por %p238, %p239
      %p241 = scmp.ne.s32.totalorder %s227, %s228
      %p242 = scmp.eq.s32.totalorder %s37, 1
      %p243 = por %p241, %p242
      %p245 = scmp.ne.s32.totalorder %s228, %s244
      %p246 = scmp.eq.s32.totalorder %s37, 0
      %p247 = por %p245, %p246
      %s248 = ssub.s32 %s31, %s38
      %p249 = scmp.eq.s32.totalorder %s248, 0
      %s251 = sadd.s32 %s250, 1
      %s252 = scalar_select %p249, %s250, %s251
      %p255 = pneg %p249
      %p256 = scmp.eq.s32.totalorder %s31, 1
      %p257 = por %p255, %p256
      %p258 = scmp.ne.s32.totalorder %s250, %s253
      %p259 = scmp.eq.s32.totalorder %s31, 0
      %p260 = por %p258, %p259
      %p261 = scmp.ne.s32.totalorder %s250, %s253
      %p262 = scmp.eq.s32.totalorder %s36, 1
      %p263 = por %p261, %p262
      %p264 = scmp.ne.s32.totalorder %s253, %s254
      %p265 = scmp.eq.s32.totalorder %s36, 0
      %p266 = por %p264, %p265
      %p267 = scmp.ne.s32.totalorder %s253, %s254
      %p268 = scmp.eq.s32.totalorder %s37, 1
      %p269 = por %p267, %p268
      %p271 = scmp.ne.s32.totalorder %s254, %s270
      %p272 = scmp.eq.s32.totalorder %s37, 0
      %p273 = por %p271, %p272
      %s274 = ssub.s32 %s31, %s38
      %p275 = scmp.eq.s32.totalorder %s274, 0
      %s277 = sadd.s32 %s276, 1
      %s278 = scalar_select %p275, %s276, %s277
      %p281 = pneg %p275
      %p282 = scmp.eq.s32.totalorder %s31, 1
      %p283 = por %p281, %p282
      %p284 = scmp.ne.s32.totalorder %s276, %s279
      %p285 = scmp.eq.s32.totalorder %s31, 0
      %p286 = por %p284, %p285
      %p287 = scmp.ne.s32.totalorder %s276, %s279
      %p288 = scmp.eq.s32.totalorder %s36, 1
      %p289 = por %p287, %p288
      %p290 = scmp.ne.s32.totalorder %s279, %s280
      %p291 = scmp.eq.s32.totalorder %s36, 0
      %p292 = por %p290, %p291
      %p293 = scmp.ne.s32.totalorder %s279, %s280
      %p294 = scmp.eq.s32.totalorder %s37, 1
      %p295 = por %p293, %p294
      %p297 = scmp.ne.s32.totalorder %s280, %s296
      %p298 = scmp.eq.s32.totalorder %s37, 0
      %p299 = por %p297, %p298
      %s300 = ssub.s32 %s31, %s38
      %p301 = scmp.eq.s32.totalorder %s300, 0
      %s303 = sadd.s32 %s302, 1
      %s304 = scalar_select %p301, %s302, %s303
      %p307 = pneg %p301
      %p308 = scmp.eq.s32.totalorder %s31, 1
      %p309 = por %p307, %p308
      %p310 = scmp.ne.s32.totalorder %s302, %s305
      %p311 = scmp.eq.s32.totalorder %s31, 0
      %p312 = por %p310, %p311
      %p313 = scmp.ne.s32.totalorder %s302, %s305
      %p314 = scmp.eq.s32.totalorder %s36, 1
      %p315 = por %p313, %p314
      %p316 = scmp.ne.s32.totalorder %s305, %s306
      %p317 = scmp.eq.s32.totalorder %s36, 0
      %p318 = por %p316, %p317
      %p319 = scmp.ne.s32.totalorder %s305, %s306
      %p320 = scmp.eq.s32.totalorder %s37, 1
      %p321 = por %p319, %p320
      %p323 = scmp.ne.s32.totalorder %s306, %s322
      %p324 = scmp.eq.s32.totalorder %s37, 0
      %p325 = por %p323, %p324
      %s326 = ssub.s32 %s31, %s38
      %p327 = scmp.eq.s32.totalorder %s326, 0
      %s329 = sadd.s32 %s328, 1
      %s330 = scalar_select %p327, %s328, %s329
      %p333 = pneg %p327
      %p334 = scmp.eq.s32.totalorder %s31, 1
      %p335 = por %p333, %p334
      %p336 = scmp.ne.s32.totalorder %s328, %s331
      %p337 = scmp.eq.s32.totalorder %s31, 0
      %p338 = por %p336, %p337
      %p339 = scmp.ne.s32.totalorder %s328, %s331
      %p340 = scmp.eq.s32.totalorder %s36, 1
      %p341 = por %p339, %p340
      %p342 = scmp.ne.s32.totalorder %s331, %s332
      %p343 = scmp.eq.s32.totalorder %s36, 0
      %p344 = por %p342, %p343
      %p345 = scmp.ne.s32.totalorder %s331, %s332
      %p346 = scmp.eq.s32.totalorder %s37, 1
      %p347 = por %p345, %p346
      %p349 = scmp.ne.s32.totalorder %s332, %s348
      %p350 = scmp.eq.s32.totalorder %s37, 0
      %p351 = por %p349, %p350
      %s352 = ssub.s32 %s31, %s38
      %p353 = scmp.eq.s32.totalorder %s352, 0
      %s355 = sadd.s32 %s354, 1
      %s356 = scalar_select %p353, %s354, %s355
      %p359 = pneg %p353
      %p360 = scmp.eq.s32.totalorder %s31, 1
      %p361 = por %p359, %p360
      %p362 = scmp.ne.s32.totalorder %s354, %s357
      %p363 = scmp.eq.s32.totalorder %s31, 0
      %p364 = por %p362, %p363
      %p365 = scmp.ne.s32.totalorder %s354, %s357
      %p366 = scmp.eq.s32.totalorder %s36, 1
      %p367 = por %p365, %p366
      %p368 = scmp.ne.s32.totalorder %s357, %s358
      %p369 = scmp.eq.s32.totalorder %s36, 0
      %p370 = por %p368, %p369
      %p371 = scmp.ne.s32.totalorder %s357, %s358
      %p372 = scmp.eq.s32.totalorder %s37, 1
      %p373 = por %p371, %p372
      %p375 = scmp.ne.s32.totalorder %s358, %s374
      %p376 = scmp.eq.s32.totalorder %s37, 0
      %p377 = por %p375, %p376
      %s378 = ssub.s32 %s31, %s38
      %p379 = scmp.eq.s32.totalorder %s378, 0
      %s381 = sadd.s32 %s380, 1
      %s382 = scalar_select %p379, %s380, %s381
      %p385 = pneg %p379
      %p386 = scmp.eq.s32.totalorder %s31, 1
      %p387 = por %p385, %p386
      %p388 = scmp.ne.s32.totalorder %s380, %s383
      %p389 = scmp.eq.s32.totalorder %s31, 0
      %p390 = por %p388, %p389
      %p391 = scmp.ne.s32.totalorder %s380, %s383
      %p392 = scmp.eq.s32.totalorder %s36, 1
      %p393 = por %p391, %p392
      %p394 = scmp.ne.s32.totalorder %s383, %s384
      %p395 = scmp.eq.s32.totalorder %s36, 0
      %p396 = por %p394, %p395
      %p397 = scmp.ne.s32.totalorder %s383, %s384
      %p398 = scmp.eq.s32.totalorder %s37, 1
      %p399 = por %p397, %p398
      %p401 = scmp.ne.s32.totalorder %s384, %s400
      %p402 = scmp.eq.s32.totalorder %s37, 0
      %p403 = por %p401, %p402
      %s404 = ssub.s32 %s31, %s38
      %p405 = scmp.eq.s32.totalorder %s404, 0
      %s407 = sadd.s32 %s406, 1
      %s408 = scalar_select %p405, %s406, %s407
      %p411 = pneg %p405
      %p412 = scmp.eq.s32.totalorder %s31, 1
      %p413 = por %p411, %p412
      %p414 = scmp.ne.s32.totalorder %s406, %s409
      %p415 = scmp.eq.s32.totalorder %s31, 0
      %p416 = por %p414, %p415
      %p417 = scmp.ne.s32.totalorder %s406, %s409
      %p418 = scmp.eq.s32.totalorder %s36, 1
      %p419 = por %p417, %p418
      %p420 = scmp.ne.s32.totalorder %s409, %s410
      %p421 = scmp.eq.s32.totalorder %s36, 0
      %p422 = por %p420, %p421
      %p423 = scmp.ne.s32.totalorder %s409, %s410
      %p424 = scmp.eq.s32.totalorder %s37, 1
      %p425 = por %p423, %p424
      %p427 = scmp.ne.s32.totalorder %s410, %s426
      %p428 = scmp.eq.s32.totalorder %s37, 0
      %p429 = por %p427, %p428
      %s430 = ssub.s32 %s31, %s38
      %p431 = scmp.eq.s32.totalorder %s430, 0
      %s433 = sadd.s32 %s432, 1
      %s434 = scalar_select %p431, %s432, %s433
      %p437 = pneg %p431
      %p438 = scmp.eq.s32.totalorder %s31, 1
      %p439 = por %p437, %p438
      %p440 = scmp.ne.s32.totalorder %s432, %s435
      %p441 = scmp.eq.s32.totalorder %s31, 0
      %p442 = por %p440, %p441
      %p443 = scmp.ne.s32.totalorder %s432, %s435
      %p444 = scmp.eq.s32.totalorder %s36, 1
      %p445 = por %p443, %p444
      %p446 = scmp.ne.s32.totalorder %s435, %s436
      %p447 = scmp.eq.s32.totalorder %s36, 0
      %p448 = por %p446, %p447
      %p449 = scmp.ne.s32.totalorder %s435, %s436
      %p450 = scmp.eq.s32.totalorder %s37, 1
      %p451 = por %p449, %p450
      %p453 = scmp.ne.s32.totalorder %s436, %s452
      %p454 = scmp.eq.s32.totalorder %s37, 0
      %p455 = por %p453, %p454
      %s457 = sadd.s32 %s456, 1
      %p460 = scmp.eq.s32.totalorder %s31, 1
      %p461 = scmp.ne.s32.totalorder %s456, %s458
      %p462 = scmp.eq.s32.totalorder %s31, 0
      %p463 = por %p461, %p462
      %p464 = scmp.ne.s32.totalorder %s456, %s458
      %p465 = scmp.eq.s32.totalorder %s36, 1
      %p466 = por %p464, %p465
      %p467 = scmp.ne.s32.totalorder %s458, %s459
      %p468 = scmp.eq.s32.totalorder %s36, 0
      %p469 = por %p467, %p468
      %p470 = scmp.ne.s32.totalorder %s458, %s459
      %p471 = scmp.eq.s32.totalorder %s37, 1
      %p472 = por %p470, %p471
      %p474 = scmp.ne.s32.totalorder %s459, %s473
      %p475 = scmp.eq.s32.totalorder %s37, 0
      %p476 = por %p474, %p475
      %s478 = sadd.s32 %s477, 1
      %p481 = scmp.eq.s32.totalorder %s31, 1
      %p482 = scmp.ne.s32.totalorder %s477, %s479
      %p483 = scmp.eq.s32.totalorder %s31, 0
      %p484 = por %p482, %p483
      %p485 = scmp.ne.s32.totalorder %s477, %s479
      %p486 = scmp.eq.s32.totalorder %s36, 1
      %p487 = por %p485, %p486
      %p488 = scmp.ne.s32.totalorder %s479, %s480
      %p489 = scmp.eq.s32.totalorder %s36, 0
      %p490 = por %p488, %p489
      %p491 = scmp.ne.s32.totalorder %s479, %s480
      %p492 = scmp.eq.s32.totalorder %s37, 1
      %p493 = por %p491, %p492
      %p495 = scmp.ne.s32.totalorder %s480, %s494
      %p496 = scmp.eq.s32.totalorder %s37, 0
      %p497 = por %p495, %p496
      %s498 = ssub.s32 %s31, %s38
      %p499 = scmp.eq.s32.totalorder %s498, 0
      %s501 = sadd.s32 %s500, 1
      %s502 = scalar_select %p499, %s500, %s501
      %p505 = pneg %p499
      %p506 = scmp.eq.s32.totalorder %s31, 1
      %p507 = por %p505, %p506
      %p508 = scmp.ne.s32.totalorder %s500, %s503
      %p509 = scmp.eq.s32.totalorder %s31, 0
      %p510 = por %p508, %p509
      %p511 = scmp.ne.s32.totalorder %s500, %s503
      %p512 = scmp.eq.s32.totalorder %s36, 1
      %p513 = por %p511, %p512
      %p514 = scmp.ne.s32.totalorder %s503, %s504
      %p515 = scmp.eq.s32.totalorder %s36, 0
      %p516 = por %p514, %p515
      %p517 = scmp.ne.s32.totalorder %s503, %s504
      %p518 = scmp.eq.s32.totalorder %s37, 1
      %p519 = por %p517, %p518
      %p521 = scmp.ne.s32.totalorder %s504, %s520
      %p522 = scmp.eq.s32.totalorder %s37, 0
      %p523 = por %p521, %p522
      %s525 = sadd.s32 %s524, 1
      %p528 = scmp.eq.s32.totalorder %s31, 1
      %p529 = scmp.ne.s32.totalorder %s524, %s526
      %p530 = scmp.eq.s32.totalorder %s31, 0
      %p531 = por %p529, %p530
      %p532 = scmp.ne.s32.totalorder %s524, %s526
      %p533 = scmp.eq.s32.totalorder %s36, 1
      %p534 = por %p532, %p533
      %p535 = scmp.ne.s32.totalorder %s526, %s527
      %p536 = scmp.eq.s32.totalorder %s36, 0
      %p537 = por %p535, %p536
      %p538 = scmp.ne.s32.totalorder %s526, %s527
      %p539 = scmp.eq.s32.totalorder %s37, 1
      %p540 = por %p538, %p539
      %p542 = scmp.ne.s32.totalorder %s527, %s541
      %p543 = scmp.eq.s32.totalorder %s37, 0
      %p544 = por %p542, %p543
      %p545 = scmp.le.s32.totalorder 1, %s31
      %p546 = scmp.lt.s32.totalorder %s31, 3
      %p547 = pnand %p545, %p546
      %p548 = pneg %p547
      // Predicated region
      $region9: #{tpu_custom_call.1} parent=5 // pred_check
        _
      $region10: #{tpu_custom_call.1} parent=5 // pred_check_branch
        %550 = sbr.rel (%p547) target = $region12
      $region11: #{tpu_custom_call.1} parent=5 // pred_region
        %s551 = ssub.s32 %s31, 1
        // Predicated region
        $region13: #{tpu_custom_call.1} parent=11 // pred_check
          %p552 = pneg %p52
        $region14: #{tpu_custom_call.1} parent=11 // pred_check_branch
          %554 = sbr.rel (%p552) target = $region16
        $region15: #{tpu_custom_call.1} parent=11 // pred_region
          _
        $region16: #{tpu_custom_call.1} parent=11 // pred_fallthru
          _
        // Predicated region
        $region17: #{tpu_custom_call.1} parent=11 // pred_check
          %p555 = pneg %p73
        $region18: #{tpu_custom_call.1} parent=11 // pred_check_branch
          %557 = sbr.rel (%p555) target = $region20
        $region19: #{tpu_custom_call.1} parent=11 // pred_region
          _
        $region20: #{tpu_custom_call.1} parent=11 // pred_fallthru
          _
        // Predicated region
        $region21: #{tpu_custom_call.1} parent=11 // pred_check
          %p558 = pneg %p94
        $region22: #{tpu_custom_call.1} parent=11 // pred_check_branch
          %560 = sbr.rel (%p558) target = $region24
        $region23: #{tpu_custom_call.1} parent=11 // pred_region
          _
        $region24: #{tpu_custom_call.1} parent=11 // pred_fallthru
          _
        // Predicated region
        $region25: #{tpu_custom_call.1} parent=11 // pred_check
          %p561 = pneg %p115
        $region26: #{tpu_custom_call.1} parent=11 // pred_check_branch
          %563 = sbr.rel (%p561) target = $region28
        $region27: #{tpu_custom_call.1} parent=11 // pred_region
          _
        $region28: #{tpu_custom_call.1} parent=11 // pred_fallthru
          _
        // Predicated region
        $region29: #{tpu_custom_call.1} parent=11 // pred_check
          %p564 = pneg %p136
        $region30: #{tpu_custom_call.1} parent=11 // pred_check_branch
          %566 = sbr.rel (%p564) target = $region32
        $region31: #{tpu_custom_call.1} parent=11 // pred_region
          _
        $region32: #{tpu_custom_call.1} parent=11 // pred_fallthru
          _
        // Predicated region
        $region33: #{tpu_custom_call.1} parent=11 // pred_check
          %p567 = pneg %p469
        $region34: #{tpu_custom_call.1} parent=11 // pred_check_branch
          %569 = sbr.rel (%p567) target = $region36
        $region35: #{tpu_custom_call.1} parent=11 // pred_region
          _
        $region36: #{tpu_custom_call.1} parent=11 // pred_fallthru
          _
        // Predicated region
        $region37: #{tpu_custom_call.1} parent=11 // pred_check
          %p570 = pneg %p490
        $region38: #{tpu_custom_call.1} parent=11 // pred_check_branch
          %572 = sbr.rel (%p570) target = $region40
        $region39: #{tpu_custom_call.1} parent=11 // pred_region
          _
        $region40: #{tpu_custom_call.1} parent=11 // pred_fallthru
          _
      $region12: #{tpu_custom_call.1} parent=5 // pred_fallthru
        _
      %p573 = scmp.lt.s32.totalorder %s31, 2
      // Predicated region
      $region41: #{tpu_custom_call.1} parent=5 // pred_check
        %p574 = pneg %p573
      $region42: #{tpu_custom_call.1} parent=5 // pred_check_branch
        %576 = sbr.rel (%p574) target = $region44
      $region43: #{tpu_custom_call.1} parent=5 // pred_region
        // Predicated region
        $region45: #{tpu_custom_call.1} parent=43 // pred_check
          %p577 = pneg %p156
        $region46: #{tpu_custom_call.1} parent=43 // pred_check_branch
          %579 = sbr.rel (%p577) target = $region48
        $region47: #{tpu_custom_call.1} parent=43 // pred_region
          %p580 = scmp.lt.s32.totalorder %s31, 1
          %s581 = scalar_select %p580, %s31, 1
          %s582 = scalar_lea.vmem %s5, %s581
        $region48: #{tpu_custom_call.1} parent=43 // pred_fallthru
          _
        // Predicated region
        $region49: #{tpu_custom_call.1} parent=43 // pred_check
          %p583 = pneg %p182
        $region50: #{tpu_custom_call.1} parent=43 // pred_check_branch
          %585 = sbr.rel (%p583) target = $region52
        $region51: #{tpu_custom_call.1} parent=43 // pred_region
          %p586 = scmp.lt.s32.totalorder %s31, 1
          %s587 = scalar_select %p586, %s31, 1
          %s588 = scalar_lea.vmem %s6, %s587
        $region52: #{tpu_custom_call.1} parent=43 // pred_fallthru
          _
        // Predicated region
        $region53: #{tpu_custom_call.1} parent=43 // pred_check
          %p589 = pneg %p208
        $region54: #{tpu_custom_call.1} parent=43 // pred_check_branch
          %591 = sbr.rel (%p589) target = $region56
        $region55: #{tpu_custom_call.1} parent=43 // pred_region
          %p592 = scmp.lt.s32.totalorder %s31, 1
          %s593 = scalar_select %p592, %s31, 1
          %s594 = smul.addr %s593, 4
          %s595 = smul.addr %s594, 8
          %s596 = scalar_lea.vmem %s7, %s595
        $region56: #{tpu_custom_call.1} parent=43 // pred_fallthru
          _
        // Predicated region
        $region57: #{tpu_custom_call.1} parent=43 // pred_check
          %p597 = pneg %p234
        $region58: #{tpu_custom_call.1} parent=43 // pred_check_branch
          %599 = sbr.rel (%p597) target = $region60
        $region59: #{tpu_custom_call.1} parent=43 // pred_region
          %p600 = scmp.lt.s32.totalorder %s31, 1
          %s601 = scalar_select %p600, %s31, 1
          %s602 = scalar_lea.vmem %s8, %s601
        $region60: #{tpu_custom_call.1} parent=43 // pred_fallthru
          _
        // Predicated region
        $region61: #{tpu_custom_call.1} parent=43 // pred_check
          %p603 = pneg %p260
        $region62: #{tpu_custom_call.1} parent=43 // pred_check_branch
          %605 = sbr.rel (%p603) target = $region64
        $region63: #{tpu_custom_call.1} parent=43 // pred_region
          %p606 = scmp.lt.s32.totalorder %s31, 1
          %s607 = scalar_select %p606, %s31, 1
          %s608 = smul.addr %s607, 4
          %s609 = smul.addr %s608, 8
          %s610 = scalar_lea.vmem %s9, %s609
        $region64: #{tpu_custom_call.1} parent=43 // pred_fallthru
          _
        // Predicated region
        $region65: #{tpu_custom_call.1} parent=43 // pred_check
          %p611 = pneg %p286
        $region66: #{tpu_custom_call.1} parent=43 // pred_check_branch
          %613 = sbr.rel (%p611) target = $region68
        $region67: #{tpu_custom_call.1} parent=43 // pred_region
          %p614 = scmp.lt.s32.totalorder %s31, 1
          %s615 = scalar_select %p614, %s31, 1
          %s616 = scalar_lea.vmem %s10, %s615
        $region68: #{tpu_custom_call.1} parent=43 // pred_fallthru
          _
        // Predicated region
        $region69: #{tpu_custom_call.1} parent=43 // pred_check
          %p617 = pneg %p312
        $region70: #{tpu_custom_call.1} parent=43 // pred_check_branch
          %619 = sbr.rel (%p617) target = $region72
        $region71: #{tpu_custom_call.1} parent=43 // pred_region
          %p620 = scmp.lt.s32.totalorder %s31, 1
          %s621 = scalar_select %p620, %s31, 1
          %s622 = scalar_lea.vmem %s11, %s621
        $region72: #{tpu_custom_call.1} parent=43 // pred_fallthru
          _
        // Predicated region
        $region73: #{tpu_custom_call.1} parent=43 // pred_check
          %p623 = pneg %p338
        $region74: #{tpu_custom_call.1} parent=43 // pred_check_branch
          %625 = sbr.rel (%p623) target = $region76
        $region75: #{tpu_custom_call.1} parent=43 // pred_region
          %p626 = scmp.lt.s32.totalorder %s31, 1
          %s627 = scalar_select %p626, %s31, 1
          %s628 = scalar_lea.vmem %s12, %s627
        $region76: #{tpu_custom_call.1} parent=43 // pred_fallthru
          _
        // Predicated region
        $region77: #{tpu_custom_call.1} parent=43 // pred_check
          %p629 = pneg %p364
        $region78: #{tpu_custom_call.1} parent=43 // pred_check_branch
          %631 = sbr.rel (%p629) target = $region80
        $region79: #{tpu_custom_call.1} parent=43 // pred_region
          %p632 = scmp.lt.s32.totalorder %s31, 1
          %s633 = scalar_select %p632, %s31, 1
          %s634 = smul.addr %s633, 4
          %s635 = smul.addr %s634, 8
          %s636 = scalar_lea.vmem %s13, %s635
        $region80: #{tpu_custom_call.1} parent=43 // pred_fallthru
          _
        // Predicated region
        $region81: #{tpu_custom_call.1} parent=43 // pred_check
          %p637 = pneg %p390
        $region82: #{tpu_custom_call.1} parent=43 // pred_check_branch
          %639 = sbr.rel (%p637) target = $region84
        $region83: #{tpu_custom_call.1} parent=43 // pred_region
          %p640 = scmp.lt.s32.totalorder %s31, 1
          %s641 = scalar_select %p640, %s31, 1
          %s642 = scalar_lea.vmem %s14, %s641
        $region84: #{tpu_custom_call.1} parent=43 // pred_fallthru
          _
        // Predicated region
        $region85: #{tpu_custom_call.1} parent=43 // pred_check
          %p643 = pneg %p416
        $region86: #{tpu_custom_call.1} parent=43 // pred_check_branch
          %645 = sbr.rel (%p643) target = $region88
        $region87: #{tpu_custom_call.1} parent=43 // pred_region
          %p646 = scmp.lt.s32.totalorder %s31, 1
          %s647 = scalar_select %p646, %s31, 1
          %s648 = smul.addr %s647, 16
          %s649 = smul.addr %s648, 8
          %s650 = scalar_lea.vmem %s15, %s649
        $region88: #{tpu_custom_call.1} parent=43 // pred_fallthru
          _
        // Predicated region
        $region89: #{tpu_custom_call.1} parent=43 // pred_check
          %p651 = pneg %p442
        $region90: #{tpu_custom_call.1} parent=43 // pred_check_branch
          %653 = sbr.rel (%p651) target = $region92
        $region91: #{tpu_custom_call.1} parent=43 // pred_region
          %p654 = scmp.lt.s32.totalorder %s31, 1
          %s655 = scalar_select %p654, %s31, 1
          %s656 = scalar_lea.vmem %s16, %s655
        $region92: #{tpu_custom_call.1} parent=43 // pred_fallthru
          _
      $region44: #{tpu_custom_call.1} parent=5 // pred_fallthru
        _
      %p657 = scmp.le.s32.totalorder 1, %s31
      %p658 = scmp.lt.s32.totalorder %s31, 3
      %p659 = pnand %p657, %p658
      %p660 = pneg %p659
      // Predicated region
      $region93: #{tpu_custom_call.1} parent=5 // pred_check
        _
      $region94: #{tpu_custom_call.1} parent=5 // pred_check_branch
        %662 = sbr.rel (%p659) target = $region96
      $region95: #{tpu_custom_call.1} parent=5 // pred_region
        %s663 = ssub.s32 %s31, 1
        %p664 = pneg %p52
        %p665 = pneg %p49
        %p666 = pneg %p73
        %p667 = pneg %p70
        %p668 = pneg %p94
        %p669 = pneg %p91
        %p670 = pneg %p115
        %p671 = pneg %p112
        %p672 = pneg %p136
        %p673 = pneg %p133
        %p674 = scmp.lt.s32.totalorder %s36, 1
        %s675 = scalar_select %p674, %s36, 1
        %s676 = scalar_lea.vmem %s5, %s675
        %p677 = pneg %p162
        %p678 = pneg %p159
        %p679 = scmp.lt.s32.totalorder %s36, 1
        %s680 = scalar_select %p679, %s36, 1
        %s681 = scalar_lea.vmem %s6, %s680
        %p682 = pneg %p188
        %p683 = pneg %p185
        %p684 = scmp.lt.s32.totalorder %s36, 1
        %s685 = scalar_select %p684, %s36, 1
        %s686 = smul.addr %s685, 4
        %s687 = smul.addr %s686, 8
        %s688 = scalar_lea.vmem %s7, %s687
        %p689 = pneg %p214
        %p690 = pneg %p211
        %p691 = scmp.lt.s32.totalorder %s36, 1
        %s692 = scalar_select %p691, %s36, 1
        %s693 = scalar_lea.vmem %s8, %s692
        %p694 = pneg %p240
        %p695 = pneg %p237
        %p696 = scmp.lt.s32.totalorder %s36, 1
        %s697 = scalar_select %p696, %s36, 1
        %s698 = smul.addr %s697, 4
        %s699 = smul.addr %s698, 8
        %s700 = scalar_lea.vmem %s9, %s699
        %p701 = pneg %p266
        %p702 = pneg %p263
        %p703 = scmp.lt.s32.totalorder %s36, 1
        %s704 = scalar_select %p703, %s36, 1
        %s705 = scalar_lea.vmem %s10, %s704
        %p706 = pneg %p292
        %p707 = pneg %p289
        %p708 = scmp.lt.s32.totalorder %s36, 1
        %s709 = scalar_select %p708, %s36, 1
        %s710 = scalar_lea.vmem %s11, %s709
        %p711 = pneg %p318
        %p712 = pneg %p315
        %p713 = scmp.lt.s32.totalorder %s36, 1
        %s714 = scalar_select %p713, %s36, 1
        %s715 = scalar_lea.vmem %s12, %s714
        %p716 = pneg %p344
        %p717 = pneg %p341
        %p718 = scmp.lt.s32.totalorder %s36, 1
        %s719 = scalar_select %p718, %s36, 1
        %s720 = smul.addr %s719, 4
        %s721 = smul.addr %s720, 8
        %s722 = scalar_lea.vmem %s13, %s721
        %p723 = pneg %p370
        %p724 = pneg %p367
        %p725 = scmp.lt.s32.totalorder %s36, 1
        %s726 = scalar_select %p725, %s36, 1
        %s727 = scalar_lea.vmem %s14, %s726
        %p728 = pneg %p396
        %p729 = pneg %p393
        %p730 = scmp.lt.s32.totalorder %s36, 1
        %s731 = scalar_select %p730, %s36, 1
        %s732 = smul.addr %s731, 16
        %s733 = smul.addr %s732, 8
        %s734 = scalar_lea.vmem %s15, %s733
        %p735 = pneg %p422
        %p736 = pneg %p419
        %p737 = scmp.lt.s32.totalorder %s36, 1
        %s738 = scalar_select %p737, %s36, 1
        %s739 = scalar_lea.vmem %s16, %s738
        %p740 = pneg %p448
        %p741 = pneg %p445
        %p742 = pneg %p469
        %p743 = pneg %p466
        %p744 = pneg %p490
        %p745 = pneg %p487
        %p746 = pneg %p516
        %p747 = pneg %p513
        %s748 = sand.u32 %s503, 1
        %s749 = scalar_lea.sflag [#allocation5], %s748
        %s750 = sand.u32 %s503, 1
        %s751 = smul.addr %s750, 64
        %s752 = scalar_lea.vmem [#allocation4], %s751
        %p753 = pneg %p537
        %p754 = pneg %p534
        %p755 = scmp.lt.s32.totalorder %s36, 1
        %s756 = scalar_select %p755, %s36, 1
        %s757 = scalar_lea.vmem %s5, %s756
        %p758 = scmp.lt.s32.totalorder %s36, 1
        %s759 = scalar_select %p758, %s36, 1
        %s760 = scalar_lea.vmem %s6, %s759
        %p761 = scmp.lt.s32.totalorder %s36, 1
        %s762 = scalar_select %p761, %s36, 1
        %s763 = smul.addr %s762, 4
        %s764 = smul.addr %s763, 8
        %s765 = scalar_lea.vmem %s7, %s764
        %p766 = scmp.lt.s32.totalorder %s36, 1
        %s767 = scalar_select %p766, %s36, 1
        %s768 = scalar_lea.vmem %s8, %s767
        %p769 = scmp.lt.s32.totalorder %s36, 1
        %s770 = scalar_select %p769, %s36, 1
        %s771 = smul.addr %s770, 4
        %s772 = smul.addr %s771, 8
        %s773 = scalar_lea.vmem %s9, %s772
        %p774 = scmp.lt.s32.totalorder %s36, 1
        %s775 = scalar_select %p774, %s36, 1
        %s776 = scalar_lea.vmem %s10, %s775
        %p777 = scmp.lt.s32.totalorder %s36, 1
        %s778 = scalar_select %p777, %s36, 1
        %s779 = scalar_lea.vmem %s11, %s778
        %p780 = scmp.lt.s32.totalorder %s36, 1
        %s781 = scalar_select %p780, %s36, 1
        %s782 = scalar_lea.vmem %s12, %s781
        %p783 = scmp.lt.s32.totalorder %s36, 1
        %s784 = scalar_select %p783, %s36, 1
        %s785 = smul.addr %s784, 4
        %s786 = smul.addr %s785, 8
        %s787 = scalar_lea.vmem %s13, %s786
        %p788 = scmp.lt.s32.totalorder %s36, 1
        %s789 = scalar_select %p788, %s36, 1
        %s790 = scalar_lea.vmem %s14, %s789
        %p791 = scmp.lt.s32.totalorder %s36, 1
        %s792 = scalar_select %p791, %s36, 1
        %s793 = smul.addr %s792, 16
        %s794 = smul.addr %s793, 8
        %s795 = scalar_lea.vmem %s15, %s794
        %p796 = scmp.lt.s32.totalorder %s36, 1
        %s797 = scalar_select %p796, %s36, 1
        %s798 = scalar_lea.vmem %s16, %s797
        %p799 = scmp.eq.s32.totalorder %s36, 0
        // Predicated region
        $region97: #{tpu_custom_call.1} parent=95 // pred_check
          %p800 = pneg %p799
        $region98: #{tpu_custom_call.1} parent=95 // pred_check_branch
          %802 = sbr.rel (%p800) target = $region100
        $region99: #{tpu_custom_call.1} parent=95 // pred_region
          %v803 = vld [vmem:[%s4] sm:$0xff]
          %v804 = vld [vmem:[%s4 + $0x8] sm:$0xff]
          %vm805 = vcmask 261120
          %806 = vst.msk [vmem:[#allocation2] sm:$0xff] %vm805, %v803
          %807 = vst.msk [vmem:[#allocation2 + $0x8] sm:$0xff] %vm805, %v804
        $region100: #{tpu_custom_call.1} parent=95 // pred_fallthru
          _
        %v808 = vld [vmem:[%s0] sm:$0x3]
        %v809 = vld [vmem:[%s1] sm:$0xff]
        %v810 = vld [vmem:[%s1 + $0x8] sm:$0xff]
        %v811 = vld [vmem:[%s2] sm:$0xff]
        %v812 = vld [vmem:[%s3] sm:$0xff]
        %v813 = vld [vmem:[#allocation2] sm:$0xff]
        %v814 = vld [vmem:[#allocation2 + $0x8] sm:$0xff]
        %v815 = vld [vmem:[%s757] sm:$0x1]
        %v816 = vld [vmem:[%s760] sm:$0x1]
        %vm817 = vcmask 261120
        %v818 = vsel %vm817, %v813, 0.0
        %819 = vadd.xlane.f32.xlu0 %v818
        %v820 = vpop.xlane.xlu0 %819
        %v821 = vsel %vm817, %v814, 0.0
        %822 = vadd.xlane.f32.xlu0 %v821
        %v823 = vpop.xlane.xlu0 %822
        %v824 = vrcp.pop 32.0
        %v825 = vmul.f32 %v820, %v824
        %v826 = vmul.f32 %v823, %v824
        %v827 = vsub.f32 %v813, %v825
        %v828 = vsub.f32 %v814, %v826
        %v829 = vmul.f32 %v827, %v827
        %v830 = vmul.f32 %v828, %v828
        %v831 = vsel %vm817, %v829, 0.0
        %832 = vadd.xlane.f32.xlu0 %v831
        %v833 = vpop.xlane.xlu0 %832
        %v834 = vsel %vm817, %v830, 0.0
        %835 = vadd.xlane.f32.xlu0 %v834
        %v836 = vpop.xlane.xlu0 %835
        %v837 = vmul.f32 %v833, %v824
        %v838 = vmul.f32 %v836, %v824
        %v839 = vadd.f32 %v837, 1e-12
        %v840 = vadd.f32 %v838, 1e-12
        %v841 = vrsqrt.pop %v839
        %v842 = vrsqrt.pop %v840
        %v843 = vmul.f32 %v827, %v841
        %v844 = vmul.f32 %v828, %v842
        %v846 = vlaneseq
        %v847 = vshrl.u32 %v846, 7
        %v848 = vsub.s32 0, %v847
        %v849 = vrot.slane %v815, %v848
        %v851 = vmul.f32 %v849, %v843
        %v852 = vmul.f32 %v849, %v844
        %v854 = vlaneseq
        %v855 = vshrl.u32 %v854, 7
        %v856 = vsub.s32 0, %v855
        %v857 = vrot.slane %v816, %v856
        %v859 = vadd.f32 %v851, %v857
        %v860 = vadd.f32 %v852, %v857
        %v861 = vld [vmem:[%s765] sm:$0xff]
        %v862 = vld [vmem:[%s765 + $0x8] sm:$0xff]
        %v863 = vld [vmem:[%s765 + $0x10] sm:$0xff]
        %v864 = vld [vmem:[%s765 + $0x18] sm:$0xff]
        %v865 = vld [vmem:[%s768] sm:$0x1]
        %v867 = vlaneseq
        %v868 = vshrl.u32 %v867, 7
        %v869 = vsub.s32 0, %v868
        %v870 = vrot.slane %v865, %v869
        %v873 = vsel %vm817, %v859, 0
        %v876 = vsel %vm817, %v860, 0
        %878 = vmatprep.subr.mxu0 0.0
        %879 = vmatpush1.msra.mxu0 %v861
        %880 = vmatprep.subr.mxu0 0.0
        %881 = vmatpush1.msra.mxu0 %v862
        %882 = vmatprep.subr.mxu0 0.0
        %883 = vmatpush1.msra.mxu0 %v863
        %884 = vmatprep.subr.mxu0 0.0
        %885 = vmatpush1.msra.mxu0 %v864
        %886 = vmatprep.subr.mxu0 0.0
        %887 = vmatpush1.msra.mxu0 0.0
        %888 = vmatprep.subr.mxu0 0.0
        %889 = vmatpush1.msra.mxu0 0.0
        %890 = vmatprep.subr.mxu0 0.0
        %891 = vmatpush1.msra.mxu0 0.0
        %892 = vmatprep.subr.mxu0 0.0
        %893 = vmatpush1.msra.mxu0 0.0
        %894 = vmatprep.subr.mxu0 0.0
        %895 = vmatpush1.msra.mxu0 0.0
        %896 = vmatprep.subr.mxu0 0.0
        %897 = vmatpush1.msra.mxu0 0.0
        %898 = vmatprep.subr.mxu0 0.0
        %899 = vmatpush1.msra.mxu0 0.0
        %900 = vmatprep.subr.mxu0 0.0
        %901 = vmatpush1.msra.mxu0 0.0
        %902 = vmatprep.subr.mxu0 0.0
        %903 = vmatpush1.msra.mxu0 0.0
        %904 = vmatprep.subr.mxu0 0.0
        %905 = vmatpush1.msra.mxu0 0.0
        %906 = vmatprep.subr.mxu0 0.0
        %907 = vmatpush1.msra.mxu0 0.0
        %908 = vmatprep.subr.mxu0 0.0
        %909 = vmatpush1.msra.mxu0 0.0
        %910 = vmatprep.subr.mxu0 0.0
        %911 = vmatpush1.msra.mxu0 0.0
        %912 = vmatprep.subr.mxu0 0.0
        %913 = vmatpush1.msra.mxu0 0.0
        %914 = vmatprep.subr.mxu0 0.0
        %915 = vmatpush1.msra.mxu0 0.0
        %916 = vmatprep.subr.mxu0 0.0
        %917 = vmatpush1.msra.mxu0 0.0
        %918 = vmatprep.subr.mxu0 0.0
        %919 = vmatpush1.msra.mxu0 0.0
        %920 = vmatprep.subr.mxu0 0.0
        %921 = vmatpush1.msra.mxu0 0.0
        %922 = vmatprep.subr.mxu0 0.0
        %923 = vmatpush1.msra.mxu0 0.0
        %924 = vmatprep.subr.mxu0 0.0
        %925 = vmatpush1.msra.mxu0 0.0
        %926 = vmatprep.subr.mxu0 0.0
        %927 = vmatpush1.msra.mxu0 0.0
        %928 = vmatprep.subr.mxu0 0.0
        %929 = vmatpush1.msra.mxu0 0.0
        %930 = vmatprep.subr.mxu0 0.0
        %931 = vmatpush1.msra.mxu0 0.0
        %932 = vmatprep.subr.mxu0 0.0
        %933 = vmatpush1.msra.mxu0 0.0
        %934 = vmatprep.subr.mxu0 0.0
        %935 = vmatpush1.msra.mxu0 0.0
        %936 = vmatprep.subr.mxu0 0.0
        %937 = vmatpush1.msra.mxu0 0.0
        %938 = vmatprep.subr.mxu0 0.0
        %939 = vmatpush1.msra.mxu0 0.0
        %940 = vmatprep.subr.mxu0 0.0
        %941 = vmatpush1.msra.mxu0 0.0
        %942 = vmatprep.mubr.f32.mxu0 0.0
        %943 = vmatmul.mubr.f32.gmra.mrb[0].mxu0 %v873
        %v944 = vpop.f32.mrb[0].mxu0
        %v945 = vadd.f32 %v870, %v944
        %v946 = vpop.f32.mrb[0].mxu0
        %947 = vmatprep.mubr.f32.mxu0 0.0
        %948 = vmatmul.mubr.f32.gmra.mrb[0].mxu0 %v876
        %v949 = vpop.f32.mrb[0].mxu0
        %v950 = vadd.f32 %v870, %v949
        %v951 = vpop.f32.mrb[0].mxu0
        %952 = vdwg.mxu0
        %v953 = vmul.f32 %v945, %v811
        %955 = vrot.lane.b32.xlu0 %v812, 4
        %v956 = vpop.permute.xlu0 %955
        %v958 = vmul.f32 %v945, %v956
        %960 = vrot.lane.b32.xlu0 %v958, 124
        %v961 = vpop.permute.xlu0 %960
        %v963 = vsub.f32 %v953, %v961
        %964 = vrot.lane.b32.xlu0 %v812, 124
        %v965 = vpop.permute.xlu0 %964
        %v967 = vmul.f32 %v945, %v965
        %969 = vrot.lane.b32.xlu0 %v967, 4
        %v970 = vpop.permute.xlu0 %969
        %v972 = vadd.f32 %v953, %v970
        %vm973 = vcmask 31744
        %v974 = vsel %vm973, %v963, %v972
        %v975 = vmul.f32 %v974, 0.35355338
        %977 = vrot.lane.b32.xlu0 %v811, 32
        %v978 = vpop.permute.xlu0 %977
        %v980 = vmul.f32 %v945, %v978
        %981 = vrot.lane.b32.xlu0 %v812, 36
        %v982 = vpop.permute.xlu0 %981
        %v984 = vmul.f32 %v945, %v982
        %986 = vrot.lane.b32.xlu0 %v984, 124
        %v987 = vpop.permute.xlu0 %986
        %v989 = vsub.f32 %v980, %v987
        %990 = vrot.lane.b32.xlu0 %v812, 28
        %v991 = vpop.permute.xlu0 %990
        %v993 = vmul.f32 %v945, %v991
        %995 = vrot.lane.b32.xlu0 %v993, 4
        %v996 = vpop.permute.xlu0 %995
        %v998 = vadd.f32 %v980, %v996
        %1000 = vrot.lane.b32.xlu0 %v989, 96
        %v1001 = vpop.permute.xlu0 %1000
        %1004 = vrot.lane.b32.xlu0 %v998, 96
        %v1005 = vpop.permute.xlu0 %1004
        %v1007 = vsel %vm973, %v1001, %v1005
        %v1008 = vlaneseq
        %v1009 = vshrl.u32 %v1008, 7
        %v1010 = vsub.s32 0, %v1009
        %v1011 = vrot.slane %v808, %v1010
        %vm1012 = vcmask 64512
        %v1014 = vsel %vm1012, %v975, 0
        %v1017 = vsel %vm1012, %v1007, 0
        %1019 = vmatprep.subr.mxu0 0.0
        %1020 = vmatpush1.xpose.msra.mxu0 %v1017
        %1021 = vmatprep.subr.mxu0 0.0
        %1022 = vmatpush1.xpose.msra.mxu0 0.0
        %1023 = vmatprep.subr.mxu0 0.0
        %1024 = vmatpush1.xpose.msra.mxu0 0.0
        %1025 = vmatprep.subr.mxu0 0.0
        %1026 = vmatpush1.xpose.msra.mxu0 0.0
        %1027 = vmatprep.subr.mxu0 0.0
        %1028 = vmatpush1.xpose.msra.mxu0 0.0
        %1029 = vmatprep.subr.mxu0 0.0
        %1030 = vmatpush1.xpose.msra.mxu0 0.0
        %1031 = vmatprep.subr.mxu0 0.0
        %1032 = vmatpush1.xpose.msra.mxu0 0.0
        %1033 = vmatprep.subr.mxu0 0.0
        %1034 = vmatpush1.xpose.msra.mxu0 0.0
        %1035 = vmatprep.subr.mxu0 0.0
        %1036 = vmatpush1.xpose.msra.mxu0 0.0
        %1037 = vmatprep.subr.mxu0 0.0
        %1038 = vmatpush1.xpose.msra.mxu0 0.0
        %1039 = vmatprep.subr.mxu0 0.0
        %1040 = vmatpush1.xpose.msra.mxu0 0.0
        %1041 = vmatprep.subr.mxu0 0.0
        %1042 = vmatpush1.xpose.msra.mxu0 0.0
        %1043 = vmatprep.subr.mxu0 0.0
        %1044 = vmatpush1.xpose.msra.mxu0 0.0
        %1045 = vmatprep.subr.mxu0 0.0
        %1046 = vmatpush1.xpose.msra.mxu0 0.0
        %1047 = vmatprep.subr.mxu0 0.0
        %1048 = vmatpush1.xpose.msra.mxu0 0.0
        %1049 = vmatprep.subr.mxu0 0.0
        %1050 = vmatpush1.xpose.msra.mxu0 0.0
        %1051 = vmatprep.subr.mxu0 0.0
        %1052 = vmatpush1.xpose.msra.mxu0 0.0
        %1053 = vmatprep.subr.mxu0 0.0
        %1054 = vmatpush1.xpose.msra.mxu0 0.0
        %1055 = vmatprep.subr.mxu0 0.0
        %1056 = vmatpush1.xpose.msra.mxu0 0.0
        %1057 = vmatprep.subr.mxu0 0.0
        %1058 = vmatpush1.xpose.msra.mxu0 0.0
        %1059 = vmatprep.subr.mxu0 0.0
        %1060 = vmatpush1.xpose.msra.mxu0 0.0
        %1061 = vmatprep.subr.mxu0 0.0
        %1062 = vmatpush1.xpose.msra.mxu0 0.0
        %1063 = vmatprep.subr.mxu0 0.0
        %1064 = vmatpush1.xpose.msra.mxu0 0.0
        %1065 = vmatprep.subr.mxu0 0.0
        %1066 = vmatpush1.xpose.msra.mxu0 0.0
        %1067 = vmatprep.subr.mxu0 0.0
        %1068 = vmatpush1.xpose.msra.mxu0 0.0
        %1069 = vmatprep.subr.mxu0 0.0
        %1070 = vmatpush1.xpose.msra.mxu0 0.0
        %1071 = vmatprep.subr.mxu0 0.0
        %1072 = vmatpush1.xpose.msra.mxu0 0.0
        %1073 = vmatprep.subr.mxu0 0.0
        %1074 = vmatpush1.xpose.msra.mxu0 0.0
        %1075 = vmatprep.subr.mxu0 0.0
        %1076 = vmatpush1.xpose.msra.mxu0 0.0
        %1077 = vmatprep.subr.mxu0 0.0
        %1078 = vmatpush1.xpose.msra.mxu0 0.0
        %1079 = vmatprep.subr.mxu0 0.0
        %1080 = vmatpush1.xpose.msra.mxu0 0.0
        %1081 = vmatprep.subr.mxu0 0.0
        %1082 = vmatpush1.xpose.msra.mxu0 0.0
        %1083 = vmatprep.mubr.f32.mxu0 0.0
        %1084 = vmatmul.mubr.f32.gmra.mrb[0].mxu0 %v1014
        %v1085 = vpop.f32.mrb[0].mxu0
        %v1086 = vadd.f32 %v1011, %v1085
        %v1087 = vpop.f32.mrb[0].mxu0
        %1088 = vdwg.mxu0
        %v1089 = vsel %vm1012, %v1086, -inf
        %1090 = vmax.xlane.f32.xlu0 %v1089
        %v1091 = vpop.xlane.xlu0 %1090
        %v1092 = vsub.f32 %v1086, %v1091
        %v1093 = vmul.f32 %v1092, 1.442695
        %v1094 = vpow.pop %v1093
        %v1095 = vsel %vm1012, %v1094, 0.0
        %1096 = vadd.xlane.f32.xlu0 %v1095
        %v1097 = vpop.xlane.xlu0 %1096
        %v1098 = vrcp.pop %v1097
        %v1099 = vmul.f32 %v1094, %v1098
        %v1100 = vmul.f32 %v1099, %v809
        %1101 = vst.msk [vmem:[%s752] sm:$0xff] %vm1012, %v1100
        %1103 = vrot.lane.b32.xlu0 %v945, 64
        %v1104 = vpop.permute.xlu0 %1103
        %v1107 = vsel %vm1012, %v1099, 0
        %1109 = vmatprep.subr.mxu0 0.0
        %1110 = vmatpush1.msra.mxu0 %v1104
        %1111 = vmatprep.subr.mxu0 0.0
        %1112 = vmatpush1.msra.mxu0 0.0
        %1113 = vmatprep.subr.mxu0 0.0
        %1114 = vmatpush1.msra.mxu0 0.0
        %1115 = vmatprep.subr.mxu0 0.0
        %1116 = vmatpush1.msra.mxu0 0.0
        %1117 = vmatprep.subr.mxu0 0.0
        %1118 = vmatpush1.msra.mxu0 0.0
        %1119 = vmatprep.subr.mxu0 0.0
        %1120 = vmatpush1.msra.mxu0 0.0
        %1121 = vmatprep.subr.mxu0 0.0
        %1122 = vmatpush1.msra.mxu0 0.0
        %1123 = vmatprep.subr.mxu0 0.0
        %1124 = vmatpush1.msra.mxu0 0.0
        %1125 = vmatprep.subr.mxu0 0.0
        %1126 = vmatpush1.msra.mxu0 0.0
        %1127 = vmatprep.subr.mxu0 0.0
        %1128 = vmatpush1.msra.mxu0 0.0
        %1129 = vmatprep.subr.mxu0 0.0
        %1130 = vmatpush1.msra.mxu0 0.0
        %1131 = vmatprep.subr.mxu0 0.0
        %1132 = vmatpush1.msra.mxu0 0.0
        %1133 = vmatprep.subr.mxu0 0.0
        %1134 = vmatpush1.msra.mxu0 0.0
        %1135 = vmatprep.subr.mxu0 0.0
        %1136 = vmatpush1.msra.mxu0 0.0
        %1137 = vmatprep.subr.mxu0 0.0
        %1138 = vmatpush1.msra.mxu0 0.0
        %1139 = vmatprep.subr.mxu0 0.0
        %1140 = vmatpush1.msra.mxu0 0.0
        %1141 = vmatprep.subr.mxu0 0.0
        %1142 = vmatpush1.msra.mxu0 0.0
        %1143 = vmatprep.subr.mxu0 0.0
        %1144 = vmatpush1.msra.mxu0 0.0
        %1145 = vmatprep.subr.mxu0 0.0
        %1146 = vmatpush1.msra.mxu0 0.0
        %1147 = vmatprep.subr.mxu0 0.0
        %1148 = vmatpush1.msra.mxu0 0.0
        %1149 = vmatprep.subr.mxu0 0.0
        %1150 = vmatpush1.msra.mxu0 0.0
        %1151 = vmatprep.subr.mxu0 0.0
        %1152 = vmatpush1.msra.mxu0 0.0
        %1153 = vmatprep.subr.mxu0 0.0
        %1154 = vmatpush1.msra.mxu0 0.0
        %1155 = vmatprep.subr.mxu0 0.0
        %1156 = vmatpush1.msra.mxu0 0.0
        %1157 = vmatprep.subr.mxu0 0.0
        %1158 = vmatpush1.msra.mxu0 0.0
        %1159 = vmatprep.subr.mxu0 0.0
        %1160 = vmatpush1.msra.mxu0 0.0
        %1161 = vmatprep.subr.mxu0 0.0
        %1162 = vmatpush1.msra.mxu0 0.0
        %1163 = vmatprep.subr.mxu0 0.0
        %1164 = vmatpush1.msra.mxu0 0.0
        %1165 = vmatprep.subr.mxu0 0.0
        %1166 = vmatpush1.msra.mxu0 0.0
        %1167 = vmatprep.subr.mxu0 0.0
        %1168 = vmatpush1.msra.mxu0 0.0
        %1169 = vmatprep.subr.mxu0 0.0
        %1170 = vmatpush1.msra.mxu0 0.0
        %1171 = vmatprep.subr.mxu0 0.0
        %1172 = vmatpush1.msra.mxu0 0.0
        %1173 = vmatprep.mubr.f32.mxu0 0.0
        %1174 = vmatmul.mubr.f32.gmra.mrb[0].mxu0 %v1107
        %v1175 = vpop.f32.mrb[0].mxu0
        %v1176 = vadd.f32 0.0, %v1175
        %v1177 = vpop.f32.mrb[0].mxu0
        %1178 = vdwg.mxu0
        %1179 = vst.msk [vmem:[#allocation3] sm:$0xff] %vm1012, %v1176
        %1180 = vrot.lane.b32.xlu0 %v811, 8
        %v1181 = vpop.permute.xlu0 %1180
        %v1183 = vmul.f32 %v945, %v1181
        %1184 = vrot.lane.b32.xlu0 %v812, 12
        %v1185 = vpop.permute.xlu0 %1184
        %v1187 = vmul.f32 %v945, %v1185
        %1189 = vrot.lane.b32.xlu0 %v1187, 124
        %v1190 = vpop.permute.xlu0 %1189
        %v1192 = vsub.f32 %v1183, %v1190
        %1193 = vrot.lane.b32.xlu0 %v958, 4
        %v1194 = vpop.permute.xlu0 %1193
        %v1196 = vadd.f32 %v1183, %v1194
        %1198 = vrot.lane.b32.xlu0 %v1192, 120
        %v1199 = vpop.permute.xlu0 %1198
        %1202 = vrot.lane.b32.xlu0 %v1196, 120
        %v1203 = vpop.permute.xlu0 %1202
        %v1205 = vsel %vm973, %v1199, %v1203
        %v1206 = vmul.f32 %v1205, 0.35355338
        %1207 = vrot.lane.b32.xlu0 %v811, 40
        %v1208 = vpop.permute.xlu0 %1207
        %v1210 = vmul.f32 %v945, %v1208
        %1211 = vrot.lane.b32.xlu0 %v812, 44
        %v1212 = vpop.permute.xlu0 %1211
        %v1214 = vmul.f32 %v945, %v1212
        %1216 = vrot.lane.b32.xlu0 %v1214, 124
        %v1217 = vpop.permute.xlu0 %1216
        %v1219 = vsub.f32 %v1210, %v1217
        %1220 = vrot.lane.b32.xlu0 %v984, 4
        %v1221 = vpop.permute.xlu0 %1220
        %v1223 = vadd.f32 %v1210, %v1221
        %1225 = vrot.lane.b32.xlu0 %v1219, 88
        %v1226 = vpop.permute.xlu0 %1225
        %1229 = vrot.lane.b32.xlu0 %v1223, 88
        %v1230 = vpop.permute.xlu0 %1229
        %v1232 = vsel %vm973, %v1226, %v1230
        %v1234 = vsel %vm1012, %v1206, 0
        %v1237 = vsel %vm1012, %v1232, 0
        %1239 = vmatprep.subr.mxu0 0.0
        %1240 = vmatpush1.xpose.msra.mxu0 %v1237
        %1241 = vmatprep.subr.mxu0 0.0
        %1242 = vmatpush1.xpose.msra.mxu0 0.0
        %1243 = vmatprep.subr.mxu0 0.0
        %1244 = vmatpush1.xpose.msra.mxu0 0.0
        %1245 = vmatprep.subr.mxu0 0.0
        %1246 = vmatpush1.xpose.msra.mxu0 0.0
        %1247 = vmatprep.subr.mxu0 0.0
        %1248 = vmatpush1.xpose.msra.mxu0 0.0
        %1249 = vmatprep.subr.mxu0 0.0
        %1250 = vmatpush1.xpose.msra.mxu0 0.0
        %1251 = vmatprep.subr.mxu0 0.0
        %1252 = vmatpush1.xpose.msra.mxu0 0.0
        %1253 = vmatprep.subr.mxu0 0.0
        %1254 = vmatpush1.xpose.msra.mxu0 0.0
        %1255 = vmatprep.subr.mxu0 0.0
        %1256 = vmatpush1.xpose.msra.mxu0 0.0
        %1257 = vmatprep.subr.mxu0 0.0
        %1258 = vmatpush1.xpose.msra.mxu0 0.0
        %1259 = vmatprep.subr.mxu0 0.0
        %1260 = vmatpush1.xpose.msra.mxu0 0.0
        %1261 = vmatprep.subr.mxu0 0.0
        %1262 = vmatpush1.xpose.msra.mxu0 0.0
        %1263 = vmatprep.subr.mxu0 0.0
        %1264 = vmatpush1.xpose.msra.mxu0 0.0
        %1265 = vmatprep.subr.mxu0 0.0
        %1266 = vmatpush1.xpose.msra.mxu0 0.0
        %1267 = vmatprep.subr.mxu0 0.0
        %1268 = vmatpush1.xpose.msra.mxu0 0.0
        %1269 = vmatprep.subr.mxu0 0.0
        %1270 = vmatpush1.xpose.msra.mxu0 0.0
        %1271 = vmatprep.subr.mxu0 0.0
        %1272 = vmatpush1.xpose.msra.mxu0 0.0
        %1273 = vmatprep.subr.mxu0 0.0
        %1274 = vmatpush1.xpose.msra.mxu0 0.0
        %1275 = vmatprep.subr.mxu0 0.0
        %1276 = vmatpush1.xpose.msra.mxu0 0.0
        %1277 = vmatprep.subr.mxu0 0.0
        %1278 = vmatpush1.xpose.msra.mxu0 0.0
        %1279 = vmatprep.subr.mxu0 0.0
        %1280 = vmatpush1.xpose.msra.mxu0 0.0
        %1281 = vmatprep.subr.mxu0 0.0
        %1282 = vmatpush1.xpose.msra.mxu0 0.0
        %1283 = vmatprep.subr.mxu0 0.0
        %1284 = vmatpush1.xpose.msra.mxu0 0.0
        %1285 = vmatprep.subr.mxu0 0.0
        %1286 = vmatpush1.xpose.msra.mxu0 0.0
        %1287 = vmatprep.subr.mxu0 0.0
        %1288 = vmatpush1.xpose.msra.mxu0 0.0
        %1289 = vmatprep.subr.mxu0 0.0
        %1290 = vmatpush1.xpose.msra.mxu0 0.0
        %1291 = vmatprep.subr.mxu0 0.0
        %1292 = vmatpush1.xpose.msra.mxu0 0.0
        %1293 = vmatprep.subr.mxu0 0.0
        %1294 = vmatpush1.xpose.msra.mxu0 0.0
        %1295 = vmatprep.subr.mxu0 0.0
        %1296 = vmatpush1.xpose.msra.mxu0 0.0
        %1297 = vmatprep.subr.mxu0 0.0
        %1298 = vmatpush1.xpose.msra.mxu0 0.0
        %1299 = vmatprep.subr.mxu0 0.0
        %1300 = vmatpush1.xpose.msra.mxu0 0.0
        %1301 = vmatprep.subr.mxu0 0.0
        %1302 = vmatpush1.xpose.msra.mxu0 0.0
        %1303 = vmatprep.mubr.f32.mxu0 0.0
        %1304 = vmatmul.mubr.f32.gmra.mrb[0].mxu0 %v1234
        %v1305 = vpop.f32.mrb[0].mxu0
        %v1306 = vadd.f32 %v1011, %v1305
        %v1307 = vpop.f32.mrb[0].mxu0
        %1308 = vdwg.mxu0
        %v1309 = vsel %vm1012, %v1306, -inf
        %1310 = vmax.xlane.f32.xlu0 %v1309
        %v1311 = vpop.xlane.xlu0 %1310
        %v1312 = vsub.f32 %v1306, %v1311
        %v1313 = vmul.f32 %v1312, 1.442695
        %v1314 = vpow.pop %v1313
        %v1315 = vsel %vm1012, %v1314, 0.0
        %1316 = vadd.xlane.f32.xlu0 %v1315
        %v1317 = vpop.xlane.xlu0 %1316
        %v1318 = vrcp.pop %v1317
        %v1319 = vmul.f32 %v1314, %v1318
        %v1320 = vmul.f32 %v1319, %v809
        %s1321 = scalar_lea.vmem %s752, 8 [#allocation4]
        %1322 = vst.msk [vmem:[%s1321] sm:$0xff] %vm1012, %v1320
        %1323 = vrot.lane.b32.xlu0 %v945, 56
        %v1324 = vpop.permute.xlu0 %1323
        %v1327 = vsel %vm1012, %v1319, 0
        %1329 = vmatprep.subr.mxu0 0.0
        %1330 = vmatpush1.msra.mxu0 %v1324
        %1331 = vmatprep.subr.mxu0 0.0
        %1332 = vmatpush1.msra.mxu0 0.0
        %1333 = vmatprep.subr.mxu0 0.0
        %1334 = vmatpush1.msra.mxu0 0.0
        %1335 = vmatprep.subr.mxu0 0.0
        %1336 = vmatpush1.msra.mxu0 0.0
        %1337 = vmatprep.subr.mxu0 0.0
        %1338 = vmatpush1.msra.mxu0 0.0
        %1339 = vmatprep.subr.mxu0 0.0
        %1340 = vmatpush1.msra.mxu0 0.0
        %1341 = vmatprep.subr.mxu0 0.0
        %1342 = vmatpush1.msra.mxu0 0.0
        %1343 = vmatprep.subr.mxu0 0.0
        %1344 = vmatpush1.msra.mxu0 0.0
        %1345 = vmatprep.subr.mxu0 0.0
        %1346 = vmatpush1.msra.mxu0 0.0
        %1347 = vmatprep.subr.mxu0 0.0
        %1348 = vmatpush1.msra.mxu0 0.0
        %1349 = vmatprep.subr.mxu0 0.0
        %1350 = vmatpush1.msra.mxu0 0.0
        %1351 = vmatprep.subr.mxu0 0.0
        %1352 = vmatpush1.msra.mxu0 0.0
        %1353 = vmatprep.subr.mxu0 0.0
        %1354 = vmatpush1.msra.mxu0 0.0
        %1355 = vmatprep.subr.mxu0 0.0
        %1356 = vmatpush1.msra.mxu0 0.0
        %1357 = vmatprep.subr.mxu0 0.0
        %1358 = vmatpush1.msra.mxu0 0.0
        %1359 = vmatprep.subr.mxu0 0.0
        %1360 = vmatpush1.msra.mxu0 0.0
        %1361 = vmatprep.subr.mxu0 0.0
        %1362 = vmatpush1.msra.mxu0 0.0
        %1363 = vmatprep.subr.mxu0 0.0
        %1364 = vmatpush1.msra.mxu0 0.0
        %1365 = vmatprep.subr.mxu0 0.0
        %1366 = vmatpush1.msra.mxu0 0.0
        %1367 = vmatprep.subr.mxu0 0.0
        %1368 = vmatpush1.msra.mxu0 0.0
        %1369 = vmatprep.subr.mxu0 0.0
        %1370 = vmatpush1.msra.mxu0 0.0
        %1371 = vmatprep.subr.mxu0 0.0
        %1372 = vmatpush1.msra.mxu0 0.0
        %1373 = vmatprep.subr.mxu0 0.0
        %1374 = vmatpush1.msra.mxu0 0.0
        %1375 = vmatprep.subr.mxu0 0.0
        %1376 = vmatpush1.msra.mxu0 0.0
        %1377 = vmatprep.subr.mxu0 0.0
        %1378 = vmatpush1.msra.mxu0 0.0
        %1379 = vmatprep.subr.mxu0 0.0
        %1380 = vmatpush1.msra.mxu0 0.0
        %1381 = vmatprep.subr.mxu0 0.0
        %1382 = vmatpush1.msra.mxu0 0.0
        %1383 = vmatprep.subr.mxu0 0.0
        %1384 = vmatpush1.msra.mxu0 0.0
        %1385 = vmatprep.subr.mxu0 0.0
        %1386 = vmatpush1.msra.mxu0 0.0
        %1387 = vmatprep.subr.mxu0 0.0
        %1388 = vmatpush1.msra.mxu0 0.0
        %1389 = vmatprep.subr.mxu0 0.0
        %1390 = vmatpush1.msra.mxu0 0.0
        %1391 = vmatprep.subr.mxu0 0.0
        %1392 = vmatpush1.msra.mxu0 0.0
        %1393 = vmatprep.mubr.f32.mxu0 0.0
        %1394 = vmatmul.mubr.f32.gmra.mrb[0].mxu0 %v1327
        %v1395 = vpop.f32.mrb[0].mxu0
        %v1396 = vadd.f32 0.0, %v1395
        %v1397 = vpop.f32.mrb[0].mxu0
        %1398 = vdwg.mxu0
        %1400 = vrot.lane.b32.xlu0 %v1396, 8
        %v1401 = vpop.permute.xlu0 %1400
        %vm1403 = vcmask 130112
        %1404 = vst.msk [vmem:[#allocation3] sm:$0xff] %vm1403, %v1401
        %1405 = vrot.lane.b32.xlu0 %v811, 16
        %v1406 = vpop.permute.xlu0 %1405
        %v1408 = vmul.f32 %v945, %v1406
        %1409 = vrot.lane.b32.xlu0 %v812, 20
        %v1410 = vpop.permute.xlu0 %1409
        %v1412 = vmul.f32 %v945, %v1410
        %1414 = vrot.lane.b32.xlu0 %v1412, 124
        %v1415 = vpop.permute.xlu0 %1414
        %v1417 = vsub.f32 %v1408, %v1415
        %1418 = vrot.lane.b32.xlu0 %v1187, 4
        %v1419 = vpop.permute.xlu0 %1418
        %v1421 = vadd.f32 %v1408, %v1419
        %1423 = vrot.lane.b32.xlu0 %v1417, 112
        %v1424 = vpop.permute.xlu0 %1423
        %1427 = vrot.lane.b32.xlu0 %v1421, 112
        %v1428 = vpop.permute.xlu0 %1427
        %v1430 = vsel %vm973, %v1424, %v1428
        %v1431 = vmul.f32 %v1430, 0.35355338
        %1432 = vrot.lane.b32.xlu0 %v811, 48
        %v1433 = vpop.permute.xlu0 %1432
        %v1435 = vmul.f32 %v945, %v1433
        %1436 = vrot.lane.b32.xlu0 %v812, 52
        %v1437 = vpop.permute.xlu0 %1436
        %v1439 = vmul.f32 %v945, %v1437
        %1441 = vrot.lane.b32.xlu0 %v1439, 124
        %v1442 = vpop.permute.xlu0 %1441
        %v1444 = vsub.f32 %v1435, %v1442
        %1445 = vrot.lane.b32.xlu0 %v1214, 4
        %v1446 = vpop.permute.xlu0 %1445
        %v1448 = vadd.f32 %v1435, %v1446
        %1450 = vrot.lane.b32.xlu0 %v1444, 80
        %v1451 = vpop.permute.xlu0 %1450
        %1454 = vrot.lane.b32.xlu0 %v1448, 80
        %v1455 = vpop.permute.xlu0 %1454
        %v1457 = vsel %vm973, %v1451, %v1455
        %v1459 = vsel %vm1012, %v1431, 0
        %v1462 = vsel %vm1012, %v1457, 0
        %1464 = vmatprep.subr.mxu0 0.0
        %1465 = vmatpush1.xpose.msra.mxu0 %v1462
        %1466 = vmatprep.subr.mxu0 0.0
        %1467 = vmatpush1.xpose.msra.mxu0 0.0
        %1468 = vmatprep.subr.mxu0 0.0
        %1469 = vmatpush1.xpose.msra.mxu0 0.0
        %1470 = vmatprep.subr.mxu0 0.0
        %1471 = vmatpush1.xpose.msra.mxu0 0.0
        %1472 = vmatprep.subr.mxu0 0.0
        %1473 = vmatpush1.xpose.msra.mxu0 0.0
        %1474 = vmatprep.subr.mxu0 0.0
        %1475 = vmatpush1.xpose.msra.mxu0 0.0
        %1476 = vmatprep.subr.mxu0 0.0
        %1477 = vmatpush1.xpose.msra.mxu0 0.0
        %1478 = vmatprep.subr.mxu0 0.0
        %1479 = vmatpush1.xpose.msra.mxu0 0.0
        %1480 = vmatprep.subr.mxu0 0.0
        %1481 = vmatpush1.xpose.msra.mxu0 0.0
        %1482 = vmatprep.subr.mxu0 0.0
        %1483 = vmatpush1.xpose.msra.mxu0 0.0
        %1484 = vmatprep.subr.mxu0 0.0
        %1485 = vmatpush1.xpose.msra.mxu0 0.0
        %1486 = vmatprep.subr.mxu0 0.0
        %1487 = vmatpush1.xpose.msra.mxu0 0.0
        %1488 = vmatprep.subr.mxu0 0.0
        %1489 = vmatpush1.xpose.msra.mxu0 0.0
        %1490 = vmatprep.subr.mxu0 0.0
        %1491 = vmatpush1.xpose.msra.mxu0 0.0
        %1492 = vmatprep.subr.mxu0 0.0
        %1493 = vmatpush1.xpose.msra.mxu0 0.0
        %1494 = vmatprep.subr.mxu0 0.0
        %1495 = vmatpush1.xpose.msra.mxu0 0.0
        %1496 = vmatprep.subr.mxu0 0.0
        %1497 = vmatpush1.xpose.msra.mxu0 0.0
        %1498 = vmatprep.subr.mxu0 0.0
        %1499 = vmatpush1.xpose.msra.mxu0 0.0
        %1500 = vmatprep.subr.mxu0 0.0
        %1501 = vmatpush1.xpose.msra.mxu0 0.0
        %1502 = vmatprep.subr.mxu0 0.0
        %1503 = vmatpush1.xpose.msra.mxu0 0.0
        %1504 = vmatprep.subr.mxu0 0.0
        %1505 = vmatpush1.xpose.msra.mxu0 0.0
        %1506 = vmatprep.subr.mxu0 0.0
        %1507 = vmatpush1.xpose.msra.mxu0 0.0
        %1508 = vmatprep.subr.mxu0 0.0
        %1509 = vmatpush1.xpose.msra.mxu0 0.0
        %1510 = vmatprep.subr.mxu0 0.0
        %1511 = vmatpush1.xpose.msra.mxu0 0.0
        %1512 = vmatprep.subr.mxu0 0.0
        %1513 = vmatpush1.xpose.msra.mxu0 0.0
        %1514 = vmatprep.subr.mxu0 0.0
        %1515 = vmatpush1.xpose.msra.mxu0 0.0
        %1516 = vmatprep.subr.mxu0 0.0
        %1517 = vmatpush1.xpose.msra.mxu0 0.0
        %1518 = vmatprep.subr.mxu0 0.0
        %1519 = vmatpush1.xpose.msra.mxu0 0.0
        %1520 = vmatprep.subr.mxu0 0.0
        %1521 = vmatpush1.xpose.msra.mxu0 0.0
        %1522 = vmatprep.subr.mxu0 0.0
        %1523 = vmatpush1.xpose.msra.mxu0 0.0
        %1524 = vmatprep.subr.mxu0 0.0
        %1525 = vmatpush1.xpose.msra.mxu0 0.0
        %1526 = vmatprep.subr.mxu0 0.0
        %1527 = vmatpush1.xpose.msra.mxu0 0.0
        %1528 = vmatprep.mubr.f32.mxu0 0.0
        %1529 = vmatmul.mubr.f32.gmra.mrb[0].mxu0 %v1459
        %v1530 = vpop.f32.mrb[0].mxu0
        %v1531 = vadd.f32 %v1011, %v1530
        %v1532 = vpop.f32.mrb[0].mxu0
        %1533 = vdwg.mxu0
        %v1534 = vsel %vm1012, %v1531, -inf
        %1535 = vmax.xlane.f32.xlu0 %v1534
        %v1536 = vpop.xlane.xlu0 %1535
        %v1537 = vsub.f32 %v1531, %v1536
        %v1538 = vmul.f32 %v1537, 1.442695
        %v1539 = vpow.pop %v1538
        %v1540 = vsel %vm1012, %v1539, 0.0
        %1541 = vadd.xlane.f32.xlu0 %v1540
        %v1542 = vpop.xlane.xlu0 %1541
        %v1543 = vrcp.pop %v1542
        %v1544 = vmul.f32 %v1539, %v1543
        %v1545 = vmul.f32 %v1544, %v809
        %s1546 = scalar_lea.vmem %s752, 16 [#allocation4]
        %1547 = vst.msk [vmem:[%s1546] sm:$0xff] %vm1012, %v1545
        %1548 = vrot.lane.b32.xlu0 %v945, 48
        %v1549 = vpop.permute.xlu0 %1548
        %v1552 = vsel %vm1012, %v1544, 0
        %1554 = vmatprep.subr.mxu0 0.0
        %1555 = vmatpush1.msra.mxu0 %v1549
        %1556 = vmatprep.subr.mxu0 0.0
        %1557 = vmatpush1.msra.mxu0 0.0
        %1558 = vmatprep.subr.mxu0 0.0
        %1559 = vmatpush1.msra.mxu0 0.0
        %1560 = vmatprep.subr.mxu0 0.0
        %1561 = vmatpush1.msra.mxu0 0.0
        %1562 = vmatprep.subr.mxu0 0.0
        %1563 = vmatpush1.msra.mxu0 0.0
        %1564 = vmatprep.subr.mxu0 0.0
        %1565 = vmatpush1.msra.mxu0 0.0
        %1566 = vmatprep.subr.mxu0 0.0
        %1567 = vmatpush1.msra.mxu0 0.0
        %1568 = vmatprep.subr.mxu0 0.0
        %1569 = vmatpush1.msra.mxu0 0.0
        %1570 = vmatprep.subr.mxu0 0.0
        %1571 = vmatpush1.msra.mxu0 0.0
        %1572 = vmatprep.subr.mxu0 0.0
        %1573 = vmatpush1.msra.mxu0 0.0
        %1574 = vmatprep.subr.mxu0 0.0
        %1575 = vmatpush1.msra.mxu0 0.0
        %1576 = vmatprep.subr.mxu0 0.0
        %1577 = vmatpush1.msra.mxu0 0.0
        %1578 = vmatprep.subr.mxu0 0.0
        %1579 = vmatpush1.msra.mxu0 0.0
        %1580 = vmatprep.subr.mxu0 0.0
        %1581 = vmatpush1.msra.mxu0 0.0
        %1582 = vmatprep.subr.mxu0 0.0
        %1583 = vmatpush1.msra.mxu0 0.0
        %1584 = vmatprep.subr.mxu0 0.0
        %1585 = vmatpush1.msra.mxu0 0.0
        %1586 = vmatprep.subr.mxu0 0.0
        %1587 = vmatpush1.msra.mxu0 0.0
        %1588 = vmatprep.subr.mxu0 0.0
        %1589 = vmatpush1.msra.mxu0 0.0
        %1590 = vmatprep.subr.mxu0 0.0
        %1591 = vmatpush1.msra.mxu0 0.0
        %1592 = vmatprep.subr.mxu0 0.0
        %1593 = vmatpush1.msra.mxu0 0.0
        %1594 = vmatprep.subr.mxu0 0.0
        %1595 = vmatpush1.msra.mxu0 0.0
        %1596 = vmatprep.subr.mxu0 0.0
        %1597 = vmatpush1.msra.mxu0 0.0
        %1598 = vmatprep.subr.mxu0 0.0
        %1599 = vmatpush1.msra.mxu0 0.0
        %1600 = vmatprep.subr.mxu0 0.0
        %1601 = vmatpush1.msra.mxu0 0.0
        %1602 = vmatprep.subr.mxu0 0.0
        %1603 = vmatpush1.msra.mxu0 0.0
        %1604 = vmatprep.subr.mxu0 0.0
        %1605 = vmatpush1.msra.mxu0 0.0
        %1606 = vmatprep.subr.mxu0 0.0
        %1607 = vmatpush1.msra.mxu0 0.0
        %1608 = vmatprep.subr.mxu0 0.0
        %1609 = vmatpush1.msra.mxu0 0.0
        %1610 = vmatprep.subr.mxu0 0.0
        %1611 = vmatpush1.msra.mxu0 0.0
        %1612 = vmatprep.subr.mxu0 0.0
        %1613 = vmatpush1.msra.mxu0 0.0
        %1614 = vmatprep.subr.mxu0 0.0
        %1615 = vmatpush1.msra.mxu0 0.0
        %1616 = vmatprep.subr.mxu0 0.0
        %1617 = vmatpush1.msra.mxu0 0.0
        %1618 = vmatprep.mubr.f32.mxu0 0.0
        %1619 = vmatmul.mubr.f32.gmra.mrb[0].mxu0 %v1552
        %v1620 = vpop.f32.mrb[0].mxu0
        %v1621 = vadd.f32 0.0, %v1620
        %v1622 = vpop.f32.mrb[0].mxu0
        %1623 = vdwg.mxu0
        %1625 = vrot.lane.b32.xlu0 %v1621, 16
        %v1626 = vpop.permute.xlu0 %1625
        %vm1628 = vcmask 195712
        %1629 = vst.msk [vmem:[#allocation3] sm:$0xff] %vm1628, %v1626
        %1630 = vrot.lane.b32.xlu0 %v811, 24
        %v1631 = vpop.permute.xlu0 %1630
        %v1633 = vmul.f32 %v945, %v1631
        %1634 = vrot.lane.b32.xlu0 %v993, 124
        %v1635 = vpop.permute.xlu0 %1634
        %v1637 = vsub.f32 %v1633, %v1635
        %1638 = vrot.lane.b32.xlu0 %v1412, 4
        %v1639 = vpop.permute.xlu0 %1638
        %v1641 = vadd.f32 %v1633, %v1639
        %1643 = vrot.lane.b32.xlu0 %v1637, 104
        %v1644 = vpop.permute.xlu0 %1643
        %1647 = vrot.lane.b32.xlu0 %v1641, 104
        %v1648 = vpop.permute.xlu0 %1647
        %v1650 = vsel %vm973, %v1644, %v1648
        %v1651 = vmul.f32 %v1650, 0.35355338
        %1652 = vrot.lane.b32.xlu0 %v811, 56
        %v1653 = vpop.permute.xlu0 %1652
        %v1655 = vmul.f32 %v945, %v1653
        %1656 = vrot.lane.b32.xlu0 %v812, 60
        %v1657 = vpop.permute.xlu0 %1656
        %v1659 = vmul.f32 %v945, %v1657
        %1661 = vrot.lane.b32.xlu0 %v1659, 124
        %v1662 = vpop.permute.xlu0 %1661
        %v1664 = vsub.f32 %v1655, %v1662
        %1665 = vrot.lane.b32.xlu0 %v1439, 4
        %v1666 = vpop.permute.xlu0 %1665
        %v1668 = vadd.f32 %v1655, %v1666
        %1670 = vrot.lane.b32.xlu0 %v1664, 72
        %v1671 = vpop.permute.xlu0 %1670
        %1674 = vrot.lane.b32.xlu0 %v1668, 72
        %v1675 = vpop.permute.xlu0 %1674
        %v1677 = vsel %vm973, %v1671, %v1675
        %v1679 = vsel %vm1012, %v1651, 0
        %v1682 = vsel %vm1012, %v1677, 0
        %1684 = vmatprep.subr.mxu0 0.0
        %1685 = vmatpush1.xpose.msra.mxu0 %v1682
        %1686 = vmatprep.subr.mxu0 0.0
        %1687 = vmatpush1.xpose.msra.mxu0 0.0
        %1688 = vmatprep.subr.mxu0 0.0
        %1689 = vmatpush1.xpose.msra.mxu0 0.0
        %1690 = vmatprep.subr.mxu0 0.0
        %1691 = vmatpush1.xpose.msra.mxu0 0.0
        %1692 = vmatprep.subr.mxu0 0.0
        %1693 = vmatpush1.xpose.msra.mxu0 0.0
        %1694 = vmatprep.subr.mxu0 0.0
        %1695 = vmatpush1.xpose.msra.mxu0 0.0
        %1696 = vmatprep.subr.mxu0 0.0
        %1697 = vmatpush1.xpose.msra.mxu0 0.0
        %1698 = vmatprep.subr.mxu0 0.0
        %1699 = vmatpush1.xpose.msra.mxu0 0.0
        %1700 = vmatprep.subr.mxu0 0.0
        %1701 = vmatpush1.xpose.msra.mxu0 0.0
        %1702 = vmatprep.subr.mxu0 0.0
        %1703 = vmatpush1.xpose.msra.mxu0 0.0
        %1704 = vmatprep.subr.mxu0 0.0
        %1705 = vmatpush1.xpose.msra.mxu0 0.0
        %1706 = vmatprep.subr.mxu0 0.0
        %1707 = vmatpush1.xpose.msra.mxu0 0.0
        %1708 = vmatprep.subr.mxu0 0.0
        %1709 = vmatpush1.xpose.msra.mxu0 0.0
        %1710 = vmatprep.subr.mxu0 0.0
        %1711 = vmatpush1.xpose.msra.mxu0 0.0
        %1712 = vmatprep.subr.mxu0 0.0
        %1713 = vmatpush1.xpose.msra.mxu0 0.0
        %1714 = vmatprep.subr.mxu0 0.0
        %1715 = vmatpush1.xpose.msra.mxu0 0.0
        %1716 = vmatprep.subr.mxu0 0.0
        %1717 = vmatpush1.xpose.msra.mxu0 0.0
        %1718 = vmatprep.subr.mxu0 0.0
        %1719 = vmatpush1.xpose.msra.mxu0 0.0
        %1720 = vmatprep.subr.mxu0 0.0
        %1721 = vmatpush1.xpose.msra.mxu0 0.0
        %1722 = vmatprep.subr.mxu0 0.0
        %1723 = vmatpush1.xpose.msra.mxu0 0.0
        %1724 = vmatprep.subr.mxu0 0.0
        %1725 = vmatpush1.xpose.msra.mxu0 0.0
        %1726 = vmatprep.subr.mxu0 0.0
        %1727 = vmatpush1.xpose.msra.mxu0 0.0
        %1728 = vmatprep.subr.mxu0 0.0
        %1729 = vmatpush1.xpose.msra.mxu0 0.0
        %1730 = vmatprep.subr.mxu0 0.0
        %1731 = vmatpush1.xpose.msra.mxu0 0.0
        %1732 = vmatprep.subr.mxu0 0.0
        %1733 = vmatpush1.xpose.msra.mxu0 0.0
        %1734 = vmatprep.subr.mxu0 0.0
        %1735 = vmatpush1.xpose.msra.mxu0 0.0
        %1736 = vmatprep.subr.mxu0 0.0
        %1737 = vmatpush1.xpose.msra.mxu0 0.0
        %1738 = vmatprep.subr.mxu0 0.0
        %1739 = vmatpush1.xpose.msra.mxu0 0.0
        %1740 = vmatprep.subr.mxu0 0.0
        %1741 = vmatpush1.xpose.msra.mxu0 0.0
        %1742 = vmatprep.subr.mxu0 0.0
        %1743 = vmatpush1.xpose.msra.mxu0 0.0
        %1744 = vmatprep.subr.mxu0 0.0
        %1745 = vmatpush1.xpose.msra.mxu0 0.0
        %1746 = vmatprep.subr.mxu0 0.0
        %1747 = vmatpush1.xpose.msra.mxu0 0.0
        %1748 = vmatprep.mubr.f32.mxu0 0.0
        %1749 = vmatmul.mubr.f32.gmra.mrb[0].mxu0 %v1679
        %v1750 = vpop.f32.mrb[0].mxu0
        %v1751 = vadd.f32 %v1011, %v1750
        %v1752 = vpop.f32.mrb[0].mxu0
        %1753 = vdwg.mxu0
        %v1754 = vsel %vm1012, %v1751, -inf
        %1755 = vmax.xlane.f32.xlu0 %v1754
        %v1756 = vpop.xlane.xlu0 %1755
        %v1757 = vsub.f32 %v1751, %v1756
        %v1758 = vmul.f32 %v1757, 1.442695
        %v1759 = vpow.pop %v1758
        %v1760 = vsel %vm1012, %v1759, 0.0
        %1761 = vadd.xlane.f32.xlu0 %v1760
        %v1762 = vpop.xlane.xlu0 %1761
        %v1763 = vrcp.pop %v1762
        %v1764 = vmul.f32 %v1759, %v1763
        %v1765 = vmul.f32 %v1764, %v809
        %s1766 = scalar_lea.vmem %s752, 24 [#allocation4]
        %1767 = vst.msk [vmem:[%s1766] sm:$0xff] %vm1012, %v1765
        %1768 = vrot.lane.b32.xlu0 %v945, 40
        %v1769 = vpop.permute.xlu0 %1768
        %v1772 = vsel %vm1012, %v1764, 0
        %1774 = vmatprep.subr.mxu0 0.0
        %1775 = vmatpush1.msra.mxu0 %v1769
        %1776 = vmatprep.subr.mxu0 0.0
        %1777 = vmatpush1.msra.mxu0 0.0
        %1778 = vmatprep.subr.mxu0 0.0
        %1779 = vmatpush1.msra.mxu0 0.0
        %1780 = vmatprep.subr.mxu0 0.0
        %1781 = vmatpush1.msra.mxu0 0.0
        %1782 = vmatprep.subr.mxu0 0.0
        %1783 = vmatpush1.msra.mxu0 0.0
        %1784 = vmatprep.subr.mxu0 0.0
        %1785 = vmatpush1.msra.mxu0 0.0
        %1786 = vmatprep.subr.mxu0 0.0
        %1787 = vmatpush1.msra.mxu0 0.0
        %1788 = vmatprep.subr.mxu0 0.0
        %1789 = vmatpush1.msra.mxu0 0.0
        %1790 = vmatprep.subr.mxu0 0.0
        %1791 = vmatpush1.msra.mxu0 0.0
        %1792 = vmatprep.subr.mxu0 0.0
        %1793 = vmatpush1.msra.mxu0 0.0
        %1794 = vmatprep.subr.mxu0 0.0
        %1795 = vmatpush1.msra.mxu0 0.0
        %1796 = vmatprep.subr.mxu0 0.0
        %1797 = vmatpush1.msra.mxu0 0.0
        %1798 = vmatprep.subr.mxu0 0.0
        %1799 = vmatpush1.msra.mxu0 0.0
        %1800 = vmatprep.subr.mxu0 0.0
        %1801 = vmatpush1.msra.mxu0 0.0
        %1802 = vmatprep.subr.mxu0 0.0
        %1803 = vmatpush1.msra.mxu0 0.0
        %1804 = vmatprep.subr.mxu0 0.0
        %1805 = vmatpush1.msra.mxu0 0.0
        %1806 = vmatprep.subr.mxu0 0.0
        %1807 = vmatpush1.msra.mxu0 0.0
        %1808 = vmatprep.subr.mxu0 0.0
        %1809 = vmatpush1.msra.mxu0 0.0
        %1810 = vmatprep.subr.mxu0 0.0
        %1811 = vmatpush1.msra.mxu0 0.0
        %1812 = vmatprep.subr.mxu0 0.0
        %1813 = vmatpush1.msra.mxu0 0.0
        %1814 = vmatprep.subr.mxu0 0.0
        %1815 = vmatpush1.msra.mxu0 0.0
        %1816 = vmatprep.subr.mxu0 0.0
        %1817 = vmatpush1.msra.mxu0 0.0
        %1818 = vmatprep.subr.mxu0 0.0
        %1819 = vmatpush1.msra.mxu0 0.0
        %1820 = vmatprep.subr.mxu0 0.0
        %1821 = vmatpush1.msra.mxu0 0.0
        %1822 = vmatprep.subr.mxu0 0.0
        %1823 = vmatpush1.msra.mxu0 0.0
        %1824 = vmatprep.subr.mxu0 0.0
        %1825 = vmatpush1.msra.mxu0 0.0
        %1826 = vmatprep.subr.mxu0 0.0
        %1827 = vmatpush1.msra.mxu0 0.0
        %1828 = vmatprep.subr.mxu0 0.0
        %1829 = vmatpush1.msra.mxu0 0.0
        %1830 = vmatprep.subr.mxu0 0.0
        %1831 = vmatpush1.msra.mxu0 0.0
        %1832 = vmatprep.subr.mxu0 0.0
        %1833 = vmatpush1.msra.mxu0 0.0
        %1834 = vmatprep.subr.mxu0 0.0
        %1835 = vmatpush1.msra.mxu0 0.0
        %1836 = vmatprep.subr.mxu0 0.0
        %1837 = vmatpush1.msra.mxu0 0.0
        %1838 = vmatprep.mubr.f32.mxu0 0.0
        %1839 = vmatmul.mubr.f32.gmra.mrb[0].mxu0 %v1772
        %v1840 = vpop.f32.mrb[0].mxu0
        %v1841 = vadd.f32 0.0, %v1840
        %v1842 = vpop.f32.mrb[0].mxu0
        %1843 = vdwg.mxu0
        %1845 = vrot.lane.b32.xlu0 %v1841, 24
        %v1846 = vpop.permute.xlu0 %1845
        %vm1848 = vcmask 261312
        %1849 = vst.msk [vmem:[#allocation3] sm:$0xff] %vm1848, %v1846
        %v1850 = vmul.f32 %v950, %v811
        %v1851 = vmul.f32 %v950, %v956
        %1853 = vrot.lane.b32.xlu0 %v1851, 124
        %v1854 = vpop.permute.xlu0 %1853
        %v1856 = vsub.f32 %v1850, %v1854
        %v1857 = vmul.f32 %v950, %v965
        %1859 = vrot.lane.b32.xlu0 %v1857, 4
        %v1860 = vpop.permute.xlu0 %1859
        %v1862 = vadd.f32 %v1850, %v1860
        %v1863 = vsel %vm973, %v1856, %v1862
        %v1864 = vmul.f32 %v1863, 0.35355338
        %v1865 = vmul.f32 %v950, %v978
        %v1866 = vmul.f32 %v950, %v982
        %1868 = vrot.lane.b32.xlu0 %v1866, 124
        %v1869 = vpop.permute.xlu0 %1868
        %v1871 = vsub.f32 %v1865, %v1869
        %v1872 = vmul.f32 %v950, %v991
        %1874 = vrot.lane.b32.xlu0 %v1872, 4
        %v1875 = vpop.permute.xlu0 %1874
        %v1877 = vadd.f32 %v1865, %v1875
        %1879 = vrot.lane.b32.xlu0 %v1871, 96
        %v1880 = vpop.permute.xlu0 %1879
        %1883 = vrot.lane.b32.xlu0 %v1877, 96
        %v1884 = vpop.permute.xlu0 %1883
        %v1886 = vsel %vm973, %v1880, %v1884
        %v1887 = vlaneseq
        %v1888 = vshrl.u32 %v1887, 7
        %v1889 = vsub.s32 1, %v1888
        %v1890 = vrot.slane %v808, %v1889
        %v1892 = vsel %vm1012, %v1864, 0
        %v1895 = vsel %vm1012, %v1886, 0
        %1897 = vmatprep.subr.mxu0 0.0
        %1898 = vmatpush1.xpose.msra.mxu0 %v1895
        %1899 = vmatprep.subr.mxu0 0.0
        %1900 = vmatpush1.xpose.msra.mxu0 0.0
        %1901 = vmatprep.subr.mxu0 0.0
        %1902 = vmatpush1.xpose.msra.mxu0 0.0
        %1903 = vmatprep.subr.mxu0 0.0
        %1904 = vmatpush1.xpose.msra.mxu0 0.0
        %1905 = vmatprep.subr.mxu0 0.0
        %1906 = vmatpush1.xpose.msra.mxu0 0.0
        %1907 = vmatprep.subr.mxu0 0.0
        %1908 = vmatpush1.xpose.msra.mxu0 0.0
        %1909 = vmatprep.subr.mxu0 0.0
        %1910 = vmatpush1.xpose.msra.mxu0 0.0
        %1911 = vmatprep.subr.mxu0 0.0
        %1912 = vmatpush1.xpose.msra.mxu0 0.0
        %1913 = vmatprep.subr.mxu0 0.0
        %1914 = vmatpush1.xpose.msra.mxu0 0.0
        %1915 = vmatprep.subr.mxu0 0.0
        %1916 = vmatpush1.xpose.msra.mxu0 0.0
        %1917 = vmatprep.subr.mxu0 0.0
        %1918 = vmatpush1.xpose.msra.mxu0 0.0
        %1919 = vmatprep.subr.mxu0 0.0
        %1920 = vmatpush1.xpose.msra.mxu0 0.0
        %1921 = vmatprep.subr.mxu0 0.0
        %1922 = vmatpush1.xpose.msra.mxu0 0.0
        %1923 = vmatprep.subr.mxu0 0.0
        %1924 = vmatpush1.xpose.msra.mxu0 0.0
        %1925 = vmatprep.subr.mxu0 0.0
        %1926 = vmatpush1.xpose.msra.mxu0 0.0
        %1927 = vmatprep.subr.mxu0 0.0
        %1928 = vmatpush1.xpose.msra.mxu0 0.0
        %1929 = vmatprep.subr.mxu0 0.0
        %1930 = vmatpush1.xpose.msra.mxu0 0.0
        %1931 = vmatprep.subr.mxu0 0.0
        %1932 = vmatpush1.xpose.msra.mxu0 0.0
        %1933 = vmatprep.subr.mxu0 0.0
        %1934 = vmatpush1.xpose.msra.mxu0 0.0
        %1935 = vmatprep.subr.mxu0 0.0
        %1936 = vmatpush1.xpose.msra.mxu0 0.0
        %1937 = vmatprep.subr.mxu0 0.0
        %1938 = vmatpush1.xpose.msra.mxu0 0.0
        %1939 = vmatprep.subr.mxu0 0.0
        %1940 = vmatpush1.xpose.msra.mxu0 0.0
        %1941 = vmatprep.subr.mxu0 0.0
        %1942 = vmatpush1.xpose.msra.mxu0 0.0
        %1943 = vmatprep.subr.mxu0 0.0
        %1944 = vmatpush1.xpose.msra.mxu0 0.0
        %1945 = vmatprep.subr.mxu0 0.0
        %1946 = vmatpush1.xpose.msra.mxu0 0.0
        %1947 = vmatprep.subr.mxu0 0.0
        %1948 = vmatpush1.xpose.msra.mxu0 0.0
        %1949 = vmatprep.subr.mxu0 0.0
        %1950 = vmatpush1.xpose.msra.mxu0 0.0
        %1951 = vmatprep.subr.mxu0 0.0
        %1952 = vmatpush1.xpose.msra.mxu0 0.0
        %1953 = vmatprep.subr.mxu0 0.0
        %1954 = vmatpush1.xpose.msra.mxu0 0.0
        %1955 = vmatprep.subr.mxu0 0.0
        %1956 = vmatpush1.xpose.msra.mxu0 0.0
        %1957 = vmatprep.subr.mxu0 0.0
        %1958 = vmatpush1.xpose.msra.mxu0 0.0
        %1959 = vmatprep.subr.mxu0 0.0
        %1960 = vmatpush1.xpose.msra.mxu0 0.0
        %1961 = vmatprep.mubr.f32.mxu0 0.0
        %1962 = vmatmul.mubr.f32.gmra.mrb[0].mxu0 %v1892
        %v1963 = vpop.f32.mrb[0].mxu0
        %v1964 = vadd.f32 %v1890, %v1963
        %v1965 = vpop.f32.mrb[0].mxu0
        %1966 = vdwg.mxu0
        %v1967 = vsel %vm1012, %v1964, -inf
        %1968 = vmax.xlane.f32.xlu0 %v1967
        %v1969 = vpop.xlane.xlu0 %1968
        %v1970 = vsub.f32 %v1964, %v1969
        %v1971 = vmul.f32 %v1970, 1.442695
        %v1972 = vpow.pop %v1971
        %v1973 = vsel %vm1012, %v1972, 0.0
        %1974 = vadd.xlane.f32.xlu0 %v1973
        %v1975 = vpop.xlane.xlu0 %1974
        %v1976 = vrcp.pop %v1975
        %v1977 = vmul.f32 %v1972, %v1976
        %v1978 = vmul.f32 %v1977, %v810
        %s1979 = scalar_lea.vmem %s752, 32 [#allocation4]
        %1980 = vst.msk [vmem:[%s1979] sm:$0xff] %vm1012, %v1978
        %1982 = vrot.lane.b32.xlu0 %v950, 64
        %v1983 = vpop.permute.xlu0 %1982
        %v1986 = vsel %vm1012, %v1977, 0
        %1988 = vmatprep.subr.mxu0 0.0
        %1989 = vmatpush1.msra.mxu0 %v1983
        %1990 = vmatprep.subr.mxu0 0.0
        %1991 = vmatpush1.msra.mxu0 0.0
        %1992 = vmatprep.subr.mxu0 0.0
        %1993 = vmatpush1.msra.mxu0 0.0
        %1994 = vmatprep.subr.mxu0 0.0
        %1995 = vmatpush1.msra.mxu0 0.0
        %1996 = vmatprep.subr.mxu0 0.0
        %1997 = vmatpush1.msra.mxu0 0.0
        %1998 = vmatprep.subr.mxu0 0.0
        %1999 = vmatpush1.msra.mxu0 0.0
        %2000 = vmatprep.subr.mxu0 0.0
        %2001 = vmatpush1.msra.mxu0 0.0
        %2002 = vmatprep.subr.mxu0 0.0
        %2003 = vmatpush1.msra.mxu0 0.0
        %2004 = vmatprep.subr.mxu0 0.0
        %2005 = vmatpush1.msra.mxu0 0.0
        %2006 = vmatprep.subr.mxu0 0.0
        %2007 = vmatpush1.msra.mxu0 0.0
        %2008 = vmatprep.subr.mxu0 0.0
        %2009 = vmatpush1.msra.mxu0 0.0
        %2010 = vmatprep.subr.mxu0 0.0
        %2011 = vmatpush1.msra.mxu0 0.0
        %2012 = vmatprep.subr.mxu0 0.0
        %2013 = vmatpush1.msra.mxu0 0.0
        %2014 = vmatprep.subr.mxu0 0.0
        %2015 = vmatpush1.msra.mxu0 0.0
        %2016 = vmatprep.subr.mxu0 0.0
        %2017 = vmatpush1.msra.mxu0 0.0
        %2018 = vmatprep.subr.mxu0 0.0
        %2019 = vmatpush1.msra.mxu0 0.0
        %2020 = vmatprep.subr.mxu0 0.0
        %2021 = vmatpush1.msra.mxu0 0.0
        %2022 = vmatprep.subr.mxu0 0.0
        %2023 = vmatpush1.msra.mxu0 0.0
        %2024 = vmatprep.subr.mxu0 0.0
        %2025 = vmatpush1.msra.mxu0 0.0
        %2026 = vmatprep.subr.mxu0 0.0
        %2027 = vmatpush1.msra.mxu0 0.0
        %2028 = vmatprep.subr.mxu0 0.0
        %2029 = vmatpush1.msra.mxu0 0.0
        %2030 = vmatprep.subr.mxu0 0.0
        %2031 = vmatpush1.msra.mxu0 0.0
        %2032 = vmatprep.subr.mxu0 0.0
        %2033 = vmatpush1.msra.mxu0 0.0
        %2034 = vmatprep.subr.mxu0 0.0
        %2035 = vmatpush1.msra.mxu0 0.0
        %2036 = vmatprep.subr.mxu0 0.0
        %2037 = vmatpush1.msra.mxu0 0.0
        %2038 = vmatprep.subr.mxu0 0.0
        %2039 = vmatpush1.msra.mxu0 0.0
        %2040 = vmatprep.subr.mxu0 0.0
        %2041 = vmatpush1.msra.mxu0 0.0
        %2042 = vmatprep.subr.mxu0 0.0
        %2043 = vmatpush1.msra.mxu0 0.0
        %2044 = vmatprep.subr.mxu0 0.0
        %2045 = vmatpush1.msra.mxu0 0.0
        %2046 = vmatprep.subr.mxu0 0.0
        %2047 = vmatpush1.msra.mxu0 0.0
        %2048 = vmatprep.subr.mxu0 0.0
        %2049 = vmatpush1.msra.mxu0 0.0
        %2050 = vmatprep.subr.mxu0 0.0
        %2051 = vmatpush1.msra.mxu0 0.0
        %2052 = vmatprep.mubr.f32.mxu0 0.0
        %2053 = vmatmul.mubr.f32.gmra.mrb[0].mxu0 %v1986
        %v2054 = vpop.f32.mrb[0].mxu0
        %v2055 = vadd.f32 0.0, %v2054
        %v2056 = vpop.f32.mrb[0].mxu0
        %2057 = vdwg.mxu0
        %2058 = vst.msk [vmem:[#allocation3 + $0x8] sm:$0xff] %vm1012, %v2055
        %v2059 = vmul.f32 %v950, %v1181
        %v2060 = vmul.f32 %v950, %v1185
        %2062 = vrot.lane.b32.xlu0 %v2060, 124
        %v2063 = vpop.permute.xlu0 %2062
        %v2065 = vsub.f32 %v2059, %v2063
        %2066 = vrot.lane.b32.xlu0 %v1851, 4
        %v2067 = vpop.permute.xlu0 %2066
        %v2069 = vadd.f32 %v2059, %v2067
        %2071 = vrot.lane.b32.xlu0 %v2065, 120
        %v2072 = vpop.permute.xlu0 %2071
        %2075 = vrot.lane.b32.xlu0 %v2069, 120
        %v2076 = vpop.permute.xlu0 %2075
        %v2078 = vsel %vm973, %v2072, %v2076
        %v2079 = vmul.f32 %v2078, 0.35355338
        %v2080 = vmul.f32 %v950, %v1208
        %v2081 = vmul.f32 %v950, %v1212
        %2083 = vrot.lane.b32.xlu0 %v2081, 124
        %v2084 = vpop.permute.xlu0 %2083
        %v2086 = vsub.f32 %v2080, %v2084
        %2087 = vrot.lane.b32.xlu0 %v1866, 4
        %v2088 = vpop.permute.xlu0 %2087
        %v2090 = vadd.f32 %v2080, %v2088
        %2092 = vrot.lane.b32.xlu0 %v2086, 88
        %v2093 = vpop.permute.xlu0 %2092
        %2096 = vrot.lane.b32.xlu0 %v2090, 88
        %v2097 = vpop.permute.xlu0 %2096
        %v2099 = vsel %vm973, %v2093, %v2097
        %v2101 = vsel %vm1012, %v2079, 0
        %v2104 = vsel %vm1012, %v2099, 0
        %2106 = vmatprep.subr.mxu0 0.0
        %2107 = vmatpush1.xpose.msra.mxu0 %v2104
        %2108 = vmatprep.subr.mxu0 0.0
        %2109 = vmatpush1.xpose.msra.mxu0 0.0
        %2110 = vmatprep.subr.mxu0 0.0
        %2111 = vmatpush1.xpose.msra.mxu0 0.0
        %2112 = vmatprep.subr.mxu0 0.0
        %2113 = vmatpush1.xpose.msra.mxu0 0.0
        %2114 = vmatprep.subr.mxu0 0.0
        %2115 = vmatpush1.xpose.msra.mxu0 0.0
        %2116 = vmatprep.subr.mxu0 0.0
        %2117 = vmatpush1.xpose.msra.mxu0 0.0
        %2118 = vmatprep.subr.mxu0 0.0
        %2119 = vmatpush1.xpose.msra.mxu0 0.0
        %2120 = vmatprep.subr.mxu0 0.0
        %2121 = vmatpush1.xpose.msra.mxu0 0.0
        %2122 = vmatprep.subr.mxu0 0.0
        %2123 = vmatpush1.xpose.msra.mxu0 0.0
        %2124 = vmatprep.subr.mxu0 0.0
        %2125 = vmatpush1.xpose.msra.mxu0 0.0
        %2126 = vmatprep.subr.mxu0 0.0
        %2127 = vmatpush1.xpose.msra.mxu0 0.0
        %2128 = vmatprep.subr.mxu0 0.0
        %2129 = vmatpush1.xpose.msra.mxu0 0.0
        %2130 = vmatprep.subr.mxu0 0.0
        %2131 = vmatpush1.xpose.msra.mxu0 0.0
        %2132 = vmatprep.subr.mxu0 0.0
        %2133 = vmatpush1.xpose.msra.mxu0 0.0
        %2134 = vmatprep.subr.mxu0 0.0
        %2135 = vmatpush1.xpose.msra.mxu0 0.0
        %2136 = vmatprep.subr.mxu0 0.0
        %2137 = vmatpush1.xpose.msra.mxu0 0.0
        %2138 = vmatprep.subr.mxu0 0.0
        %2139 = vmatpush1.xpose.msra.mxu0 0.0
        %2140 = vmatprep.subr.mxu0 0.0
        %2141 = vmatpush1.xpose.msra.mxu0 0.0
        %2142 = vmatprep.subr.mxu0 0.0
        %2143 = vmatpush1.xpose.msra.mxu0 0.0
        %2144 = vmatprep.subr.mxu0 0.0
        %2145 = vmatpush1.xpose.msra.mxu0 0.0
        %2146 = vmatprep.subr.mxu0 0.0
        %2147 = vmatpush1.xpose.msra.mxu0 0.0
        %2148 = vmatprep.subr.mxu0 0.0
        %2149 = vmatpush1.xpose.msra.mxu0 0.0
        %2150 = vmatprep.subr.mxu0 0.0
        %2151 = vmatpush1.xpose.msra.mxu0 0.0
        %2152 = vmatprep.subr.mxu0 0.0
        %2153 = vmatpush1.xpose.msra.mxu0 0.0
        %2154 = vmatprep.subr.mxu0 0.0
        %2155 = vmatpush1.xpose.msra.mxu0 0.0
        %2156 = vmatprep.subr.mxu0 0.0
        %2157 = vmatpush1.xpose.msra.mxu0 0.0
        %2158 = vmatprep.subr.mxu0 0.0
        %2159 = vmatpush1.xpose.msra.mxu0 0.0
        %2160 = vmatprep.subr.mxu0 0.0
        %2161 = vmatpush1.xpose.msra.mxu0 0.0
        %2162 = vmatprep.subr.mxu0 0.0
        %2163 = vmatpush1.xpose.msra.mxu0 0.0
        %2164 = vmatprep.subr.mxu0 0.0
        %2165 = vmatpush1.xpose.msra.mxu0 0.0
        %2166 = vmatprep.subr.mxu0 0.0
        %2167 = vmatpush1.xpose.msra.mxu0 0.0
        %2168 = vmatprep.subr.mxu0 0.0
        %2169 = vmatpush1.xpose.msra.mxu0 0.0
        %2170 = vmatprep.mubr.f32.mxu0 0.0
        %2171 = vmatmul.mubr.f32.gmra.mrb[0].mxu0 %v2101
        %v2172 = vpop.f32.mrb[0].mxu0
        %v2173 = vadd.f32 %v1890, %v2172
        %v2174 = vpop.f32.mrb[0].mxu0
        %2175 = vdwg.mxu0
        %v2176 = vsel %vm1012, %v2173, -inf
        %2177 = vmax.xlane.f32.xlu0 %v2176
        %v2178 = vpop.xlane.xlu0 %2177
        %v2179 = vsub.f32 %v2173, %v2178
        %v2180 = vmul.f32 %v2179, 1.442695
        %v2181 = vpow.pop %v2180
        %v2182 = vsel %vm1012, %v2181, 0.0
        %2183 = vadd.xlane.f32.xlu0 %v2182
        %v2184 = vpop.xlane.xlu0 %2183
        %v2185 = vrcp.pop %v2184
        %v2186 = vmul.f32 %v2181, %v2185
        %v2187 = vmul.f32 %v2186, %v810
        %s2188 = scalar_lea.vmem %s752, 40 [#allocation4]
        %2189 = vst.msk [vmem:[%s2188] sm:$0xff] %vm1012, %v2187
        %2190 = vrot.lane.b32.xlu0 %v950, 56
        %v2191 = vpop.permute.xlu0 %2190
        %v2194 = vsel %vm1012, %v2186, 0
        %2196 = vmatprep.subr.mxu0 0.0
        %2197 = vmatpush1.msra.mxu0 %v2191
        %2198 = vmatprep.subr.mxu0 0.0
        %2199 = vmatpush1.msra.mxu0 0.0
        %2200 = vmatprep.subr.mxu0 0.0
        %2201 = vmatpush1.msra.mxu0 0.0
        %2202 = vmatprep.subr.mxu0 0.0
        %2203 = vmatpush1.msra.mxu0 0.0
        %2204 = vmatprep.subr.mxu0 0.0
        %2205 = vmatpush1.msra.mxu0 0.0
        %2206 = vmatprep.subr.mxu0 0.0
        %2207 = vmatpush1.msra.mxu0 0.0
        %2208 = vmatprep.subr.mxu0 0.0
        %2209 = vmatpush1.msra.mxu0 0.0
        %2210 = vmatprep.subr.mxu0 0.0
        %2211 = vmatpush1.msra.mxu0 0.0
        %2212 = vmatprep.subr.mxu0 0.0
        %2213 = vmatpush1.msra.mxu0 0.0
        %2214 = vmatprep.subr.mxu0 0.0
        %2215 = vmatpush1.msra.mxu0 0.0
        %2216 = vmatprep.subr.mxu0 0.0
        %2217 = vmatpush1.msra.mxu0 0.0
        %2218 = vmatprep.subr.mxu0 0.0
        %2219 = vmatpush1.msra.mxu0 0.0
        %2220 = vmatprep.subr.mxu0 0.0
        %2221 = vmatpush1.msra.mxu0 0.0
        %2222 = vmatprep.subr.mxu0 0.0
        %2223 = vmatpush1.msra.mxu0 0.0
        %2224 = vmatprep.subr.mxu0 0.0
        %2225 = vmatpush1.msra.mxu0 0.0
        %2226 = vmatprep.subr.mxu0 0.0
        %2227 = vmatpush1.msra.mxu0 0.0
        %2228 = vmatprep.subr.mxu0 0.0
        %2229 = vmatpush1.msra.mxu0 0.0
        %2230 = vmatprep.subr.mxu0 0.0
        %2231 = vmatpush1.msra.mxu0 0.0
        %2232 = vmatprep.subr.mxu0 0.0
        %2233 = vmatpush1.msra.mxu0 0.0
        %2234 = vmatprep.subr.mxu0 0.0
        %2235 = vmatpush1.msra.mxu0 0.0
        %2236 = vmatprep.subr.mxu0 0.0
        %2237 = vmatpush1.msra.mxu0 0.0
        %2238 = vmatprep.subr.mxu0 0.0
        %2239 = vmatpush1.msra.mxu0 0.0
        %2240 = vmatprep.subr.mxu0 0.0
        %2241 = vmatpush1.msra.mxu0 0.0
        %2242 = vmatprep.subr.mxu0 0.0
        %2243 = vmatpush1.msra.mxu0 0.0
        %2244 = vmatprep.subr.mxu0 0.0
        %2245 = vmatpush1.msra.mxu0 0.0
        %2246 = vmatprep.subr.mxu0 0.0
        %2247 = vmatpush1.msra.mxu0 0.0
        %2248 = vmatprep.subr.mxu0 0.0
        %2249 = vmatpush1.msra.mxu0 0.0
        %2250 = vmatprep.subr.mxu0 0.0
        %2251 = vmatpush1.msra.mxu0 0.0
        %2252 = vmatprep.subr.mxu0 0.0
        %2253 = vmatpush1.msra.mxu0 0.0
        %2254 = vmatprep.subr.mxu0 0.0
        %2255 = vmatpush1.msra.mxu0 0.0
        %2256 = vmatprep.subr.mxu0 0.0
        %2257 = vmatpush1.msra.mxu0 0.0
        %2258 = vmatprep.subr.mxu0 0.0
        %2259 = vmatpush1.msra.mxu0 0.0
        %2260 = vmatprep.mubr.f32.mxu0 0.0
        %2261 = vmatmul.mubr.f32.gmra.mrb[0].mxu0 %v2194
        %v2262 = vpop.f32.mrb[0].mxu0
        %v2263 = vadd.f32 0.0, %v2262
        %v2264 = vpop.f32.mrb[0].mxu0
        %2265 = vdwg.mxu0
        %2267 = vrot.lane.b32.xlu0 %v2263, 8
        %v2268 = vpop.permute.xlu0 %2267
        %2270 = vst.msk [vmem:[#allocation3 + $0x8] sm:$0xff] %vm1403, %v2268
        %v2271 = vmul.f32 %v950, %v1406
        %v2272 = vmul.f32 %v950, %v1410
        %2274 = vrot.lane.b32.xlu0 %v2272, 124
        %v2275 = vpop.permute.xlu0 %2274
        %v2277 = vsub.f32 %v2271, %v2275
        %2278 = vrot.lane.b32.xlu0 %v2060, 4
        %v2279 = vpop.permute.xlu0 %2278
        %v2281 = vadd.f32 %v2271, %v2279
        %2283 = vrot.lane.b32.xlu0 %v2277, 112
        %v2284 = vpop.permute.xlu0 %2283
        %2287 = vrot.lane.b32.xlu0 %v2281, 112
        %v2288 = vpop.permute.xlu0 %2287
        %v2290 = vsel %vm973, %v2284, %v2288
        %v2291 = vmul.f32 %v2290, 0.35355338
        %v2292 = vmul.f32 %v950, %v1433
        %v2293 = vmul.f32 %v950, %v1437
        %2295 = vrot.lane.b32.xlu0 %v2293, 124
        %v2296 = vpop.permute.xlu0 %2295
        %v2298 = vsub.f32 %v2292, %v2296
        %2299 = vrot.lane.b32.xlu0 %v2081, 4
        %v2300 = vpop.permute.xlu0 %2299
        %v2302 = vadd.f32 %v2292, %v2300
        %2304 = vrot.lane.b32.xlu0 %v2298, 80
        %v2305 = vpop.permute.xlu0 %2304
        %2308 = vrot.lane.b32.xlu0 %v2302, 80
        %v2309 = vpop.permute.xlu0 %2308
        %v2311 = vsel %vm973, %v2305, %v2309
        %v2313 = vsel %vm1012, %v2291, 0
        %v2316 = vsel %vm1012, %v2311, 0
        %2318 = vmatprep.subr.mxu0 0.0
        %2319 = vmatpush1.xpose.msra.mxu0 %v2316
        %2320 = vmatprep.subr.mxu0 0.0
        %2321 = vmatpush1.xpose.msra.mxu0 0.0
        %2322 = vmatprep.subr.mxu0 0.0
        %2323 = vmatpush1.xpose.msra.mxu0 0.0
        %2324 = vmatprep.subr.mxu0 0.0
        %2325 = vmatpush1.xpose.msra.mxu0 0.0
        %2326 = vmatprep.subr.mxu0 0.0
        %2327 = vmatpush1.xpose.msra.mxu0 0.0
        %2328 = vmatprep.subr.mxu0 0.0
        %2329 = vmatpush1.xpose.msra.mxu0 0.0
        %2330 = vmatprep.subr.mxu0 0.0
        %2331 = vmatpush1.xpose.msra.mxu0 0.0
        %2332 = vmatprep.subr.mxu0 0.0
        %2333 = vmatpush1.xpose.msra.mxu0 0.0
        %2334 = vmatprep.subr.mxu0 0.0
        %2335 = vmatpush1.xpose.msra.mxu0 0.0
        %2336 = vmatprep.subr.mxu0 0.0
        %2337 = vmatpush1.xpose.msra.mxu0 0.0
        %2338 = vmatprep.subr.mxu0 0.0
        %2339 = vmatpush1.xpose.msra.mxu0 0.0
        %2340 = vmatprep.subr.mxu0 0.0
        %2341 = vmatpush1.xpose.msra.mxu0 0.0
        %2342 = vmatprep.subr.mxu0 0.0
        %2343 = vmatpush1.xpose.msra.mxu0 0.0
        %2344 = vmatprep.subr.mxu0 0.0
        %2345 = vmatpush1.xpose.msra.mxu0 0.0
        %2346 = vmatprep.subr.mxu0 0.0
        %2347 = vmatpush1.xpose.msra.mxu0 0.0
        %2348 = vmatprep.subr.mxu0 0.0
        %2349 = vmatpush1.xpose.msra.mxu0 0.0
        %2350 = vmatprep.subr.mxu0 0.0
        %2351 = vmatpush1.xpose.msra.mxu0 0.0
        %2352 = vmatprep.subr.mxu0 0.0
        %2353 = vmatpush1.xpose.msra.mxu0 0.0
        %2354 = vmatprep.subr.mxu0 0.0
        %2355 = vmatpush1.xpose.msra.mxu0 0.0
        %2356 = vmatprep.subr.mxu0 0.0
        %2357 = vmatpush1.xpose.msra.mxu0 0.0
        %2358 = vmatprep.subr.mxu0 0.0
        %2359 = vmatpush1.xpose.msra.mxu0 0.0
        %2360 = vmatprep.subr.mxu0 0.0
        %2361 = vmatpush1.xpose.msra.mxu0 0.0
        %2362 = vmatprep.subr.mxu0 0.0
        %2363 = vmatpush1.xpose.msra.mxu0 0.0
        %2364 = vmatprep.subr.mxu0 0.0
        %2365 = vmatpush1.xpose.msra.mxu0 0.0
        %2366 = vmatprep.subr.mxu0 0.0
        %2367 = vmatpush1.xpose.msra.mxu0 0.0
        %2368 = vmatprep.subr.mxu0 0.0
        %2369 = vmatpush1.xpose.msra.mxu0 0.0
        %2370 = vmatprep.subr.mxu0 0.0
        %2371 = vmatpush1.xpose.msra.mxu0 0.0
        %2372 = vmatprep.subr.mxu0 0.0
        %2373 = vmatpush1.xpose.msra.mxu0 0.0
        %2374 = vmatprep.subr.mxu0 0.0
        %2375 = vmatpush1.xpose.msra.mxu0 0.0
        %2376 = vmatprep.subr.mxu0 0.0
        %2377 = vmatpush1.xpose.msra.mxu0 0.0
        %2378 = vmatprep.subr.mxu0 0.0
        %2379 = vmatpush1.xpose.msra.mxu0 0.0
        %2380 = vmatprep.subr.mxu0 0.0
        %2381 = vmatpush1.xpose.msra.mxu0 0.0
        %2382 = vmatprep.mubr.f32.mxu0 0.0
        %2383 = vmatmul.mubr.f32.gmra.mrb[0].mxu0 %v2313
        %v2384 = vpop.f32.mrb[0].mxu0
        %v2385 = vadd.f32 %v1890, %v2384
        %v2386 = vpop.f32.mrb[0].mxu0
        %2387 = vdwg.mxu0
        %v2388 = vsel %vm1012, %v2385, -inf
        %2389 = vmax.xlane.f32.xlu0 %v2388
        %v2390 = vpop.xlane.xlu0 %2389
        %v2391 = vsub.f32 %v2385, %v2390
        %v2392 = vmul.f32 %v2391, 1.442695
        %v2393 = vpow.pop %v2392
        %v2394 = vsel %vm1012, %v2393, 0.0
        %2395 = vadd.xlane.f32.xlu0 %v2394
        %v2396 = vpop.xlane.xlu0 %2395
        %v2397 = vrcp.pop %v2396
        %v2398 = vmul.f32 %v2393, %v2397
        %v2399 = vmul.f32 %v2398, %v810
        %s2400 = scalar_lea.vmem %s752, 48 [#allocation4]
        %2401 = vst.msk [vmem:[%s2400] sm:$0xff] %vm1012, %v2399
        %2402 = vrot.lane.b32.xlu0 %v950, 48
        %v2403 = vpop.permute.xlu0 %2402
        %v2406 = vsel %vm1012, %v2398, 0
        %2408 = vmatprep.subr.mxu0 0.0
        %2409 = vmatpush1.msra.mxu0 %v2403
        %2410 = vmatprep.subr.mxu0 0.0
        %2411 = vmatpush1.msra.mxu0 0.0
        %2412 = vmatprep.subr.mxu0 0.0
        %2413 = vmatpush1.msra.mxu0 0.0
        %2414 = vmatprep.subr.mxu0 0.0
        %2415 = vmatpush1.msra.mxu0 0.0
        %2416 = vmatprep.subr.mxu0 0.0
        %2417 = vmatpush1.msra.mxu0 0.0
        %2418 = vmatprep.subr.mxu0 0.0
        %2419 = vmatpush1.msra.mxu0 0.0
        %2420 = vmatprep.subr.mxu0 0.0
        %2421 = vmatpush1.msra.mxu0 0.0
        %2422 = vmatprep.subr.mxu0 0.0
        %2423 = vmatpush1.msra.mxu0 0.0
        %2424 = vmatprep.subr.mxu0 0.0
        %2425 = vmatpush1.msra.mxu0 0.0
        %2426 = vmatprep.subr.mxu0 0.0
        %2427 = vmatpush1.msra.mxu0 0.0
        %2428 = vmatprep.subr.mxu0 0.0
        %2429 = vmatpush1.msra.mxu0 0.0
        %2430 = vmatprep.subr.mxu0 0.0
        %2431 = vmatpush1.msra.mxu0 0.0
        %2432 = vmatprep.subr.mxu0 0.0
        %2433 = vmatpush1.msra.mxu0 0.0
        %2434 = vmatprep.subr.mxu0 0.0
        %2435 = vmatpush1.msra.mxu0 0.0
        %2436 = vmatprep.subr.mxu0 0.0
        %2437 = vmatpush1.msra.mxu0 0.0
        %2438 = vmatprep.subr.mxu0 0.0
        %2439 = vmatpush1.msra.mxu0 0.0
        %2440 = vmatprep.subr.mxu0 0.0
        %2441 = vmatpush1.msra.mxu0 0.0
        %2442 = vmatprep.subr.mxu0 0.0
        %2443 = vmatpush1.msra.mxu0 0.0
        %2444 = vmatprep.subr.mxu0 0.0
        %2445 = vmatpush1.msra.mxu0 0.0
        %2446 = vmatprep.subr.mxu0 0.0
        %2447 = vmatpush1.msra.mxu0 0.0
        %2448 = vmatprep.subr.mxu0 0.0
        %2449 = vmatpush1.msra.mxu0 0.0
        %2450 = vmatprep.subr.mxu0 0.0
        %2451 = vmatpush1.msra.mxu0 0.0
        %2452 = vmatprep.subr.mxu0 0.0
        %2453 = vmatpush1.msra.mxu0 0.0
        %2454 = vmatprep.subr.mxu0 0.0
        %2455 = vmatpush1.msra.mxu0 0.0
        %2456 = vmatprep.subr.mxu0 0.0
        %2457 = vmatpush1.msra.mxu0 0.0
        %2458 = vmatprep.subr.mxu0 0.0
        %2459 = vmatpush1.msra.mxu0 0.0
        %2460 = vmatprep.subr.mxu0 0.0
        %2461 = vmatpush1.msra.mxu0 0.0
        %2462 = vmatprep.subr.mxu0 0.0
        %2463 = vmatpush1.msra.mxu0 0.0
        %2464 = vmatprep.subr.mxu0 0.0
        %2465 = vmatpush1.msra.mxu0 0.0
        %2466 = vmatprep.subr.mxu0 0.0
        %2467 = vmatpush1.msra.mxu0 0.0
        %2468 = vmatprep.subr.mxu0 0.0
        %2469 = vmatpush1.msra.mxu0 0.0
        %2470 = vmatprep.subr.mxu0 0.0
        %2471 = vmatpush1.msra.mxu0 0.0
        %2472 = vmatprep.mubr.f32.mxu0 0.0
        %2473 = vmatmul.mubr.f32.gmra.mrb[0].mxu0 %v2406
        %v2474 = vpop.f32.mrb[0].mxu0
        %v2475 = vadd.f32 0.0, %v2474
        %v2476 = vpop.f32.mrb[0].mxu0
        %2477 = vdwg.mxu0
        %2479 = vrot.lane.b32.xlu0 %v2475, 16
        %v2480 = vpop.permute.xlu0 %2479
        %2482 = vst.msk [vmem:[#allocation3 + $0x8] sm:$0xff] %vm1628, %v2480
        %v2483 = vmul.f32 %v950, %v1631
        %2484 = vrot.lane.b32.xlu0 %v1872, 124
        %v2485 = vpop.permute.xlu0 %2484
        %v2487 = vsub.f32 %v2483, %v2485
        %2488 = vrot.lane.b32.xlu0 %v2272, 4
        %v2489 = vpop.permute.xlu0 %2488
        %v2491 = vadd.f32 %v2483, %v2489
        %2493 = vrot.lane.b32.xlu0 %v2487, 104
        %v2494 = vpop.permute.xlu0 %2493
        %2497 = vrot.lane.b32.xlu0 %v2491, 104
        %v2498 = vpop.permute.xlu0 %2497
        %v2500 = vsel %vm973, %v2494, %v2498
        %v2501 = vmul.f32 %v2500, 0.35355338
        %v2502 = vmul.f32 %v950, %v1653
        %v2503 = vmul.f32 %v950, %v1657
        %2505 = vrot.lane.b32.xlu0 %v2503, 124
        %v2506 = vpop.permute.xlu0 %2505
        %v2508 = vsub.f32 %v2502, %v2506
        %2509 = vrot.lane.b32.xlu0 %v2293, 4
        %v2510 = vpop.permute.xlu0 %2509
        %v2512 = vadd.f32 %v2502, %v2510
        %2514 = vrot.lane.b32.xlu0 %v2508, 72
        %v2515 = vpop.permute.xlu0 %2514
        %2518 = vrot.lane.b32.xlu0 %v2512, 72
        %v2519 = vpop.permute.xlu0 %2518
        %v2521 = vsel %vm973, %v2515, %v2519
        %v2523 = vsel %vm1012, %v2501, 0
        %v2526 = vsel %vm1012, %v2521, 0
        %2528 = vmatprep.subr.mxu0 0.0
        %2529 = vmatpush1.xpose.msra.mxu0 %v2526
        %2530 = vmatprep.subr.mxu0 0.0
        %2531 = vmatpush1.xpose.msra.mxu0 0.0
        %2532 = vmatprep.subr.mxu0 0.0
        %2533 = vmatpush1.xpose.msra.mxu0 0.0
        %2534 = vmatprep.subr.mxu0 0.0
        %2535 = vmatpush1.xpose.msra.mxu0 0.0
        %2536 = vmatprep.subr.mxu0 0.0
        %2537 = vmatpush1.xpose.msra.mxu0 0.0
        %2538 = vmatprep.subr.mxu0 0.0
        %2539 = vmatpush1.xpose.msra.mxu0 0.0
        %2540 = vmatprep.subr.mxu0 0.0
        %2541 = vmatpush1.xpose.msra.mxu0 0.0
        %2542 = vmatprep.subr.mxu0 0.0
        %2543 = vmatpush1.xpose.msra.mxu0 0.0
        %2544 = vmatprep.subr.mxu0 0.0
        %2545 = vmatpush1.xpose.msra.mxu0 0.0
        %2546 = vmatprep.subr.mxu0 0.0
        %2547 = vmatpush1.xpose.msra.mxu0 0.0
        %2548 = vmatprep.subr.mxu0 0.0
        %2549 = vmatpush1.xpose.msra.mxu0 0.0
        %2550 = vmatprep.subr.mxu0 0.0
        %2551 = vmatpush1.xpose.msra.mxu0 0.0
        %2552 = vmatprep.subr.mxu0 0.0
        %2553 = vmatpush1.xpose.msra.mxu0 0.0
        %2554 = vmatprep.subr.mxu0 0.0
        %2555 = vmatpush1.xpose.msra.mxu0 0.0
        %2556 = vmatprep.subr.mxu0 0.0
        %2557 = vmatpush1.xpose.msra.mxu0 0.0
        %2558 = vmatprep.subr.mxu0 0.0
        %2559 = vmatpush1.xpose.msra.mxu0 0.0
        %2560 = vmatprep.subr.mxu0 0.0
        %2561 = vmatpush1.xpose.msra.mxu0 0.0
        %2562 = vmatprep.subr.mxu0 0.0
        %2563 = vmatpush1.xpose.msra.mxu0 0.0
        %2564 = vmatprep.subr.mxu0 0.0
        %2565 = vmatpush1.xpose.msra.mxu0 0.0
        %2566 = vmatprep.subr.mxu0 0.0
        %2567 = vmatpush1.xpose.msra.mxu0 0.0
        %2568 = vmatprep.subr.mxu0 0.0
        %2569 = vmatpush1.xpose.msra.mxu0 0.0
        %2570 = vmatprep.subr.mxu0 0.0
        %2571 = vmatpush1.xpose.msra.mxu0 0.0
        %2572 = vmatprep.subr.mxu0 0.0
        %2573 = vmatpush1.xpose.msra.mxu0 0.0
        %2574 = vmatprep.subr.mxu0 0.0
        %2575 = vmatpush1.xpose.msra.mxu0 0.0
        %2576 = vmatprep.subr.mxu0 0.0
        %2577 = vmatpush1.xpose.msra.mxu0 0.0
        %2578 = vmatprep.subr.mxu0 0.0
        %2579 = vmatpush1.xpose.msra.mxu0 0.0
        %2580 = vmatprep.subr.mxu0 0.0
        %2581 = vmatpush1.xpose.msra.mxu0 0.0
        %2582 = vmatprep.subr.mxu0 0.0
        %2583 = vmatpush1.xpose.msra.mxu0 0.0
        %2584 = vmatprep.subr.mxu0 0.0
        %2585 = vmatpush1.xpose.msra.mxu0 0.0
        %2586 = vmatprep.subr.mxu0 0.0
        %2587 = vmatpush1.xpose.msra.mxu0 0.0
        %2588 = vmatprep.subr.mxu0 0.0
        %2589 = vmatpush1.xpose.msra.mxu0 0.0
        %2590 = vmatprep.subr.mxu0 0.0
        %2591 = vmatpush1.xpose.msra.mxu0 0.0
        %2592 = vmatprep.mubr.f32.mxu0 0.0
        %2593 = vmatmul.mubr.f32.gmra.mrb[0].mxu0 %v2523
        %v2594 = vpop.f32.mrb[0].mxu0
        %v2595 = vadd.f32 %v1890, %v2594
        %v2596 = vpop.f32.mrb[0].mxu0
        %2597 = vdwg.mxu0
        %v2598 = vsel %vm1012, %v2595, -inf
        %2599 = vmax.xlane.f32.xlu0 %v2598
        %v2600 = vpop.xlane.xlu0 %2599
        %v2601 = vsub.f32 %v2595, %v2600
        %v2602 = vmul.f32 %v2601, 1.442695
        %v2603 = vpow.pop %v2602
        %v2604 = vsel %vm1012, %v2603, 0.0
        %2605 = vadd.xlane.f32.xlu0 %v2604
        %v2606 = vpop.xlane.xlu0 %2605
        %v2607 = vrcp.pop %v2606
        %v2608 = vmul.f32 %v2603, %v2607
        %v2609 = vmul.f32 %v2608, %v810
        %s2610 = scalar_lea.vmem %s752, 56 [#allocation4]
        %2611 = vst.msk [vmem:[%s2610] sm:$0xff] %vm1012, %v2609
        %2612 = vrot.lane.b32.xlu0 %v950, 40
        %v2613 = vpop.permute.xlu0 %2612
        %v2616 = vsel %vm1012, %v2608, 0
        %2618 = vmatprep.subr.mxu0 0.0
        %2619 = vmatpush1.msra.mxu0 %v2613
        %2620 = vmatprep.subr.mxu0 0.0
        %2621 = vmatpush1.msra.mxu0 0.0
        %2622 = vmatprep.subr.mxu0 0.0
        %2623 = vmatpush1.msra.mxu0 0.0
        %2624 = vmatprep.subr.mxu0 0.0
        %2625 = vmatpush1.msra.mxu0 0.0
        %2626 = vmatprep.subr.mxu0 0.0
        %2627 = vmatpush1.msra.mxu0 0.0
        %2628 = vmatprep.subr.mxu0 0.0
        %2629 = vmatpush1.msra.mxu0 0.0
        %2630 = vmatprep.subr.mxu0 0.0
        %2631 = vmatpush1.msra.mxu0 0.0
        %2632 = vmatprep.subr.mxu0 0.0
        %2633 = vmatpush1.msra.mxu0 0.0
        %2634 = vmatprep.subr.mxu0 0.0
        %2635 = vmatpush1.msra.mxu0 0.0
        %2636 = vmatprep.subr.mxu0 0.0
        %2637 = vmatpush1.msra.mxu0 0.0
        %2638 = vmatprep.subr.mxu0 0.0
        %2639 = vmatpush1.msra.mxu0 0.0
        %2640 = vmatprep.subr.mxu0 0.0
        %2641 = vmatpush1.msra.mxu0 0.0
        %2642 = vmatprep.subr.mxu0 0.0
        %2643 = vmatpush1.msra.mxu0 0.0
        %2644 = vmatprep.subr.mxu0 0.0
        %2645 = vmatpush1.msra.mxu0 0.0
        %2646 = vmatprep.subr.mxu0 0.0
        %2647 = vmatpush1.msra.mxu0 0.0
        %2648 = vmatprep.subr.mxu0 0.0
        %2649 = vmatpush1.msra.mxu0 0.0
        %2650 = vmatprep.subr.mxu0 0.0
        %2651 = vmatpush1.msra.mxu0 0.0
        %2652 = vmatprep.subr.mxu0 0.0
        %2653 = vmatpush1.msra.mxu0 0.0
        %2654 = vmatprep.subr.mxu0 0.0
        %2655 = vmatpush1.msra.mxu0 0.0
        %2656 = vmatprep.subr.mxu0 0.0
        %2657 = vmatpush1.msra.mxu0 0.0
        %2658 = vmatprep.subr.mxu0 0.0
        %2659 = vmatpush1.msra.mxu0 0.0
        %2660 = vmatprep.subr.mxu0 0.0
        %2661 = vmatpush1.msra.mxu0 0.0
        %2662 = vmatprep.subr.mxu0 0.0
        %2663 = vmatpush1.msra.mxu0 0.0
        %2664 = vmatprep.subr.mxu0 0.0
        %2665 = vmatpush1.msra.mxu0 0.0
        %2666 = vmatprep.subr.mxu0 0.0
        %2667 = vmatpush1.msra.mxu0 0.0
        %2668 = vmatprep.subr.mxu0 0.0
        %2669 = vmatpush1.msra.mxu0 0.0
        %2670 = vmatprep.subr.mxu0 0.0
        %2671 = vmatpush1.msra.mxu0 0.0
        %2672 = vmatprep.subr.mxu0 0.0
        %2673 = vmatpush1.msra.mxu0 0.0
        %2674 = vmatprep.subr.mxu0 0.0
        %2675 = vmatpush1.msra.mxu0 0.0
        %2676 = vmatprep.subr.mxu0 0.0
        %2677 = vmatpush1.msra.mxu0 0.0
        %2678 = vmatprep.subr.mxu0 0.0
        %2679 = vmatpush1.msra.mxu0 0.0
        %2680 = vmatprep.subr.mxu0 0.0
        %2681 = vmatpush1.msra.mxu0 0.0
        %2682 = vmatprep.mubr.f32.mxu0 0.0
        %2683 = vmatmul.mubr.f32.gmra.mrb[0].mxu0 %v2616
        %v2684 = vpop.f32.mrb[0].mxu0
        %v2685 = vadd.f32 0.0, %v2684
        %v2686 = vpop.f32.mrb[0].mxu0
        %2687 = vdwg.mxu0
        %2689 = vrot.lane.b32.xlu0 %v2685, 24
        %v2690 = vpop.permute.xlu0 %2689
        %2692 = vst.msk [vmem:[#allocation3 + $0x8] sm:$0xff] %vm1848, %v2690
        %v2693 = vld [vmem:[#allocation3] sm:$0xff]
        %v2694 = vld [vmem:[#allocation3 + $0x8] sm:$0xff]
        %v2695 = vld [vmem:[%s773] sm:$0xff]
        %v2696 = vld [vmem:[%s773 + $0x8] sm:$0xff]
        %v2697 = vld [vmem:[%s773 + $0x10] sm:$0xff]
        %v2698 = vld [vmem:[%s773 + $0x18] sm:$0xff]
        %v2700 = vsel %vm817, %v2693, 0
        %v2703 = vsel %vm817, %v2694, 0
        %2705 = vmatprep.subr.mxu0 0.0
        %2706 = vmatpush1.msra.mxu0 %v2695
        %2707 = vmatprep.subr.mxu0 0.0
        %2708 = vmatpush1.msra.mxu0 %v2696
        %2709 = vmatprep.subr.mxu0 0.0
        %2710 = vmatpush1.msra.mxu0 %v2697
        %2711 = vmatprep.subr.mxu0 0.0
        %2712 = vmatpush1.msra.mxu0 %v2698
        %2713 = vmatprep.subr.mxu0 0.0
        %2714 = vmatpush1.msra.mxu0 0.0
        %2715 = vmatprep.subr.mxu0 0.0
        %2716 = vmatpush1.msra.mxu0 0.0
        %2717 = vmatprep.subr.mxu0 0.0
        %2718 = vmatpush1.msra.mxu0 0.0
        %2719 = vmatprep.subr.mxu0 0.0
        %2720 = vmatpush1.msra.mxu0 0.0
        %2721 = vmatprep.subr.mxu0 0.0
        %2722 = vmatpush1.msra.mxu0 0.0
        %2723 = vmatprep.subr.mxu0 0.0
        %2724 = vmatpush1.msra.mxu0 0.0
        %2725 = vmatprep.subr.mxu0 0.0
        %2726 = vmatpush1.msra.mxu0 0.0
        %2727 = vmatprep.subr.mxu0 0.0
        %2728 = vmatpush1.msra.mxu0 0.0
        %2729 = vmatprep.subr.mxu0 0.0
        %2730 = vmatpush1.msra.mxu0 0.0
        %2731 = vmatprep.subr.mxu0 0.0
        %2732 = vmatpush1.msra.mxu0 0.0
        %2733 = vmatprep.subr.mxu0 0.0
        %2734 = vmatpush1.msra.mxu0 0.0
        %2735 = vmatprep.subr.mxu0 0.0
        %2736 = vmatpush1.msra.mxu0 0.0
        %2737 = vmatprep.subr.mxu0 0.0
        %2738 = vmatpush1.msra.mxu0 0.0
        %2739 = vmatprep.subr.mxu0 0.0
        %2740 = vmatpush1.msra.mxu0 0.0
        %2741 = vmatprep.subr.mxu0 0.0
        %2742 = vmatpush1.msra.mxu0 0.0
        %2743 = vmatprep.subr.mxu0 0.0
        %2744 = vmatpush1.msra.mxu0 0.0
        %2745 = vmatprep.subr.mxu0 0.0
        %2746 = vmatpush1.msra.mxu0 0.0
        %2747 = vmatprep.subr.mxu0 0.0
        %2748 = vmatpush1.msra.mxu0 0.0
        %2749 = vmatprep.subr.mxu0 0.0
        %2750 = vmatpush1.msra.mxu0 0.0
        %2751 = vmatprep.subr.mxu0 0.0
        %2752 = vmatpush1.msra.mxu0 0.0
        %2753 = vmatprep.subr.mxu0 0.0
        %2754 = vmatpush1.msra.mxu0 0.0
        %2755 = vmatprep.subr.mxu0 0.0
        %2756 = vmatpush1.msra.mxu0 0.0
        %2757 = vmatprep.subr.mxu0 0.0
        %2758 = vmatpush1.msra.mxu0 0.0
        %2759 = vmatprep.subr.mxu0 0.0
        %2760 = vmatpush1.msra.mxu0 0.0
        %2761 = vmatprep.subr.mxu0 0.0
        %2762 = vmatpush1.msra.mxu0 0.0
        %2763 = vmatprep.subr.mxu0 0.0
        %2764 = vmatpush1.msra.mxu0 0.0
        %2765 = vmatprep.subr.mxu0 0.0
        %2766 = vmatpush1.msra.mxu0 0.0
        %2767 = vmatprep.subr.mxu0 0.0
        %2768 = vmatpush1.msra.mxu0 0.0
        %2769 = vmatprep.mubr.f32.mxu0 0.0
        %2770 = vmatmul.mubr.f32.gmra.mrb[0].mxu0 %v2700
        %v2771 = vpop.f32.mrb[0].mxu0
        %v2772 = vadd.f32 0.0, %v2771
        %v2773 = vpop.f32.mrb[0].mxu0
        %2774 = vmatprep.mubr.f32.mxu0 0.0
        %2775 = vmatmul.mubr.f32.gmra.mrb[0].mxu0 %v2703
        %v2776 = vpop.f32.mrb[0].mxu0
        %v2777 = vadd.f32 0.0, %v2776
        %v2778 = vpop.f32.mrb[0].mxu0
        %2779 = vdwg.mxu0
        %v2780 = vadd.f32 %v813, %v2772
        %v2781 = vadd.f32 %v814, %v2777
        %v2782 = vld [vmem:[%s776] sm:$0x1]
        %v2784 = vlaneseq
        %v2785 = vshrl.u32 %v2784, 7
        %v2786 = vsub.s32 0, %v2785
        %v2787 = vrot.slane %v2782, %v2786
        %v2789 = vadd.f32 %v2780, %v2787
        %v2790 = vadd.f32 %v2781, %v2787
        %v2791 = vld [vmem:[%s779] sm:$0x1]
        %v2792 = vld [vmem:[%s782] sm:$0x1]
        %v2793 = vsel %vm817, %v2789, 0.0
        %2794 = vadd.xlane.f32.xlu0 %v2793
        %v2795 = vpop.xlane.xlu0 %2794
        %v2796 = vsel %vm817, %v2790, 0.0
        %2797 = vadd.xlane.f32.xlu0 %v2796
        %v2798 = vpop.xlane.xlu0 %2797
        %v2799 = vmul.f32 %v2795, %v824
        %v2800 = vmul.f32 %v2798, %v824
        %v2801 = vsub.f32 %v2789, %v2799
        %v2802 = vsub.f32 %v2790, %v2800
        %v2803 = vmul.f32 %v2801, %v2801
        %v2804 = vmul.f32 %v2802, %v2802
        %v2805 = vsel %vm817, %v2803, 0.0
        %2806 = vadd.xlane.f32.xlu0 %v2805
        %v2807 = vpop.xlane.xlu0 %2806
        %v2808 = vsel %vm817, %v2804, 0.0
        %2809 = vadd.xlane.f32.xlu0 %v2808
        %v2810 = vpop.xlane.xlu0 %2809
        %v2811 = vmul.f32 %v2807, %v824
        %v2812 = vmul.f32 %v2810, %v824
        %v2813 = vadd.f32 %v2811, 1e-12
        %v2814 = vadd.f32 %v2812, 1e-12
        %v2815 = vrsqrt.pop %v2813
        %v2816 = vrsqrt.pop %v2814
        %v2817 = vmul.f32 %v2801, %v2815
        %v2818 = vmul.f32 %v2802, %v2816
        %v2820 = vlaneseq
        %v2821 = vshrl.u32 %v2820, 7
        %v2822 = vsub.s32 0, %v2821
        %v2823 = vrot.slane %v2791, %v2822
        %v2825 = vmul.f32 %v2823, %v2817
        %v2826 = vmul.f32 %v2823, %v2818
        %v2828 = vlaneseq
        %v2829 = vshrl.u32 %v2828, 7
        %v2830 = vsub.s32 0, %v2829
        %v2831 = vrot.slane %v2792, %v2830
        %v2833 = vadd.f32 %v2825, %v2831
        %v2834 = vadd.f32 %v2826, %v2831
        %v2835 = vld [vmem:[%s787] sm:$0xff]
        %v2836 = vld [vmem:[%s787 + $0x8] sm:$0xff]
        %v2837 = vld [vmem:[%s787 + $0x10] sm:$0xff]
        %v2838 = vld [vmem:[%s787 + $0x18] sm:$0xff]
        %v2839 = vld [vmem:[%s790] sm:$0x1]
        %v2841 = vlaneseq
        %v2842 = vshrl.u32 %v2841, 7
        %v2843 = vsub.s32 0, %v2842
        %v2844 = vrot.slane %v2839, %v2843
        %v2847 = vsel %vm817, %v2833, 0
        %v2850 = vsel %vm817, %v2834, 0
        %2852 = vmatprep.subr.mxu0 0.0
        %2853 = vmatpush1.msra.mxu0 %v2835
        %2854 = vmatprep.subr.mxu0 0.0
        %2855 = vmatpush1.msra.mxu0 %v2836
        %2856 = vmatprep.subr.mxu0 0.0
        %2857 = vmatpush1.msra.mxu0 %v2837
        %2858 = vmatprep.subr.mxu0 0.0
        %2859 = vmatpush1.msra.mxu0 %v2838
        %2860 = vmatprep.subr.mxu0 0.0
        %2861 = vmatpush1.msra.mxu0 0.0
        %2862 = vmatprep.subr.mxu0 0.0
        %2863 = vmatpush1.msra.mxu0 0.0
        %2864 = vmatprep.subr.mxu0 0.0
        %2865 = vmatpush1.msra.mxu0 0.0
        %2866 = vmatprep.subr.mxu0 0.0
        %2867 = vmatpush1.msra.mxu0 0.0
        %2868 = vmatprep.subr.mxu0 0.0
        %2869 = vmatpush1.msra.mxu0 0.0
        %2870 = vmatprep.subr.mxu0 0.0
        %2871 = vmatpush1.msra.mxu0 0.0
        %2872 = vmatprep.subr.mxu0 0.0
        %2873 = vmatpush1.msra.mxu0 0.0
        %2874 = vmatprep.subr.mxu0 0.0
        %2875 = vmatpush1.msra.mxu0 0.0
        %2876 = vmatprep.subr.mxu0 0.0
        %2877 = vmatpush1.msra.mxu0 0.0
        %2878 = vmatprep.subr.mxu0 0.0
        %2879 = vmatpush1.msra.mxu0 0.0
        %2880 = vmatprep.subr.mxu0 0.0
        %2881 = vmatpush1.msra.mxu0 0.0
        %2882 = vmatprep.subr.mxu0 0.0
        %2883 = vmatpush1.msra.mxu0 0.0
        %2884 = vmatprep.subr.mxu0 0.0
        %2885 = vmatpush1.msra.mxu0 0.0
        %2886 = vmatprep.subr.mxu0 0.0
        %2887 = vmatpush1.msra.mxu0 0.0
        %2888 = vmatprep.subr.mxu0 0.0
        %2889 = vmatpush1.msra.mxu0 0.0
        %2890 = vmatprep.subr.mxu0 0.0
        %2891 = vmatpush1.msra.mxu0 0.0
        %2892 = vmatprep.subr.mxu0 0.0
        %2893 = vmatpush1.msra.mxu0 0.0
        %2894 = vmatprep.subr.mxu0 0.0
        %2895 = vmatpush1.msra.mxu0 0.0
        %2896 = vmatprep.subr.mxu0 0.0
        %2897 = vmatpush1.msra.mxu0 0.0
        %2898 = vmatprep.subr.mxu0 0.0
        %2899 = vmatpush1.msra.mxu0 0.0
        %2900 = vmatprep.subr.mxu0 0.0
        %2901 = vmatpush1.msra.mxu0 0.0
        %2902 = vmatprep.subr.mxu0 0.0
        %2903 = vmatpush1.msra.mxu0 0.0
        %2904 = vmatprep.subr.mxu0 0.0
        %2905 = vmatpush1.msra.mxu0 0.0
        %2906 = vmatprep.subr.mxu0 0.0
        %2907 = vmatpush1.msra.mxu0 0.0
        %2908 = vmatprep.subr.mxu0 0.0
        %2909 = vmatpush1.msra.mxu0 0.0
        %2910 = vmatprep.subr.mxu0 0.0
        %2911 = vmatpush1.msra.mxu0 0.0
        %2912 = vmatprep.subr.mxu0 0.0
        %2913 = vmatpush1.msra.mxu0 0.0
        %2914 = vmatprep.subr.mxu0 0.0
        %2915 = vmatpush1.msra.mxu0 0.0
        %2916 = vmatprep.mubr.f32.mxu0 0.0
        %2917 = vmatmul.mubr.f32.gmra.mrb[0].mxu0 %v2847
        %v2918 = vpop.f32.mrb[0].mxu0
        %v2919 = vadd.f32 %v2844, %v2918
        %v2920 = vpop.f32.mrb[0].mxu0
        %2921 = vmatprep.mubr.f32.mxu0 0.0
        %2922 = vmatmul.mubr.f32.gmra.mrb[0].mxu0 %v2850
        %v2923 = vpop.f32.mrb[0].mxu0
        %v2924 = vadd.f32 %v2844, %v2923
        %v2925 = vpop.f32.mrb[0].mxu0
        %2926 = vdwg.mxu0
        %v2927 = vmul.f32 %v2919, 0.5
        %v2928 = vmul.f32 %v2924, 0.5
        %v2929 = vmul.f32 %v2919, 0.70710677
        %v2930 = vmul.f32 %v2924, 0.70710677
        %v2931 = vand.u32 2147483647, %v2929
        %v2932 = vand.u32 2147483647, %v2930
        %v2933 = vmul.f32 %v2931, 0.3275911
        %v2934 = vmul.f32 %v2932, 0.3275911
        %v2935 = vadd.f32 %v2933, 1.0
        %v2936 = vadd.f32 %v2934, 1.0
        %v2937 = vrcp.pop %v2935
        %v2938 = vmul.f32 1.0, %v2937
        %v2939 = vrcp.pop %v2936
        %v2940 = vmul.f32 1.0, %v2939
        %v2941 = vmul.f32 %v2938, 1.0614054
        %v2942 = vmul.f32 %v2940, 1.0614054
        %v2943 = vadd.f32 %v2941, -1.4531521
        %v2944 = vadd.f32 %v2942, -1.4531521
        %v2945 = vmul.f32 %v2943, %v2938
        %v2946 = vmul.f32 %v2944, %v2940
        %v2947 = vadd.f32 %v2945, 1.4214138
        %v2948 = vadd.f32 %v2946, 1.4214138
        %v2949 = vmul.f32 %v2947, %v2938
        %v2950 = vmul.f32 %v2948, %v2940
        %v2951 = vadd.f32 %v2949, -0.28449672
        %v2952 = vadd.f32 %v2950, -0.28449672
        %v2953 = vmul.f32 %v2951, %v2938
        %v2954 = vmul.f32 %v2952, %v2940
        %v2955 = vadd.f32 %v2953, 0.2548296
        %v2956 = vadd.f32 %v2954, 0.2548296
        %v2957 = vmul.f32 %v2955, %v2938
        %v2958 = vmul.f32 %v2956, %v2940
        %v2959 = vsub.f32 0.0, %v2931
        %v2960 = vsub.f32 0.0, %v2932
        %v2961 = vmul.f32 %v2959, %v2931
        %v2962 = vmul.f32 %v2960, %v2932
        %v2963 = vmul.f32 %v2961, 1.442695
        %v2964 = vpow.pop %v2963
        %v2965 = vmul.f32 %v2962, 1.442695
        %v2966 = vpow.pop %v2965
        %v2967 = vmul.f32 %v2957, %v2964
        %v2968 = vmul.f32 %v2958, %v2966
        %v2969 = vsub.f32 1.0, %v2967
        %v2970 = vsub.f32 1.0, %v2968
        %vm2971 = vcmp.ge.f32.partialorder %v2929, 0.0
        %vm2972 = vcmp.ge.f32.partialorder %v2930, 0.0
        %v2973 = vsub.f32 0.0, %v2969
        %v2974 = vsub.f32 0.0, %v2970
        %v2975 = vsel %vm2971, %v2969, %v2973
        %v2976 = vsel %vm2972, %v2970, %v2974
        %v2977 = vadd.f32 %v2975, 1.0
        %v2978 = vadd.f32 %v2976, 1.0
        %v2979 = vmul.f32 %v2927, %v2977
        %v2980 = vmul.f32 %v2928, %v2978
        %v2981 = vld [vmem:[%s795] sm:$0xff]
        %v2982 = vld [vmem:[%s795 + $0x8] sm:$0xff]
        %v2983 = vld [vmem:[%s795 + $0x10] sm:$0xff]
        %v2984 = vld [vmem:[%s795 + $0x18] sm:$0xff]
        %v2985 = vld [vmem:[%s795 + $0x20] sm:$0xff]
        %v2986 = vld [vmem:[%s795 + $0x28] sm:$0xff]
        %v2987 = vld [vmem:[%s795 + $0x30] sm:$0xff]
        %v2988 = vld [vmem:[%s795 + $0x38] sm:$0xff]
        %v2989 = vld [vmem:[%s795 + $0x40] sm:$0xff]
        %v2990 = vld [vmem:[%s795 + $0x48] sm:$0xff]
        %v2991 = vld [vmem:[%s795 + $0x50] sm:$0xff]
        %v2992 = vld [vmem:[%s795 + $0x58] sm:$0xff]
        %v2993 = vld [vmem:[%s795 + $0x60] sm:$0xff]
        %v2994 = vld [vmem:[%s795 + $0x68] sm:$0xff]
        %v2995 = vld [vmem:[%s795 + $0x70] sm:$0xff]
        %v2996 = vld [vmem:[%s795 + $0x78] sm:$0xff]
        %2997 = vmatprep.subr.mxu0 0.0
        %2998 = vmatpush1.msra.mxu0 %v2981
        %2999 = vmatprep.subr.mxu0 0.0
        %3000 = vmatpush1.msra.mxu0 %v2982
        %3001 = vmatprep.subr.mxu0 0.0
        %3002 = vmatpush1.msra.mxu0 %v2983
        %3003 = vmatprep.subr.mxu0 0.0
        %3004 = vmatpush1.msra.mxu0 %v2984
        %3005 = vmatprep.subr.mxu0 0.0
        %3006 = vmatpush1.msra.mxu0 %v2985
        %3007 = vmatprep.subr.mxu0 0.0
        %3008 = vmatpush1.msra.mxu0 %v2986
        %3009 = vmatprep.subr.mxu0 0.0
        %3010 = vmatpush1.msra.mxu0 %v2987
        %3011 = vmatprep.subr.mxu0 0.0
        %3012 = vmatpush1.msra.mxu0 %v2988
        %3013 = vmatprep.subr.mxu0 0.0
        %3014 = vmatpush1.msra.mxu0 %v2989
        %3015 = vmatprep.subr.mxu0 0.0
        %3016 = vmatpush1.msra.mxu0 %v2990
        %3017 = vmatprep.subr.mxu0 0.0
        %3018 = vmatpush1.msra.mxu0 %v2991
        %3019 = vmatprep.subr.mxu0 0.0
        %3020 = vmatpush1.msra.mxu0 %v2992
        %3021 = vmatprep.subr.mxu0 0.0
        %3022 = vmatpush1.msra.mxu0 %v2993
        %3023 = vmatprep.subr.mxu0 0.0
        %3024 = vmatpush1.msra.mxu0 %v2994
        %3025 = vmatprep.subr.mxu0 0.0
        %3026 = vmatpush1.msra.mxu0 %v2995
        %3027 = vmatprep.subr.mxu0 0.0
        %3028 = vmatpush1.msra.mxu0 %v2996
        %3029 = vmatprep.subr.mxu0 0.0
        %3030 = vmatpush1.msra.mxu0 0.0
        %3031 = vmatprep.subr.mxu0 0.0
        %3032 = vmatpush1.msra.mxu0 0.0
        %3033 = vmatprep.subr.mxu0 0.0
        %3034 = vmatpush1.msra.mxu0 0.0
        %3035 = vmatprep.subr.mxu0 0.0
        %3036 = vmatpush1.msra.mxu0 0.0
        %3037 = vmatprep.subr.mxu0 0.0
        %3038 = vmatpush1.msra.mxu0 0.0
        %3039 = vmatprep.subr.mxu0 0.0
        %3040 = vmatpush1.msra.mxu0 0.0
        %3041 = vmatprep.subr.mxu0 0.0
        %3042 = vmatpush1.msra.mxu0 0.0
        %3043 = vmatprep.subr.mxu0 0.0
        %3044 = vmatpush1.msra.mxu0 0.0
        %3045 = vmatprep.subr.mxu0 0.0
        %3046 = vmatpush1.msra.mxu0 0.0
        %3047 = vmatprep.subr.mxu0 0.0
        %3048 = vmatpush1.msra.mxu0 0.0
        %3049 = vmatprep.subr.mxu0 0.0
        %3050 = vmatpush1.msra.mxu0 0.0
        %3051 = vmatprep.subr.mxu0 0.0
        %3052 = vmatpush1.msra.mxu0 0.0
        %3053 = vmatprep.subr.mxu0 0.0
        %3054 = vmatpush1.msra.mxu0 0.0
        %3055 = vmatprep.subr.mxu0 0.0
        %3056 = vmatpush1.msra.mxu0 0.0
        %3057 = vmatprep.subr.mxu0 0.0
        %3058 = vmatpush1.msra.mxu0 0.0
        %3059 = vmatprep.subr.mxu0 0.0
        %3060 = vmatpush1.msra.mxu0 0.0
        %3061 = vmatprep.mubr.f32.mxu0 0.0
        %3062 = vmatmul.mubr.f32.gmra.mrb[0].mxu0 %v2979
        %v3063 = vpop.f32.mrb[0].mxu0
        %v3064 = vadd.f32 0.0, %v3063
        %v3065 = vpop.f32.mrb[0].mxu0
        %3066 = vmatprep.mubr.f32.mxu0 0.0
        %3067 = vmatmul.mubr.f32.gmra.mrb[0].mxu0 %v2980
        %v3068 = vpop.f32.mrb[0].mxu0
        %v3069 = vadd.f32 0.0, %v3068
        %v3070 = vpop.f32.mrb[0].mxu0
        %3071 = vdwg.mxu0
        %v3072 = vadd.f32 %v2789, %v3064
        %v3073 = vadd.f32 %v2790, %v3069
        %v3074 = vld [vmem:[%s798] sm:$0x1]
        %v3076 = vlaneseq
        %v3077 = vshrl.u32 %v3076, 7
        %v3078 = vsub.s32 0, %v3077
        %v3079 = vrot.slane %v3074, %v3078
        %v3081 = vadd.f32 %v3072, %v3079
        %v3082 = vadd.f32 %v3073, %v3079
        %3083 = vst.msk [vmem:[#allocation2] sm:$0xff] %vm817, %v3081
        %3084 = vst.msk [vmem:[#allocation2 + $0x8] sm:$0xff] %vm817, %v3082
        %p3085 = scmp.eq.s32.totalorder %s36, 1
        // Predicated region
        $region101: #{tpu_custom_call.1} parent=95 // pred_check
          %p3086 = pneg %p3085
        $region102: #{tpu_custom_call.1} parent=95 // pred_check_branch
          %3088 = sbr.rel (%p3086) target = $region104
        $region103: #{tpu_custom_call.1} parent=95 // pred_region
          %v3089 = vld [vmem:[%s17] sm:$0x1]
          %v3090 = vld [vmem:[%s18] sm:$0x1]
          %v3091 = vsel %vm817, %v3081, 0.0
          %3092 = vadd.xlane.f32.xlu0 %v3091
          %v3093 = vpop.xlane.xlu0 %3092
          %v3094 = vsel %vm817, %v3082, 0.0
          %3095 = vadd.xlane.f32.xlu0 %v3094
          %v3096 = vpop.xlane.xlu0 %3095
          %v3097 = vmul.f32 %v3093, %v824
          %v3098 = vmul.f32 %v3096, %v824
          %v3099 = vsub.f32 %v3081, %v3097
          %v3100 = vsub.f32 %v3082, %v3098
          %v3101 = vmul.f32 %v3099, %v3099
          %v3102 = vmul.f32 %v3100, %v3100
          %v3103 = vsel %vm817, %v3101, 0.0
          %3104 = vadd.xlane.f32.xlu0 %v3103
          %v3105 = vpop.xlane.xlu0 %3104
          %v3106 = vsel %vm817, %v3102, 0.0
          %3107 = vadd.xlane.f32.xlu0 %v3106
          %v3108 = vpop.xlane.xlu0 %3107
          %v3109 = vmul.f32 %v3105, %v824
          %v3110 = vmul.f32 %v3108, %v824
          %v3111 = vadd.f32 %v3109, 1e-12
          %v3112 = vadd.f32 %v3110, 1e-12
          %v3113 = vrsqrt.pop %v3111
          %v3114 = vrsqrt.pop %v3112
          %v3115 = vmul.f32 %v3099, %v3113
          %v3116 = vmul.f32 %v3100, %v3114
          %v3118 = vlaneseq
          %v3119 = vshrl.u32 %v3118, 7
          %v3120 = vsub.s32 0, %v3119
          %v3121 = vrot.slane %v3089, %v3120
          %v3123 = vmul.f32 %v3121, %v3115
          %v3124 = vmul.f32 %v3121, %v3116
          %v3126 = vlaneseq
          %v3127 = vshrl.u32 %v3126, 7
          %v3128 = vsub.s32 0, %v3127
          %v3129 = vrot.slane %v3090, %v3128
          %v3131 = vadd.f32 %v3123, %v3129
          %v3132 = vadd.f32 %v3124, %v3129
          %3133 = vst.msk [vmem:[#allocation6] sm:$0xff] %vm817, %v3131
          %3134 = vst.msk [vmem:[#allocation6 + $0x8] sm:$0xff] %vm817, %v3132
        $region104: #{tpu_custom_call.1} parent=95 // pred_fallthru
          _
        %s3135 = sand.u32 %s503, 1
        %s3136 = scalar_lea.sflag [#allocation5], %s3135
        %s3137 = sand.u32 %s503, 1
        %s3138 = smul.addr %s3137, 64
        %s3139 = scalar_lea.vmem [#allocation4], %s3138
        // Predicated region
        $region105: #{tpu_custom_call.1} parent=95 // pred_check
          %p3140 = pneg %p513
        $region106: #{tpu_custom_call.1} parent=95 // pred_check_branch
          %3142 = sbr.rel (%p3140) target = $region108
        $region107: #{tpu_custom_call.1} parent=95 // pred_region
          %s3144 = ssub.s32 1024, 1024
          %3145 = vsyncadd %s3136, %s3144
          %s3146 = smul.addr %s36, 8
          %s3147 = smul.addr %s3146, 128
          %s3148 = scalar_lea.hbm %s19, %s3147
          %s3149 = sshll.u32 %s3139, 4
          %s3150 = int_to_ptr.vmem [resolvable:$true] %s3149
          %3155 = dma.vmem_to_hbm [thread:$0]  %s3150, 1024, %s3148, %s3136, 128, 128, 8
        $region108: #{tpu_custom_call.1} parent=95 // pred_fallthru
          _
        // Predicated region
        $region109: #{tpu_custom_call.1} parent=95 // pred_check
          %p3156 = pneg %p534
        $region110: #{tpu_custom_call.1} parent=95 // pred_check_branch
          %3158 = sbr.rel (%p3156) target = $region112
        $region111: #{tpu_custom_call.1} parent=95 // pred_region
          %s3160 = ssub.s32 256, 256
          %3161 = vsyncadd [#allocation7], %s3160
          %s3162 = sshll.u32 [#allocation6], 4
          %s3163 = int_to_ptr.vmem [resolvable:$true] %s3162
          %3168 = dma.vmem_to_hbm [thread:$0]  %s3163, 256, %s20, [#allocation7], 128, 128, 8
        $region112: #{tpu_custom_call.1} parent=95 // pred_fallthru
          _
        // Predicated region
        $region113: #{tpu_custom_call.1} parent=95 // pred_check
          %p3169 = pneg %p534
        $region114: #{tpu_custom_call.1} parent=95 // pred_check_branch
          %3171 = sbr.rel (%p3169) target = $region116
        $region115: #{tpu_custom_call.1} parent=95 // pred_region
          %3172 = dma.done [#allocation7], 256
        $region116: #{tpu_custom_call.1} parent=95 // pred_fallthru
          _
      $region96: #{tpu_custom_call.1} parent=5 // pred_fallthru
        _
      %p3173 = scmp.le.s32.totalorder 2, %s31
      // Predicated region
      $region117: #{tpu_custom_call.1} parent=5 // pred_check
        %p3174 = pneg %p3173
      $region118: #{tpu_custom_call.1} parent=5 // pred_check_branch
        %3176 = sbr.rel (%p3174) target = $region120
      $region119: #{tpu_custom_call.1} parent=5 // pred_region
        %s3177 = ssub.s32 %s31, 2
        // Predicated region
        $region121: #{tpu_custom_call.1} parent=119 // pred_check
          %p3178 = pneg %p519
        $region122: #{tpu_custom_call.1} parent=119 // pred_check_branch
          %3180 = sbr.rel (%p3178) target = $region124
        $region123: #{tpu_custom_call.1} parent=119 // pred_region
          %s3181 = sand.u32 %s504, 1
          %s3182 = scalar_lea.sflag [#allocation5], %s3181
          %s3183 = sand.u32 %s504, 1
          %s3184 = smul.addr %s3183, 64
          %s3185 = scalar_lea.vmem [#allocation4], %s3184
          %3186 = dma.done %s3182, 1024
        $region124: #{tpu_custom_call.1} parent=119 // pred_fallthru
          _
      $region120: #{tpu_custom_call.1} parent=5 // pred_fallthru
        _
    $region6: #{tpu_custom_call.1} parent=1 // loop_footer
      %s35 = sadd.s32 1, %s31
    $region7: #{tpu_custom_call.1} parent=1 // loop_footer_branch
      %30 = sbr.rel target = $region3
    $region8: #{tpu_custom_call.1} parent=1 // loop_exit
      _
    %3187 = vsyncpa [#allocation5], 1
    %s3188 = scalar_lea.sflag [#allocation5], 1
    %3189 = vsyncpa %s3188, 1
    %3190 = vsyncpa [#allocation7], 1

</llo_original>
